<compile_context>
chip_gen: v6e
topology: v6e:2x2x1
jax: 0.10.0
libtpu: 0.0.40
codegen_flags: <defaults>
</compile_context>

<pallas_src>
import functools

import jax
import jax.numpy as jnp
from jax.experimental import pallas as pl
from jax.experimental.pallas import tpu as pltpu

PROJ_PAD = 128     # projection heads padded to a full 128-lane vreg
NEG_BIG = -1e30    # pad-logit bias -> exactly 0 probability after softmax


def _vmem_spec():
    return pl.BlockSpec(memory_space=pltpu.MemorySpace.VMEM)


# -----------------------------------------------------------------------------
# Pallas kernels (fused)
# -----------------------------------------------------------------------------
def _attn_atom_kernel(q_ref, kv_ref, mask_ref, wq_ref, wkv_ref, wo_ref,
                      pw_ref, pb_ref, dec_ref, prob_ref):
    """Single-head self-attention for the *last* query position (the PyTorch
    code only consumes dec[-1, :, :]), fused with the prj_atom linear+softmax
    head.  K/V projections share one (D, 2D) weight."""
    q = q_ref[...]                                     # (B, D)
    kv = kv_ref[...]                                   # (B, Lmax, D)
    d = q.shape[-1]
    Q = jnp.dot(q, wq_ref[...], preferred_element_type=jnp.float32)      # (B, D)
    KV = jnp.einsum('bld,de->ble', kv, wkv_ref[...],
                    preferred_element_type=jnp.float32)                   # (B, L, 2D)
    K = KV[..., :d]
    V = KV[..., d:]
    # scores via elementwise-mul + lane reduce (no batched dot_general)
    scores = jnp.sum(Q[:, None, :] * K, axis=-1)
    scores = scores * (1.0 / jnp.sqrt(jnp.float32(d))) + mask_ref[...]
    s_max = jnp.max(scores, axis=-1, keepdims=True)
    p = jnp.exp(scores - s_max)
    p = p * pl.reciprocal(jnp.sum(p, axis=-1, keepdims=True), approx=True)
    ctx = jnp.sum(p[:, :, None] * V, axis=1)                              # (B, D)
    dec = jnp.dot(ctx, wo_ref[...], preferred_element_type=jnp.float32)
    dec_ref[...] = dec
    # fused prj_atom + softmax (padded to 128 lanes)
    z = jnp.dot(dec, pw_ref[...], preferred_element_type=jnp.float32) + pb_ref[...]
    z_max = jnp.max(z, axis=-1, keepdims=True)
    e = jnp.exp(z - z_max)
    prob_ref[...] = e * pl.reciprocal(jnp.sum(e, axis=-1, keepdims=True), approx=True)


def _gru_proj_kernel(x_ref, h_ref, wih_ref, whh_ref, bih_ref, bhh_ref,
                     pw_ref, pb_ref, h_out_ref, prob_ref):
    """PyTorch nn.GRUCell with fused (D, 3D) gate weights, fused with a
    linear + softmax projection head (output padded to 128 lanes)."""
    x = x_ref[...]
    h = h_ref[...]
    d = h.shape[-1]
    gi = jnp.dot(x, wih_ref[...], preferred_element_type=jnp.float32) + bih_ref[...]
    gh = jnp.dot(h, whh_ref[...], preferred_element_type=jnp.float32) + bhh_ref[...]
    r = jax.nn.sigmoid(gi[:, :d] + gh[:, :d])
    z = jax.nn.sigmoid(gi[:, d:2 * d] + gh[:, d:2 * d])
    n = jnp.tanh(gi[:, 2 * d:] + r * gh[:, 2 * d:])
    h_new = (1.0 - z) * n + z * h
    h_out_ref[...] = h_new
    logits = jnp.dot(h_new, pw_ref[...], preferred_element_type=jnp.float32) + pb_ref[...]
    z_max = jnp.max(logits, axis=-1, keepdims=True)
    e = jnp.exp(logits - z_max)
    prob_ref[...] = e * pl.reciprocal(jnp.sum(e, axis=-1, keepdims=True), approx=True)


# -----------------------------------------------------------------------------
# Kernel wrappers (full-array VMEM blocks, trivial grid — shapes are tiny)
# -----------------------------------------------------------------------------
def attn_atom(q, kv, add_mask, wq, wkv, wo, pw, pb):
    B, D = q.shape
    P = pw.shape[1]
    return pl.pallas_call(
        _attn_atom_kernel,
        out_shape=(jax.ShapeDtypeStruct((B, D), jnp.float32),
                   jax.ShapeDtypeStruct((B, P), jnp.float32)),
        in_specs=[_vmem_spec()] * 8,
        out_specs=(_vmem_spec(), _vmem_spec()),
    )(q, kv, add_mask, wq, wkv, wo, pw, pb)


def gru_proj(params, x, h, pw, pb):
    B, D = h.shape
    P = pw.shape[1]
    return pl.pallas_call(
        _gru_proj_kernel,
        out_shape=(jax.ShapeDtypeStruct((B, D), jnp.float32),
                   jax.ShapeDtypeStruct((B, P), jnp.float32)),
        in_specs=[_vmem_spec()] * 8,
        out_specs=(_vmem_spec(), _vmem_spec()),
    )(x, h, params['gru_wih'], params['gru_whh'],
      params['gru_bih'], params['gru_bhh'], pw, pb)


# -----------------------------------------------------------------------------
# Synthetic "agent" network parameters (deterministic init)
# -----------------------------------------------------------------------------
def init_net(key, d=32, n_grows=8, n_frags=4, voc_size=8):
    max_len = n_grows + n_frags
    keys = jax.random.split(key, 20)

    def w(k, shape, scale=0.1):
        return jax.random.normal(k, shape, dtype=jnp.float32) * scale

    def pad_proj(w_, b_):
        din, v = w_.shape
        wp = jnp.zeros((din, PROJ_PAD), jnp.float32).at[:, :v].set(w_)
        bp = jnp.full((1, PROJ_PAD), NEG_BIG, jnp.float32).at[:, :v].set(b_)
        return wp, bp

    w_atom, b_atom = pad_proj(w(keys[8], (d, voc_size)), w(keys[9], (1, voc_size)))
    w_bond, b_bond = pad_proj(w(keys[10], (d, 4)), w(keys[11], (1, 4)))
    w_loci, b_loci = pad_proj(w(keys[12], (d, n_grows)), w(keys[13], (1, n_grows)))
    z3 = jnp.zeros((1, 3 * d), dtype=jnp.float32)

    cfg = dict(d=d, n_grows=n_grows, n_frags=n_frags, max_len=max_len,
               voc_size=voc_size, tk_star=voc_size - 1, tk_go=1)
    params = dict(
        # per-token max valence; negative marks invalid tokens (GO)
        voc_masks=jnp.array([0, -1, 4, 3, 2, 1, 2, 1], dtype=jnp.int32),
        emb_word=w(keys[0], (voc_size * 4, d)),
        emb_site=w(keys[1], (n_grows * n_grows, d)),
        emb_atom=w(keys[2], (voc_size, d)),
        emb_loci=w(keys[3], (n_grows, d)),
        attn_wq=w(keys[4], (d, d)),
        attn_wkv=jnp.concatenate([w(keys[5], (d, d)), w(keys[6], (d, d))], axis=1),
        attn_wo=w(keys[7], (d, d)),
        prj_atom_w=w_atom, prj_atom_b=b_atom,
        prj_bond_w=w_bond, prj_bond_b=b_bond,
        prj_loci_w=w_loci, prj_loci_b=b_loci,
        gru_wih=jnp.concatenate([w(keys[14], (d, d)), w(keys[15], (d, d)),
                                 w(keys[16], (d, d))], axis=1),
        gru_whh=jnp.concatenate([w(keys[17], (d, d)), w(keys[18], (d, d)),
                                 w(keys[19], (d, d))], axis=1),
        gru_bih=z3, gru_bhh=z3,
    )
    return cfg, params


# -----------------------------------------------------------------------------
# Host/JAX glue
# -----------------------------------------------------------------------------
def masked_multinomial(probs, mask, key):
    """Equivalent of probs.masked_fill(mask, 0).multinomial(1)."""
    # TODO(synk): torch.multinomial raises on all-zero rows; here we fall back
    # to index 0 so the synthetic run stays well-defined.
    p = jnp.where(mask, 0.0, probs)
    all_zero = jnp.sum(p, axis=-1) <= 0.0
    logits = jnp.where(p > 0, jnp.log(jnp.maximum(p, 1e-30)), -1e30)
    sample = jax.random.categorical(key, logits, axis=-1)
    return jnp.where(all_zero, 0, sample).astype(jnp.int32)


def set_rows(mask, row_cond, col_slice, value):
    """mask[row_cond, col_slice] = value (torch boolean-row assignment)."""
    sub = mask[:, col_slice]
    sub = jnp.where(row_cond[:, None], value, sub)
    return mask.at[:, col_slice].set(sub)


def graph_explorer_forward(cfg, params, src, key):
    """Faithful (up to RNG) port of GraphExplorer.forward.  src: (B, max_len, 5) int32."""
    B = src.shape[0]
    d, n_grows, n_frags = cfg['d'], cfg['n_grows'], cfg['n_frags']
    max_len, voc_size = cfg['max_len'], cfg['voc_size']
    tk_star, tk_go = cfg['tk_star'], cfg['tk_go']
    voc_mask = params['voc_masks']

    def update_emb(cache, src_, pos):
        row = src_[:, pos, :]
        e = (params['emb_word'][row[:, 3] + row[:, 0] * 4]
             + params['emb_site'][row[:, 1] * n_grows + row[:, 2]])
        return cache.at[:, pos, :].set(e)

    def attention(cache, step):
        add_mask = jnp.where(jnp.arange(max_len)[None, :] < step, 0.0, -1e9)
        add_mask = jnp.broadcast_to(add_mask, (B, max_len)).astype(jnp.float32)
        q = cache[:, step - 1, :]
        return attn_atom(q, cache, add_mask,
                         params['attn_wq'], params['attn_wkv'], params['attn_wo'],
                         params['prj_atom_w'], params['prj_atom_b'])

    # crover / mutate are None -> always use the agent net (rand draw kept for parity)
    key, sub = jax.random.split(key)
    _ = jax.random.uniform(sub, ())

    is_end = jnp.zeros((B,), dtype=bool)
    exists = jnp.zeros((B, n_grows, n_grows), dtype=jnp.int32)
    vals_max = jnp.zeros((B, n_grows), dtype=jnp.int32)
    frg_ids = jnp.zeros((B, n_grows), dtype=jnp.int32)
    order = jnp.arange(B, dtype=jnp.int32)
    curr = jnp.zeros((B,), dtype=jnp.int32) - 1
    blank = jnp.full((B,), tk_star, dtype=jnp.int32)
    single = jnp.ones((B,), dtype=jnp.int32)
    vals_rom = vals_max - exists.sum(axis=1)
    emb_cache = jnp.zeros((B, max_len, d), dtype=jnp.float32)

    # ---------------- growing phase ----------------
    for step in range(1, n_grows):
        all_end = jnp.all(is_end)
        state0 = (exists, vals_max, frg_ids, curr, is_end, vals_rom)

        emb_cache = update_emb(emb_cache, src, step - 1)
        dec, atom_probs = attention(emb_cache, step)
        grow = src[:, step, 4] == 0

        mask = jnp.tile(voc_mask[None, :], (B, 1)) < 0        # (B, voc)
        if step <= 2:
            mask = mask.at[:, -1].set(True)
        else:
            # TODO(synk): curr may still be -1 here; JAX wraps to the last row.
            judge = (vals_rom == 0) | (exists[order, curr, :] != 0)
            judge = judge.at[order, curr].set(True)
            judge = judge.all(axis=1) | (vals_rom[order, curr] == 0)
            mask = mask.at[:, -1].set(jnp.where(judge, True, mask[:, -1]))
        mask = mask.at[:, 1].set(True)
        mask = set_rows(mask, is_end, slice(1, None), True)

        key, sub = jax.random.split(key)
        atom = masked_multinomial(atom_probs[:, :voc_size], mask, sub)
        src = src.at[:, step, 0].set(jnp.where(grow, atom, src[:, step, 0]))
        atom = src[:, step, 0]
        is_end = is_end | ((atom == 0) & grow)

        num = (vals_max > 0).sum(axis=1)
        vals_max = vals_max.at[order, num].set(voc_mask[atom])
        vals_rom = vals_max - exists.sum(axis=1)
        bud = atom != tk_star
        curr = curr + bud.astype(jnp.int32)
        curr = jnp.where(is_end, 0, curr)
        src = src.at[:, step, 1].set(curr)

        exist = exists[order, curr, :] != 0
        mask = jnp.zeros((B, 4), dtype=bool)
        for i in range(1, 4):
            judge = (vals_rom < i) | exist
            judge = judge.at[order, curr].set(True)
            col = judge.all(axis=1) | (vals_rom[order, curr] < i)
            mask = mask.at[:, i].set(col)
        mask = mask.at[:, 0].set(False if step == 1 else True)
        mask = set_rows(mask, is_end, slice(0, 1), False)
        mask = set_rows(mask, is_end, slice(1, None), True)

        atom_emb = params['emb_atom'][atom]
        dec, bond_probs = gru_proj(params, atom_emb, dec,
                                   params['prj_bond_w'], params['prj_bond_b'])
        key, sub = jax.random.split(key)
        bond = masked_multinomial(bond_probs[:, :4], mask, sub)
        src = src.at[:, step, 3].set(jnp.where(grow, bond, src[:, step, 3]))
        bond = src[:, step, 3]

        mask = (vals_max == 0) | exist | (vals_rom < bond[:, None])
        mask = mask.at[order, curr].set(True)
        if step <= 2:
            mask = mask.at[:, 0].set(False)
        mask = set_rows(mask, is_end, slice(0, 1), False)
        mask = set_rows(mask, is_end, slice(1, None), True)

        word_emb = params['emb_word'][atom * 4 + bond]
        dec, prev_probs = gru_proj(params, word_emb, dec,
                                   params['prj_loci_w'], params['prj_loci_b'])
        key, sub = jax.random.split(key)
        prev = masked_multinomial(prev_probs[:, :n_grows], mask, sub)
        src = src.at[:, step, 2].set(jnp.where(grow, prev, src[:, step, 2]))
        prev = src[:, step, 2]

        # fragment-id bookkeeping (vectorized per-row loop)
        new_val = jnp.where(~grow, src[:, step, 4],
                            jnp.where(bud, frg_ids[order, prev],
                                      frg_ids[order, curr]))
        frg_ids = frg_ids.at[order, curr].set(new_val)
        obj = frg_ids[order, curr]
        ix = frg_ids == frg_ids[order, prev][:, None]
        frg_ids = jnp.where(ix, obj[:, None], frg_ids)

        exists = exists.at[order, curr, prev].set(bond)
        exists = exists.at[order, prev, curr].set(bond)
        vals_rom = vals_max - exists.sum(axis=1)
        is_end = is_end | (vals_rom == 0).all(axis=1)

        # all-ended early-exit semantics (zero the row, keep pre-step state)
        # implemented with a traced select -> no host sync, whole loop jittable.
        def _sel(old, new):
            return jnp.where(all_end, old, new)
        exists = _sel(state0[0], exists)
        vals_max = _sel(state0[1], vals_max)
        frg_ids = _sel(state0[2], frg_ids)
        curr = _sel(state0[3], curr)
        is_end = _sel(state0[4], is_end)
        vals_rom = _sel(state0[5], vals_rom)
        src = src.at[:, step, :].set(jnp.where(all_end, 0, src[:, step, :]))

    # ---------------- connecting phase ----------------
    go_pos = max_len - n_frags
    src = src.at[:, go_pos, 1:].set(0)
    src = src.at[:, go_pos, 0].set(tk_go)
    is_end = jnp.zeros((B,), dtype=bool)

    # refresh cached embeddings for the final growing row(s) and the GO row
    for pos in range(n_grows - 1, go_pos + 1):
        emb_cache = update_emb(emb_cache, src, pos)

    for step in range(n_grows + 1, max_len):
        if step - 1 > go_pos:
            emb_cache = update_emb(emb_cache, src, step - 1)
        dec, _ = attention(emb_cache, step)   # atom-head output unused here
        vals_rom = vals_max - exists.sum(axis=1)
        frgs_rom = jnp.zeros((B, 8), dtype=jnp.int32)
        for i in range(1, 8):
            rom = jnp.where(frg_ids != i, 0, vals_rom)
            frgs_rom = frgs_rom.at[:, i].set(rom.sum(axis=1))
        is_end = is_end | (vals_rom == 0).all(axis=1)
        is_end = is_end | ((frgs_rom != 0).sum(axis=1) <= 1)

        mask = (vals_rom < 1) | (vals_max == 0)
        mask = set_rows(mask, is_end, slice(0, 1), False)
        atom_emb = params['emb_word'][blank * 4 + single]
        dec, prev_probs = gru_proj(params, atom_emb, dec,
                                   params['prj_loci_w'], params['prj_loci_b'])
        key, sub = jax.random.split(key)
        prev = masked_multinomial(prev_probs[:, :n_grows], mask, sub)

        same = frg_ids == frg_ids[order, prev][:, None]
        exist = exists[order, prev] != 0
        mask = (vals_rom < 1) | exist | (vals_max == 0) | same
        mask = set_rows(mask, is_end, slice(0, 1), False)
        prev_emb = params['emb_loci'][prev]
        dec, curr_probs = gru_proj(params, prev_emb, dec,
                                   params['prj_loci_w'], params['prj_loci_b'])
        key, sub = jax.random.split(key)
        curr = masked_multinomial(curr_probs[:, :n_grows], mask, sub)

        src = src.at[:, step, 3].set(single)
        src = src.at[:, step, 2].set(prev)
        src = src.at[:, step, 1].set(curr)
        src = src.at[:, step, 0].set(blank)
        src = src.at[:, step, :].set(
            jnp.where(is_end[:, None], 0, src[:, step, :]))

        obj = frg_ids[order, curr]
        ix = frg_ids == frg_ids[order, prev][:, None]
        frg_ids = jnp.where(ix, obj[:, None], frg_ids)

        exists = exists.at[order, src[:, step, 1], src[:, step, 2]].set(src[:, step, 3])
        exists = exists.at[order, src[:, step, 2], src[:, step, 1]].set(src[:, step, 3])

    return src


# -----------------------------------------------------------------------------
# Main
# -----------------------------------------------------------------------------
if __name__ == "__main__":
    key = jax.random.PRNGKey(0)
    key, net_key, run_key = jax.random.split(key, 3)

    cfg, params = init_net(net_key, d=32, n_grows=8, n_frags=4, voc_size=8)
    B = 8                      # >= 8 rows fills the f32 sublane tile
    max_len = cfg['max_len']

    # src columns: [atom_token, curr, prev, bond, frag_id]; frag_id==0 marks
    # positions to be grown by the sampler.
    src = jnp.zeros((B, max_len, 5), dtype=jnp.int32)
    src = src.at[:, 0].set(jnp.array([2, 0, 0, 0, 1], dtype=jnp.int32))   # seed atom
    src = src.at[0, 1].set(jnp.array([3, 1, 0, 1, 1], dtype=jnp.int32))   # given frag atom (ex. 0)

    forward = jax.jit(functools.partial(graph_explorer_forward, cfg))
    out = forward(params, src, run_key)
    out = jax.block_until_ready(out)
    assert out.shape == (B, max_len, 5)
    print("KERNEL_OK")
</pallas_src>

<mosaic_0001>
module attributes {stable_mosaic.version = 11 : i64} {
  func.func @_attn_atom_kernel(%arg0: memref<8x32xf32, #tpu.memory_space<vmem>>, %arg1: memref<8x12x32xf32, #tpu.memory_space<vmem>>, %arg2: memref<8x12xf32, #tpu.memory_space<vmem>>, %arg3: memref<32x32xf32, #tpu.memory_space<vmem>>, %arg4: memref<32x64xf32, #tpu.memory_space<vmem>>, %arg5: memref<32x32xf32, #tpu.memory_space<vmem>>, %arg6: memref<32x128xf32, #tpu.memory_space<vmem>>, %arg7: memref<1x128xf32, #tpu.memory_space<vmem>>, %arg8: memref<8x32xf32, #tpu.memory_space<vmem>>, %arg9: memref<8x128xf32, #tpu.memory_space<vmem>>) attributes {dimension_semantics = [], scalar_prefetch = 0 : i64, scratch_operands = 0 : i64, tpu.core_type = #tpu.core_type<tc>} {
    %c0 = arith.constant 0 : index
    %c0_0 = arith.constant 0 : index
    %0 = vector.load %arg0[%c0, %c0_0] : memref<8x32xf32, #tpu.memory_space<vmem>>, vector<8x32xf32>
    %c0_1 = arith.constant 0 : index
    %c0_2 = arith.constant 0 : index
    %c0_3 = arith.constant 0 : index
    %1 = vector.load %arg1[%c0_1, %c0_2, %c0_3] : memref<8x12x32xf32, #tpu.memory_space<vmem>>, vector<8x12x32xf32>
    %c0_4 = arith.constant 0 : index
    %c0_5 = arith.constant 0 : index
    %2 = vector.load %arg3[%c0_4, %c0_5] : memref<32x32xf32, #tpu.memory_space<vmem>>, vector<32x32xf32>
    %cst = arith.constant dense<0.000000e+00> : vector<8x32xf32>
    %3 = tpu.matmul %0, %2, %cst {dimension_numbers = #tpu.dot_dimension_numbers<[1], [0], [0], [1], [0, 0, 1, 1], [], []>} : vector<8x32xf32>, vector<32x32xf32>, vector<8x32xf32> -> vector<8x32xf32>
    %c0_6 = arith.constant 0 : index
    %c0_7 = arith.constant 0 : index
    %4 = vector.load %arg4[%c0_6, %c0_7] : memref<32x64xf32, #tpu.memory_space<vmem>>, vector<32x64xf32>
    "tpu.trace_start"() <{level = 10 : i32, message = "bld,de->ble"}> : () -> ()
    %cst_8 = arith.constant dense<0.000000e+00> : vector<8x12x64xf32>
    %5 = tpu.matmul %1, %4, %cst_8 {dimension_numbers = #tpu.dot_dimension_numbers<[2], [0], [0, 1], [1], [0, 0, 0, 1, 1, 1], [], []>} : vector<8x12x32xf32>, vector<32x64xf32>, vector<8x12x64xf32> -> vector<8x12x64xf32>
    "tpu.trace_stop"() : () -> ()
    %6 = vector.extract_strided_slice %5 {offsets = [0, 0, 0], sizes = [8, 12, 32], strides = [1, 1, 1]} : vector<8x12x64xf32> to vector<8x12x32xf32>
    %7 = vector.extract_strided_slice %5 {offsets = [0, 0, 32], sizes = [8, 12, 32], strides = [1, 1, 1]} : vector<8x12x64xf32> to vector<8x12x32xf32>
    %8 = vector.shape_cast %3 : vector<8x32xf32> to vector<8x1x32xf32>
    %9 = vector.broadcast %8 : vector<8x1x32xf32> to vector<8x12x32xf32>
    %10 = arith.mulf %9, %6 : vector<8x12x32xf32>
    %cst_9 = arith.constant dense<0.000000e+00> : vector<8x12xf32>
    %11 = vector.multi_reduction <add>, %10, %cst_9 [2] : vector<8x12x32xf32> to vector<8x12xf32>
    %cst_10 = arith.constant 3.200000e+01 : f32
    %12 = math.sqrt %cst_10 : f32
    %cst_11 = arith.constant 1.000000e+00 : f32
    %13 = arith.divf %cst_11, %12 : f32
    %14 = vector.broadcast %13 : f32 to vector<8x12xf32>
    %15 = arith.mulf %11, %14 : vector<8x12xf32>
    %c0_12 = arith.constant 0 : index
    %c0_13 = arith.constant 0 : index
    %16 = vector.load %arg2[%c0_12, %c0_13] : memref<8x12xf32, #tpu.memory_space<vmem>>, vector<8x12xf32>
    %17 = arith.addf %15, %16 : vector<8x12xf32>
    %cst_14 = arith.constant dense<0xFF800000> : vector<8xf32>
    %18 = vector.multi_reduction <maximumf>, %17, %cst_14 [1] : vector<8x12xf32> to vector<8xf32>
    %19 = vector.shape_cast %18 : vector<8xf32> to vector<8x1xf32>
    %20 = vector.broadcast %19 : vector<8x1xf32> to vector<8x12xf32>
    %21 = arith.subf %17, %20 : vector<8x12xf32>
    %22 = math.exp %21 : vector<8x12xf32>
    %cst_15 = arith.constant dense<0.000000e+00> : vector<8xf32>
    %23 = vector.multi_reduction <add>, %22, %cst_15 [1] : vector<8x12xf32> to vector<8xf32>
    %24 = vector.shape_cast %23 : vector<8xf32> to vector<8x1xf32>
    %25 = tpu.reciprocal %24 {approx = true} : vector<8x1xf32> -> vector<8x1xf32>
    %26 = vector.broadcast %25 : vector<8x1xf32> to vector<8x12xf32>
    %27 = arith.mulf %22, %26 : vector<8x12xf32>
    %28 = vector.shape_cast %27 : vector<8x12xf32> to vector<8x12x1xf32>
    %29 = vector.broadcast %28 : vector<8x12x1xf32> to vector<8x12x32xf32>
    %30 = arith.mulf %29, %7 : vector<8x12x32xf32>
    %cst_16 = arith.constant dense<0.000000e+00> : vector<8x32xf32>
    %31 = vector.multi_reduction <add>, %30, %cst_16 [1] : vector<8x12x32xf32> to vector<8x32xf32>
    %c0_17 = arith.constant 0 : index
    %c0_18 = arith.constant 0 : index
    %32 = vector.load %arg5[%c0_17, %c0_18] : memref<32x32xf32, #tpu.memory_space<vmem>>, vector<32x32xf32>
    %cst_19 = arith.constant dense<0.000000e+00> : vector<8x32xf32>
    %33 = tpu.matmul %31, %32, %cst_19 {dimension_numbers = #tpu.dot_dimension_numbers<[1], [0], [0], [1], [0, 0, 1, 1], [], []>} : vector<8x32xf32>, vector<32x32xf32>, vector<8x32xf32> -> vector<8x32xf32>
    %c0_20 = arith.constant 0 : index
    %c0_21 = arith.constant 0 : index
    %34 = vector.load %arg8[%c0_20, %c0_21] : memref<8x32xf32, #tpu.memory_space<vmem>>, vector<8x32xf32>
    tpu.vector_store %arg8[%c0_20, %c0_21], %33 {strides = array<i32>} : memref<8x32xf32, #tpu.memory_space<vmem>>, vector<8x32xf32>,
    %c0_22 = arith.constant 0 : index
    %c0_23 = arith.constant 0 : index
    %35 = vector.load %arg6[%c0_22, %c0_23] : memref<32x128xf32, #tpu.memory_space<vmem>>, vector<32x128xf32>
    %cst_24 = arith.constant dense<0.000000e+00> : vector<8x128xf32>
    %36 = tpu.matmul %33, %35, %cst_24 {dimension_numbers = #tpu.dot_dimension_numbers<[1], [0], [0], [1], [0, 0, 1, 1], [], []>} : vector<8x32xf32>, vector<32x128xf32>, vector<8x128xf32> -> vector<8x128xf32>
    %c0_25 = arith.constant 0 : index
    %c0_26 = arith.constant 0 : index
    %37 = vector.load %arg7[%c0_25, %c0_26] : memref<1x128xf32, #tpu.memory_space<vmem>>, vector<1x128xf32>
    %38 = vector.broadcast %37 : vector<1x128xf32> to vector<8x128xf32>
    %39 = arith.addf %36, %38 : vector<8x128xf32>
    %cst_27 = arith.constant dense<0xFF800000> : vector<8xf32>
    %40 = vector.multi_reduction <maximumf>, %39, %cst_27 [1] : vector<8x128xf32> to vector<8xf32>
    %41 = vector.shape_cast %40 : vector<8xf32> to vector<8x1xf32>
    %42 = vector.broadcast %41 : vector<8x1xf32> to vector<8x128xf32>
    %43 = arith.subf %39, %42 : vector<8x128xf32>
    %44 = math.exp %43 : vector<8x128xf32>
    %cst_28 = arith.constant dense<0.000000e+00> : vector<8xf32>
    %45 = vector.multi_reduction <add>, %44, %cst_28 [1] : vector<8x128xf32> to vector<8xf32>
    %46 = vector.shape_cast %45 : vector<8xf32> to vector<8x1xf32>
    %47 = tpu.reciprocal %46 {approx = true} : vector<8x1xf32> -> vector<8x1xf32>
    %48 = vector.broadcast %47 : vector<8x1xf32> to vector<8x128xf32>
    %49 = arith.mulf %44, %48 : vector<8x128xf32>
    %c0_29 = arith.constant 0 : index
    %c0_30 = arith.constant 0 : index
    %50 = vector.load %arg9[%c0_29, %c0_30] : memref<8x128xf32, #tpu.memory_space<vmem>>, vector<8x128xf32>
    tpu.vector_store %arg9[%c0_29, %c0_30], %49 {strides = array<i32>} : memref<8x128xf32, #tpu.memory_space<vmem>>, vector<8x128xf32>,
    return
  }
}

module attributes {stable_mosaic.version = 11 : i64} {
  func.func @_gru_proj_kernel(%arg0: memref<8x32xf32, #tpu.memory_space<vmem>>, %arg1: memref<8x32xf32, #tpu.memory_space<vmem>>, %arg2: memref<32x96xf32, #tpu.memory_space<vmem>>, %arg3: memref<32x96xf32, #tpu.memory_space<vmem>>, %arg4: memref<1x96xf32, #tpu.memory_space<vmem>>, %arg5: memref<1x96xf32, #tpu.memory_space<vmem>>, %arg6: memref<32x128xf32, #tpu.memory_space<vmem>>, %arg7: memref<1x128xf32, #tpu.memory_space<vmem>>, %arg8: memref<8x32xf32, #tpu.memory_space<vmem>>, %arg9: memref<8x128xf32, #tpu.memory_space<vmem>>) attributes {dimension_semantics = [], scalar_prefetch = 0 : i64, scratch_operands = 0 : i64, tpu.core_type = #tpu.core_type<tc>} {
    %c0 = arith.constant 0 : index
    %c0_0 = arith.constant 0 : index
    %0 = vector.load %arg0[%c0, %c0_0] : memref<8x32xf32, #tpu.memory_space<vmem>>, vector<8x32xf32>
    %c0_1 = arith.constant 0 : index
    %c0_2 = arith.constant 0 : index
    %1 = vector.load %arg1[%c0_1, %c0_2] : memref<8x32xf32, #tpu.memory_space<vmem>>, vector<8x32xf32>
    %c0_3 = arith.constant 0 : index
    %c0_4 = arith.constant 0 : index
    %2 = vector.load %arg2[%c0_3, %c0_4] : memref<32x96xf32, #tpu.memory_space<vmem>>, vector<32x96xf32>
    %cst = arith.constant dense<0.000000e+00> : vector<8x96xf32>
    %3 = tpu.matmul %0, %2, %cst {dimension_numbers = #tpu.dot_dimension_numbers<[1], [0], [0], [1], [0, 0, 1, 1], [], []>} : vector<8x32xf32>, vector<32x96xf32>, vector<8x96xf32> -> vector<8x96xf32>
    %c0_5 = arith.constant 0 : index
    %c0_6 = arith.constant 0 : index
    %4 = vector.load %arg4[%c0_5, %c0_6] : memref<1x96xf32, #tpu.memory_space<vmem>>, vector<1x96xf32>
    %5 = vector.broadcast %4 : vector<1x96xf32> to vector<8x96xf32>
    %6 = arith.addf %3, %5 : vector<8x96xf32>
    %c0_7 = arith.constant 0 : index
    %c0_8 = arith.constant 0 : index
    %7 = vector.load %arg3[%c0_7, %c0_8] : memref<32x96xf32, #tpu.memory_space<vmem>>, vector<32x96xf32>
    %cst_9 = arith.constant dense<0.000000e+00> : vector<8x96xf32>
    %8 = tpu.matmul %1, %7, %cst_9 {dimension_numbers = #tpu.dot_dimension_numbers<[1], [0], [0], [1], [0, 0, 1, 1], [], []>} : vector<8x32xf32>, vector<32x96xf32>, vector<8x96xf32> -> vector<8x96xf32>
    %c0_10 = arith.constant 0 : index
    %c0_11 = arith.constant 0 : index
    %9 = vector.load %arg5[%c0_10, %c0_11] : memref<1x96xf32, #tpu.memory_space<vmem>>, vector<1x96xf32>
    %10 = vector.broadcast %9 : vector<1x96xf32> to vector<8x96xf32>
    %11 = arith.addf %8, %10 : vector<8x96xf32>
    %12 = vector.extract_strided_slice %6 {offsets = [0, 0], sizes = [8, 32], strides = [1, 1]} : vector<8x96xf32> to vector<8x32xf32>
    %13 = vector.extract_strided_slice %11 {offsets = [0, 0], sizes = [8, 32], strides = [1, 1]} : vector<8x96xf32> to vector<8x32xf32>
    %14 = arith.addf %12, %13 : vector<8x32xf32>
    %15 = arith.negf %14 : vector<8x32xf32>
    %16 = math.exp %15 : vector<8x32xf32>
    %cst_12 = arith.constant 1.000000e+00 : f32
    %17 = vector.broadcast %cst_12 : f32 to vector<8x32xf32>
    %18 = arith.addf %17, %16 : vector<8x32xf32>
    %19 = arith.divf %17, %18 : vector<8x32xf32>
    %20 = vector.extract_strided_slice %6 {offsets = [0, 32], sizes = [8, 32], strides = [1, 1]} : vector<8x96xf32> to vector<8x32xf32>
    %21 = vector.extract_strided_slice %11 {offsets = [0, 32], sizes = [8, 32], strides = [1, 1]} : vector<8x96xf32> to vector<8x32xf32>
    %22 = arith.addf %20, %21 : vector<8x32xf32>
    %23 = arith.negf %22 : vector<8x32xf32>
    %24 = math.exp %23 : vector<8x32xf32>
    %cst_13 = arith.constant 1.000000e+00 : f32
    %25 = vector.broadcast %cst_13 : f32 to vector<8x32xf32>
    %26 = arith.addf %25, %24 : vector<8x32xf32>
    %27 = arith.divf %25, %26 : vector<8x32xf32>
    %28 = vector.extract_strided_slice %6 {offsets = [0, 64], sizes = [8, 32], strides = [1, 1]} : vector<8x96xf32> to vector<8x32xf32>
    %29 = vector.extract_strided_slice %11 {offsets = [0, 64], sizes = [8, 32], strides = [1, 1]} : vector<8x96xf32> to vector<8x32xf32>
    %30 = arith.mulf %19, %29 : vector<8x32xf32>
    %31 = arith.addf %28, %30 : vector<8x32xf32>
    %32 = math.tanh %31 : vector<8x32xf32>
    %cst_14 = arith.constant 1.000000e+00 : f32
    %33 = vector.broadcast %cst_14 : f32 to vector<8x32xf32>
    %34 = arith.subf %33, %27 : vector<8x32xf32>
    %35 = arith.mulf %34, %32 : vector<8x32xf32>
    %36 = arith.mulf %27, %1 : vector<8x32xf32>
    %37 = arith.addf %35, %36 : vector<8x32xf32>
    %c0_15 = arith.constant 0 : index
    %c0_16 = arith.constant 0 : index
    %38 = vector.load %arg8[%c0_15, %c0_16] : memref<8x32xf32, #tpu.memory_space<vmem>>, vector<8x32xf32>
    tpu.vector_store %arg8[%c0_15, %c0_16], %37 {strides = array<i32>} : memref<8x32xf32, #tpu.memory_space<vmem>>, vector<8x32xf32>,
    %c0_17 = arith.constant 0 : index
    %c0_18 = arith.constant 0 : index
    %39 = vector.load %arg6[%c0_17, %c0_18] : memref<32x128xf32, #tpu.memory_space<vmem>>, vector<32x128xf32>
    %cst_19 = arith.constant dense<0.000000e+00> : vector<8x128xf32>
    %40 = tpu.matmul %37, %39, %cst_19 {dimension_numbers = #tpu.dot_dimension_numbers<[1], [0], [0], [1], [0, 0, 1, 1], [], []>} : vector<8x32xf32>, vector<32x128xf32>, vector<8x128xf32> -> vector<8x128xf32>
    %c0_20 = arith.constant 0 : index
    %c0_21 = arith.constant 0 : index
    %41 = vector.load %arg7[%c0_20, %c0_21] : memref<1x128xf32, #tpu.memory_space<vmem>>, vector<1x128xf32>
    %42 = vector.broadcast %41 : vector<1x128xf32> to vector<8x128xf32>
    %43 = arith.addf %40, %42 : vector<8x128xf32>
    %cst_22 = arith.constant dense<0xFF800000> : vector<8xf32>
    %44 = vector.multi_reduction <maximumf>, %43, %cst_22 [1] : vector<8x128xf32> to vector<8xf32>
    %45 = vector.shape_cast %44 : vector<8xf32> to vector<8x1xf32>
    %46 = vector.broadcast %45 : vector<8x1xf32> to vector<8x128xf32>
    %47 = arith.subf %43, %46 : vector<8x128xf32>
    %48 = math.exp %47 : vector<8x128xf32>
    %cst_23 = arith.constant dense<0.000000e+00> : vector<8xf32>
    %49 = vector.multi_reduction <add>, %48, %cst_23 [1] : vector<8x128xf32> to vector<8xf32>
    %50 = vector.shape_cast %49 : vector<8xf32> to vector<8x1xf32>
    %51 = tpu.reciprocal %50 {approx = true} : vector<8x1xf32> -> vector<8x1xf32>
    %52 = vector.broadcast %51 : vector<8x1xf32> to vector<8x128xf32>
    %53 = arith.mulf %48, %52 : vector<8x128xf32>
    %c0_24 = arith.constant 0 : index
    %c0_25 = arith.constant 0 : index
    %54 = vector.load %arg9[%c0_24, %c0_25] : memref<8x128xf32, #tpu.memory_space<vmem>>, vector<8x128xf32>
    tpu.vector_store %arg9[%c0_24, %c0_25], %53 {strides = array<i32>} : memref<8x128xf32, #tpu.memory_space<vmem>>, vector<8x128xf32>,
    return
  }
}

module attributes {stable_mosaic.version = 11 : i64} {
  func.func @_gru_proj_kernel(%arg0: memref<8x32xf32, #tpu.memory_space<vmem>>, %arg1: memref<8x32xf32, #tpu.memory_space<vmem>>, %arg2: memref<32x96xf32, #tpu.memory_space<vmem>>, %arg3: memref<32x96xf32, #tpu.memory_space<vmem>>, %arg4: memref<1x96xf32, #tpu.memory_space<vmem>>, %arg5: memref<1x96xf32, #tpu.memory_space<vmem>>, %arg6: memref<32x128xf32, #tpu.memory_space<vmem>>, %arg7: memref<1x128xf32, #tpu.memory_space<vmem>>, %arg8: memref<8x32xf32, #tpu.memory_space<vmem>>, %arg9: memref<8x128xf32, #tpu.memory_space<vmem>>) attributes {dimension_semantics = [], scalar_prefetch = 0 : i64, scratch_operands = 0 : i64, tpu.core_type = #tpu.core_type<tc>} {
    %c0 = arith.constant 0 : index
    %c0_0 = arith.constant 0 : index
    %0 = vector.load %arg0[%c0, %c0_0] : memref<8x32xf32, #tpu.memory_space<vmem>>, vector<8x32xf32>
    %c0_1 = arith.constant 0 : index
    %c0_2 = arith.constant 0 : index
    %1 = vector.load %arg1[%c0_1, %c0_2] : memref<8x32xf32, #tpu.memory_space<vmem>>, vector<8x32xf32>
    %c0_3 = arith.constant 0 : index
    %c0_4 = arith.constant 0 : index
    %2 = vector.load %arg2[%c0_3, %c0_4] : memref<32x96xf32, #tpu.memory_space<vmem>>, vector<32x96xf32>
    %cst = arith.constant dense<0.000000e+00> : vector<8x96xf32>
    %3 = tpu.matmul %0, %2, %cst {dimension_numbers = #tpu.dot_dimension_numbers<[1], [0], [0], [1], [0, 0, 1, 1], [], []>} : vector<8x32xf32>, vector<32x96xf32>, vector<8x96xf32> -> vector<8x96xf32>
    %c0_5 = arith.constant 0 : index
    %c0_6 = arith.constant 0 : index
    %4 = vector.load %arg4[%c0_5, %c0_6] : memref<1x96xf32, #tpu.memory_space<vmem>>, vector<1x96xf32>
    %5 = vector.broadcast %4 : vector<1x96xf32> to vector<8x96xf32>
    %6 = arith.addf %3, %5 : vector<8x96xf32>
    %c0_7 = arith.constant 0 : index
    %c0_8 = arith.constant 0 : index
    %7 = vector.load %arg3[%c0_7, %c0_8] : memref<32x96xf32, #tpu.memory_space<vmem>>, vector<32x96xf32>
    %cst_9 = arith.constant dense<0.000000e+00> : vector<8x96xf32>
    %8 = tpu.matmul %1, %7, %cst_9 {dimension_numbers = #tpu.dot_dimension_numbers<[1], [0], [0], [1], [0, 0, 1, 1], [], []>} : vector<8x32xf32>, vector<32x96xf32>, vector<8x96xf32> -> vector<8x96xf32>
    %c0_10 = arith.constant 0 : index
    %c0_11 = arith.constant 0 : index
    %9 = vector.load %arg5[%c0_10, %c0_11] : memref<1x96xf32, #tpu.memory_space<vmem>>, vector<1x96xf32>
    %10 = vector.broadcast %9 : vector<1x96xf32> to vector<8x96xf32>
    %11 = arith.addf %8, %10 : vector<8x96xf32>
    %12 = vector.extract_strided_slice %6 {offsets = [0, 0], sizes = [8, 32], strides = [1, 1]} : vector<8x96xf32> to vector<8x32xf32>
    %13 = vector.extract_strided_slice %11 {offsets = [0, 0], sizes = [8, 32], strides = [1, 1]} : vector<8x96xf32> to vector<8x32xf32>
    %14 = arith.addf %12, %13 : vector<8x32xf32>
    %15 = arith.negf %14 : vector<8x32xf32>
    %16 = math.exp %15 : vector<8x32xf32>
    %cst_12 = arith.constant 1.000000e+00 : f32
    %17 = vector.broadcast %cst_12 : f32 to vector<8x32xf32>
    %18 = arith.addf %17, %16 : vector<8x32xf32>
    %19 = arith.divf %17, %18 : vector<8x32xf32>
    %20 = vector.extract_strided_slice %6 {offsets = [0, 32], sizes = [8, 32], strides = [1, 1]} : vector<8x96xf32> to vector<8x32xf32>
    %21 = vector.extract_strided_slice %11 {offsets = [0, 32], sizes = [8, 32], strides = [1, 1]} : vector<8x96xf32> to vector<8x32xf32>
    %22 = arith.addf %20, %21 : vector<8x32xf32>
    %23 = arith.negf %22 : vector<8x32xf32>
    %24 = math.exp %23 : vector<8x32xf32>
    %cst_13 = arith.constant 1.000000e+00 : f32
    %25 = vector.broadcast %cst_13 : f32 to vector<8x32xf32>
    %26 = arith.addf %25, %24 : vector<8x32xf32>
    %27 = arith.divf %25, %26 : vector<8x32xf32>
    %28 = vector.extract_strided_slice %6 {offsets = [0, 64], sizes = [8, 32], strides = [1, 1]} : vector<8x96xf32> to vector<8x32xf32>
    %29 = vector.extract_strided_slice %11 {offsets = [0, 64], sizes = [8, 32], strides = [1, 1]} : vector<8x96xf32> to vector<8x32xf32>
    %30 = arith.mulf %19, %29 : vector<8x32xf32>
    %31 = arith.addf %28, %30 : vector<8x32xf32>
    %32 = math.tanh %31 : vector<8x32xf32>
    %cst_14 = arith.constant 1.000000e+00 : f32
    %33 = vector.broadcast %cst_14 : f32 to vector<8x32xf32>
    %34 = arith.subf %33, %27 : vector<8x32xf32>
    %35 = arith.mulf %34, %32 : vector<8x32xf32>
    %36 = arith.mulf %27, %1 : vector<8x32xf32>
    %37 = arith.addf %35, %36 : vector<8x32xf32>
    %c0_15 = arith.constant 0 : index
    %c0_16 = arith.constant 0 : index
    %38 = vector.load %arg8[%c0_15, %c0_16] : memref<8x32xf32, #tpu.memory_space<vmem>>, vector<8x32xf32>
    tpu.vector_store %arg8[%c0_15, %c0_16], %37 {strides = array<i32>} : memref<8x32xf32, #tpu.memory_space<vmem>>, vector<8x32xf32>,
    %c0_17 = arith.constant 0 : index
    %c0_18 = arith.constant 0 : index
    %39 = vector.load %arg6[%c0_17, %c0_18] : memref<32x128xf32, #tpu.memory_space<vmem>>, vector<32x128xf32>
    %cst_19 = arith.constant dense<0.000000e+00> : vector<8x128xf32>
    %40 = tpu.matmul %37, %39, %cst_19 {dimension_numbers = #tpu.dot_dimension_numbers<[1], [0], [0], [1], [0, 0, 1, 1], [], []>} : vector<8x32xf32>, vector<32x128xf32>, vector<8x128xf32> -> vector<8x128xf32>
    %c0_20 = arith.constant 0 : index
    %c0_21 = arith.constant 0 : index
    %41 = vector.load %arg7[%c0_20, %c0_21] : memref<1x128xf32, #tpu.memory_space<vmem>>, vector<1x128xf32>
    %42 = vector.broadcast %41 : vector<1x128xf32> to vector<8x128xf32>
    %43 = arith.addf %40, %42 : vector<8x128xf32>
    %cst_22 = arith.constant dense<0xFF800000> : vector<8xf32>
    %44 = vector.multi_reduction <maximumf>, %43, %cst_22 [1] : vector<8x128xf32> to vector<8xf32>
    %45 = vector.shape_cast %44 : vector<8xf32> to vector<8x1xf32>
    %46 = vector.broadcast %45 : vector<8x1xf32> to vector<8x128xf32>
    %47 = arith.subf %43, %46 : vector<8x128xf32>
    %48 = math.exp %47 : vector<8x128xf32>
    %cst_23 = arith.constant dense<0.000000e+00> : vector<8xf32>
    %49 = vector.multi_reduction <add>, %48, %cst_23 [1] : vector<8x128xf32> to vector<8xf32>
    %50 = vector.shape_cast %49 : vector<8xf32> to vector<8x1xf32>
    %51 = tpu.reciprocal %50 {approx = true} : vector<8x1xf32> -> vector<8x1xf32>
    %52 = vector.broadcast %51 : vector<8x1xf32> to vector<8x128xf32>
    %53 = arith.mulf %48, %52 : vector<8x128xf32>
    %c0_24 = arith.constant 0 : index
    %c0_25 = arith.constant 0 : index
    %54 = vector.load %arg9[%c0_24, %c0_25] : memref<8x128xf32, #tpu.memory_space<vmem>>, vector<8x128xf32>
    tpu.vector_store %arg9[%c0_24, %c0_25], %53 {strides = array<i32>} : memref<8x128xf32, #tpu.memory_space<vmem>>, vector<8x128xf32>,
    return
  }
}

module attributes {stable_mosaic.version = 11 : i64} {
  func.func @_attn_atom_kernel(%arg0: memref<8x32xf32, #tpu.memory_space<vmem>>, %arg1: memref<8x12x32xf32, #tpu.memory_space<vmem>>, %arg2: memref<8x12xf32, #tpu.memory_space<vmem>>, %arg3: memref<32x32xf32, #tpu.memory_space<vmem>>, %arg4: memref<32x64xf32, #tpu.memory_space<vmem>>, %arg5: memref<32x32xf32, #tpu.memory_space<vmem>>, %arg6: memref<32x128xf32, #tpu.memory_space<vmem>>, %arg7: memref<1x128xf32, #tpu.memory_space<vmem>>, %arg8: memref<8x32xf32, #tpu.memory_space<vmem>>, %arg9: memref<8x128xf32, #tpu.memory_space<vmem>>) attributes {dimension_semantics = [], scalar_prefetch = 0 : i64, scratch_operands = 0 : i64, tpu.core_type = #tpu.core_type<tc>} {
    %c0 = arith.constant 0 : index
    %c0_0 = arith.constant 0 : index
    %0 = vector.load %arg0[%c0, %c0_0] : memref<8x32xf32, #tpu.memory_space<vmem>>, vector<8x32xf32>
    %c0_1 = arith.constant 0 : index
    %c0_2 = arith.constant 0 : index
    %c0_3 = arith.constant 0 : index
    %1 = vector.load %arg1[%c0_1, %c0_2, %c0_3] : memref<8x12x32xf32, #tpu.memory_space<vmem>>, vector<8x12x32xf32>
    %c0_4 = arith.constant 0 : index
    %c0_5 = arith.constant 0 : index
    %2 = vector.load %arg3[%c0_4, %c0_5] : memref<32x32xf32, #tpu.memory_space<vmem>>, vector<32x32xf32>
    %cst = arith.constant dense<0.000000e+00> : vector<8x32xf32>
    %3 = tpu.matmul %0, %2, %cst {dimension_numbers = #tpu.dot_dimension_numbers<[1], [0], [0], [1], [0, 0, 1, 1], [], []>} : vector<8x32xf32>, vector<32x32xf32>, vector<8x32xf32> -> vector<8x32xf32>
    %c0_6 = arith.constant 0 : index
    %c0_7 = arith.constant 0 : index
    %4 = vector.load %arg4[%c0_6, %c0_7] : memref<32x64xf32, #tpu.memory_space<vmem>>, vector<32x64xf32>
    "tpu.trace_start"() <{level = 10 : i32, message = "bld,de->ble"}> : () -> ()
    %cst_8 = arith.constant dense<0.000000e+00> : vector<8x12x64xf32>
    %5 = tpu.matmul %1, %4, %cst_8 {dimension_numbers = #tpu.dot_dimension_numbers<[2], [0], [0, 1], [1], [0, 0, 0, 1, 1, 1], [], []>} : vector<8x12x32xf32>, vector<32x64xf32>, vector<8x12x64xf32> -> vector<8x12x64xf32>
    "tpu.trace_stop"() : () -> ()
    %6 = vector.extract_strided_slice %5 {offsets = [0, 0, 0], sizes = [8, 12, 32], strides = [1, 1, 1]} : vector<8x12x64xf32> to vector<8x12x32xf32>
    %7 = vector.extract_strided_slice %5 {offsets = [0, 0, 32], sizes = [8, 12, 32], strides = [1, 1, 1]} : vector<8x12x64xf32> to vector<8x12x32xf32>
    %8 = vector.shape_cast %3 : vector<8x32xf32> to vector<8x1x32xf32>
    %9 = vector.broadcast %8 : vector<8x1x32xf32> to vector<8x12x32xf32>
    %10 = arith.mulf %9, %6 : vector<8x12x32xf32>
    %cst_9 = arith.constant dense<0.000000e+00> : vector<8x12xf32>
    %11 = vector.multi_reduction <add>, %10, %cst_9 [2] : vector<8x12x32xf32> to vector<8x12xf32>
    %cst_10 = arith.constant 3.200000e+01 : f32
    %12 = math.sqrt %cst_10 : f32
    %cst_11 = arith.constant 1.000000e+00 : f32
    %13 = arith.divf %cst_11, %12 : f32
    %14 = vector.broadcast %13 : f32 to vector<8x12xf32>
    %15 = arith.mulf %11, %14 : vector<8x12xf32>
    %c0_12 = arith.constant 0 : index
    %c0_13 = arith.constant 0 : index
    %16 = vector.load %arg2[%c0_12, %c0_13] : memref<8x12xf32, #tpu.memory_space<vmem>>, vector<8x12xf32>
    %17 = arith.addf %15, %16 : vector<8x12xf32>
    %cst_14 = arith.constant dense<0xFF800000> : vector<8xf32>
    %18 = vector.multi_reduction <maximumf>, %17, %cst_14 [1] : vector<8x12xf32> to vector<8xf32>
    %19 = vector.shape_cast %18 : vector<8xf32> to vector<8x1xf32>
    %20 = vector.broadcast %19 : vector<8x1xf32> to vector<8x12xf32>
    %21 = arith.subf %17, %20 : vector<8x12xf32>
    %22 = math.exp %21 : vector<8x12xf32>
    %cst_15 = arith.constant dense<0.000000e+00> : vector<8xf32>
    %23 = vector.multi_reduction <add>, %22, %cst_15 [1] : vector<8x12xf32> to vector<8xf32>
    %24 = vector.shape_cast %23 : vector<8xf32> to vector<8x1xf32>
    %25 = tpu.reciprocal %24 {approx = true} : vector<8x1xf32> -> vector<8x1xf32>
    %26 = vector.broadcast %25 : vector<8x1xf32> to vector<8x12xf32>
    %27 = arith.mulf %22, %26 : vector<8x12xf32>
    %28 = vector.shape_cast %27 : vector<8x12xf32> to vector<8x12x1xf32>
    %29 = vector.broadcast %28 : vector<8x12x1xf32> to vector<8x12x32xf32>
    %30 = arith.mulf %29, %7 : vector<8x12x32xf32>
    %cst_16 = arith.constant dense<0.000000e+00> : vector<8x32xf32>
    %31 = vector.multi_reduction <add>, %30, %cst_16 [1] : vector<8x12x32xf32> to vector<8x32xf32>
    %c0_17 = arith.constant 0 : index
    %c0_18 = arith.constant 0 : index
    %32 = vector.load %arg5[%c0_17, %c0_18] : memref<32x32xf32, #tpu.memory_space<vmem>>, vector<32x32xf32>
    %cst_19 = arith.constant dense<0.000000e+00> : vector<8x32xf32>
    %33 = tpu.matmul %31, %32, %cst_19 {dimension_numbers = #tpu.dot_dimension_numbers<[1], [0], [0], [1], [0, 0, 1, 1], [], []>} : vector<8x32xf32>, vector<32x32xf32>, vector<8x32xf32> -> vector<8x32xf32>
    %c0_20 = arith.constant 0 : index
    %c0_21 = arith.constant 0 : index
    %34 = vector.load %arg8[%c0_20, %c0_21] : memref<8x32xf32, #tpu.memory_space<vmem>>, vector<8x32xf32>
    tpu.vector_store %arg8[%c0_20, %c0_21], %33 {strides = array<i32>} : memref<8x32xf32, #tpu.memory_space<vmem>>, vector<8x32xf32>,
    %c0_22 = arith.constant 0 : index
    %c0_23 = arith.constant 0 : index
    %35 = vector.load %arg6[%c0_22, %c0_23] : memref<32x128xf32, #tpu.memory_space<vmem>>, vector<32x128xf32>
    %cst_24 = arith.constant dense<0.000000e+00> : vector<8x128xf32>
    %36 = tpu.matmul %33, %35, %cst_24 {dimension_numbers = #tpu.dot_dimension_numbers<[1], [0], [0], [1], [0, 0, 1, 1], [], []>} : vector<8x32xf32>, vector<32x128xf32>, vector<8x128xf32> -> vector<8x128xf32>
    %c0_25 = arith.constant 0 : index
    %c0_26 = arith.constant 0 : index
    %37 = vector.load %arg7[%c0_25, %c0_26] : memref<1x128xf32, #tpu.memory_space<vmem>>, vector<1x128xf32>
    %38 = vector.broadcast %37 : vector<1x128xf32> to vector<8x128xf32>
    %39 = arith.addf %36, %38 : vector<8x128xf32>
    %cst_27 = arith.constant dense<0xFF800000> : vector<8xf32>
    %40 = vector.multi_reduction <maximumf>, %39, %cst_27 [1] : vector<8x128xf32> to vector<8xf32>
    %41 = vector.shape_cast %40 : vector<8xf32> to vector<8x1xf32>
    %42 = vector.broadcast %41 : vector<8x1xf32> to vector<8x128xf32>
    %43 = arith.subf %39, %42 : vector<8x128xf32>
    %44 = math.exp %43 : vector<8x128xf32>
    %cst_28 = arith.constant dense<0.000000e+00> : vector<8xf32>
    %45 = vector.multi_reduction <add>, %44, %cst_28 [1] : vector<8x128xf32> to vector<8xf32>
    %46 = vector.shape_cast %45 : vector<8xf32> to vector<8x1xf32>
    %47 = tpu.reciprocal %46 {approx = true} : vector<8x1xf32> -> vector<8x1xf32>
    %48 = vector.broadcast %47 : vector<8x1xf32> to vector<8x128xf32>
    %49 = arith.mulf %44, %48 : vector<8x128xf32>
    %c0_29 = arith.constant 0 : index
    %c0_30 = arith.constant 0 : index
    %50 = vector.load %arg9[%c0_29, %c0_30] : memref<8x128xf32, #tpu.memory_space<vmem>>, vector<8x128xf32>
    tpu.vector_store %arg9[%c0_29, %c0_30], %49 {strides = array<i32>} : memref<8x128xf32, #tpu.memory_space<vmem>>, vector<8x128xf32>,
    return
  }
}

</mosaic_0001>

<llo_original>
// kernel: graph_explorer_forward.32
$region0: #{graph_explorer_forward.32}
  #allocation0 [shape = 'u32[]', space=smem, size = 0x4, offset = 0x4, fixed_abs, tag = 'smem constant byte address 0x4 - core index']
  #allocation1 [shape = 'u32[144,128]{1,0:T(1,128)}', space=vmem, size = 0x12000, scoped, tag = 'internal scratch']
  %s0 = inlined_call_operand.vmem [shape: f32[8,32], index: 0, kind: input, shape index: {}]
  %s1 = inlined_call_operand.vmem [shape: f32[8,12,32], index: 1, kind: input, shape index: {}]
  %s2 = inlined_call_operand.vmem [shape: f32[8,12], index: 2, kind: input, shape index: {}]
  %s3 = inlined_call_operand.vmem [shape: f32[32,32], index: 3, kind: input, shape index: {}]
  %s4 = inlined_call_operand.vmem [shape: f32[32,64], index: 4, kind: input, shape index: {}]
  %s5 = inlined_call_operand.vmem [shape: f32[32,32], index: 5, kind: input, shape index: {}]
  %s6 = inlined_call_operand.vmem [shape: f32[32,128], index: 6, kind: input, shape index: {}]
  %s7 = inlined_call_operand.vmem [shape: f32[1,128], index: 7, kind: input, shape index: {}]
  %s8 = inlined_call_operand.vmem [shape: f32[8,32], index: 8, kind: output, shape index: {0}]
  %s9 = inlined_call_operand.vmem [shape: f32[8,128], index: 9, kind: output, shape index: {1}]
  %10 = xla_tuple %s8, %s9
  %s11 = sld [smem:[#allocation0]]
  $region50: #{graph_explorer_forward.32} parent=0
    _
  %s13 = ssub.s32 1, %s11
  %s14 = scalar_select 0, %s13, %s11
  // Predicated region
  $region2: #{graph_explorer_forward.32} parent=0 // pred_check
    _
  $region3: #{graph_explorer_forward.32} parent=0 // pred_check_branch
    %16 = sbr.rel (0) target = $region5
  $region4: #{graph_explorer_forward.32} parent=0 // pred_region
    _
  $region5: #{graph_explorer_forward.32} parent=0 // pred_fallthru
    _
  // Predicated region
  $region6: #{graph_explorer_forward.32} parent=0 // pred_check
    _
  $region7: #{graph_explorer_forward.32} parent=0 // pred_check_branch
    %18 = sbr.rel (0) target = $region9
  $region8: #{graph_explorer_forward.32} parent=0 // pred_region
    _
  $region9: #{graph_explorer_forward.32} parent=0 // pred_fallthru
    _
  // Predicated region
  $region10: #{graph_explorer_forward.32} parent=0 // pred_check
    _
  $region11: #{graph_explorer_forward.32} parent=0 // pred_check_branch
    %20 = sbr.rel (0) target = $region13
  $region12: #{graph_explorer_forward.32} parent=0 // pred_region
    _
  $region13: #{graph_explorer_forward.32} parent=0 // pred_fallthru
    _
  // Predicated region
  $region14: #{graph_explorer_forward.32} parent=0 // pred_check
    _
  $region15: #{graph_explorer_forward.32} parent=0 // pred_check_branch
    %22 = sbr.rel (0) target = $region17
  $region16: #{graph_explorer_forward.32} parent=0 // pred_region
    _
  $region17: #{graph_explorer_forward.32} parent=0 // pred_fallthru
    _
  // Predicated region
  $region18: #{graph_explorer_forward.32} parent=0 // pred_check
    _
  $region19: #{graph_explorer_forward.32} parent=0 // pred_check_branch
    %24 = sbr.rel (0) target = $region21
  $region20: #{graph_explorer_forward.32} parent=0 // pred_region
    _
  $region21: #{graph_explorer_forward.32} parent=0 // pred_fallthru
    _
  // Predicated region
  $region22: #{graph_explorer_forward.32} parent=0 // pred_check
    _
  $region23: #{graph_explorer_forward.32} parent=0 // pred_check_branch
    %26 = sbr.rel (0) target = $region25
  $region24: #{graph_explorer_forward.32} parent=0 // pred_region
    _
  $region25: #{graph_explorer_forward.32} parent=0 // pred_fallthru
    _
  // Predicated region
  $region26: #{graph_explorer_forward.32} parent=0 // pred_check
    _
  $region27: #{graph_explorer_forward.32} parent=0 // pred_check_branch
    %28 = sbr.rel (0) target = $region29
  $region28: #{graph_explorer_forward.32} parent=0 // pred_region
    _
  $region29: #{graph_explorer_forward.32} parent=0 // pred_fallthru
    _
  // Predicated region
  $region30: #{graph_explorer_forward.32} parent=0 // pred_check
    _
  $region31: #{graph_explorer_forward.32} parent=0 // pred_check_branch
    %30 = sbr.rel (0) target = $region33
  $region32: #{graph_explorer_forward.32} parent=0 // pred_region
    _
  $region33: #{graph_explorer_forward.32} parent=0 // pred_fallthru
    _
  %v31 = vld [vmem:[%s0] sm:$0xff]
  %v32 = vld [vmem:[%s1] sm:$0xff]
  %v33 = vld [vmem:[%s1 + $0x8] sm:$0xf]
  %v34 = vld [vmem:[%s1 + $0x10] sm:$0xff]
  %v35 = vld [vmem:[%s1 + $0x18] sm:$0xf]
  %v36 = vld [vmem:[%s1 + $0x20] sm:$0xff]
  %v37 = vld [vmem:[%s1 + $0x28] sm:$0xf]
  %v38 = vld [vmem:[%s1 + $0x30] sm:$0xff]
  %v39 = vld [vmem:[%s1 + $0x38] sm:$0xf]
  %v40 = vld [vmem:[%s1 + $0x40] sm:$0xff]
  %v41 = vld [vmem:[%s1 + $0x48] sm:$0xf]
  %v42 = vld [vmem:[%s1 + $0x50] sm:$0xff]
  %v43 = vld [vmem:[%s1 + $0x58] sm:$0xf]
  %v44 = vld [vmem:[%s1 + $0x60] sm:$0xff]
  %v45 = vld [vmem:[%s1 + $0x68] sm:$0xf]
  %v46 = vld [vmem:[%s1 + $0x70] sm:$0xff]
  %v47 = vld [vmem:[%s1 + $0x78] sm:$0xf]
  %v48 = vld [vmem:[%s3] sm:$0xff]
  %v49 = vld [vmem:[%s3 + $0x8] sm:$0xff]
  %v50 = vld [vmem:[%s3 + $0x10] sm:$0xff]
  %v51 = vld [vmem:[%s3 + $0x18] sm:$0xff]
  %vm52 = vcmask 261120
  %v54 = vsel %vm52, %v31, 0
  %56 = vmatprep.subr.mxu0 0.0
  %57 = vmatpush1.msra.mxu0 0.0
  %58 = vmatprep.subr.mxu0 0.0
  %59 = vmatpush1.msra.mxu0 0.0
  %60 = vmatprep.subr.mxu0 0.0
  %61 = vmatpush1.msra.mxu0 0.0
  %62 = vmatprep.subr.mxu0 0.0
  %63 = vmatpush1.msra.mxu0 0.0
  %64 = vmatprep.subr.mxu0 0.0
  %65 = vmatpush1.msra.mxu0 0.0
  %66 = vmatprep.subr.mxu0 0.0
  %67 = vmatpush1.msra.mxu0 0.0
  %68 = vmatprep.subr.mxu0 0.0
  %69 = vmatpush1.msra.mxu0 0.0
  %70 = vmatprep.subr.mxu0 0.0
  %71 = vmatpush1.msra.mxu0 0.0
  %72 = vmatprep.subr.mxu0 0.0
  %73 = vmatpush1.msra.mxu0 0.0
  %74 = vmatprep.subr.mxu0 0.0
  %75 = vmatpush1.msra.mxu0 0.0
  %76 = vmatprep.subr.mxu0 0.0
  %77 = vmatpush1.msra.mxu0 0.0
  %78 = vmatprep.subr.mxu0 0.0
  %79 = vmatpush1.msra.mxu0 0.0
  %80 = vmatprep.subr.mxu0 0.0
  %81 = vmatpush1.msra.mxu0 %v51
  %82 = vmatprep.subr.mxu0 0.0
  %83 = vmatpush1.msra.mxu0 %v50
  %84 = vmatprep.subr.mxu0 0.0
  %85 = vmatpush1.msra.mxu0 %v49
  %86 = vmatprep.subr.mxu0 0.0
  %87 = vmatpush1.msra.mxu0 %v48
  %88 = vmatprep.subr.mxu0 0.0
  %89 = vmatpush2.msra.mxu0 0.0
  %90 = vmatprep.subr.mxu0 0.0
  %91 = vmatpush2.msra.mxu0 0.0
  %92 = vmatprep.subr.mxu0 0.0
  %93 = vmatpush2.msra.mxu0 0.0
  %94 = vmatprep.subr.mxu0 0.0
  %95 = vmatpush2.msra.mxu0 0.0
  %96 = vmatprep.subr.mxu0 0.0
  %97 = vmatpush2.msra.mxu0 0.0
  %98 = vmatprep.subr.mxu0 0.0
  %99 = vmatpush2.msra.mxu0 0.0
  %100 = vmatprep.subr.mxu0 0.0
  %101 = vmatpush2.msra.mxu0 0.0
  %102 = vmatprep.subr.mxu0 0.0
  %103 = vmatpush2.msra.mxu0 0.0
  %104 = vmatprep.subr.mxu0 0.0
  %105 = vmatpush2.msra.mxu0 0.0
  %106 = vmatprep.subr.mxu0 0.0
  %107 = vmatpush2.msra.mxu0 0.0
  %108 = vmatprep.subr.mxu0 0.0
  %109 = vmatpush2.msra.mxu0 0.0
  %110 = vmatprep.subr.mxu0 0.0
  %111 = vmatpush2.msra.mxu0 0.0
  %112 = vmatprep.subr.mxu0 0.0
  %113 = vmatpush2.msra.mxu0 0.0
  %114 = vmatprep.subr.mxu0 0.0
  %115 = vmatpush2.msra.mxu0 0.0
  %116 = vmatprep.subr.mxu0 0.0
  %117 = vmatpush2.msra.mxu0 0.0
  %118 = vmatprep.subr.mxu0 0.0
  %119 = vmatpush2.msra.mxu0 0.0
  %120 = vmatprep.mubr.f32.mxu0 0.0
  %121 = vmatmul.mubr.f32.gmra.mxu0 %v54
  %v122 = vpop.f32.mrf.mxu0
  %v123 = vadd.f32 0.0, %v122
  %v124 = vpop.f32.mrf.mxu0
  %125 = vdwg.mxu0
  %v126 = vld [vmem:[%s4] sm:$0xff]
  %v127 = vld [vmem:[%s4 + $0x8] sm:$0xff]
  %v128 = vld [vmem:[%s4 + $0x10] sm:$0xff]
  %v129 = vld [vmem:[%s4 + $0x18] sm:$0xff]
  %v146 = vcombine.high %v32, %v32
  %v147 = vcombine.high %v34, %v34
  %v148 = vcombine.high %v36, %v36
  %v149 = vcombine.high %v38, %v38
  %v150 = vcombine.high %v40, %v40
  %v151 = vcombine.high %v42, %v42
  %v152 = vcombine.high %v44, %v44
  %v153 = vcombine.high %v46, %v46
  %v154 = vcombine.low %v32, %v146
  %v155 = vcombine.low %v33, %v34
  %v156 = vcombine.low %v147, %v35
  %v157 = vcombine.low %v36, %v148
  %v158 = vcombine.low %v37, %v38
  %v159 = vcombine.low %v149, %v39
  %v160 = vcombine.low %v40, %v150
  %v161 = vcombine.low %v41, %v42
  %v162 = vcombine.low %v151, %v43
  %v163 = vcombine.low %v44, %v152
  %v164 = vcombine.low %v45, %v46
  %v165 = vcombine.low %v153, %v47
  %v166 = vsel %vm52, %v154, 0
  %v168 = vsel %vm52, %v155, 0
  %v170 = vsel %vm52, %v156, 0
  %v172 = vsel %vm52, %v157, 0
  %v174 = vsel %vm52, %v158, 0
  %v176 = vsel %vm52, %v159, 0
  %v178 = vsel %vm52, %v160, 0
  %v180 = vsel %vm52, %v161, 0
  %v182 = vsel %vm52, %v162, 0
  %v184 = vsel %vm52, %v163, 0
  %v186 = vsel %vm52, %v164, 0
  %v188 = vsel %vm52, %v165, 0
  %190 = vmatprep.subr.mxu0 0.0
  %191 = vmatpush1.msra.mxu0 0.0
  %192 = vmatprep.subr.mxu0 0.0
  %193 = vmatpush1.msra.mxu0 0.0
  %194 = vmatprep.subr.mxu0 0.0
  %195 = vmatpush1.msra.mxu0 0.0
  %196 = vmatprep.subr.mxu0 0.0
  %197 = vmatpush1.msra.mxu0 0.0
  %198 = vmatprep.subr.mxu0 0.0
  %199 = vmatpush1.msra.mxu0 0.0
  %200 = vmatprep.subr.mxu0 0.0
  %201 = vmatpush1.msra.mxu0 0.0
  %202 = vmatprep.subr.mxu0 0.0
  %203 = vmatpush1.msra.mxu0 0.0
  %204 = vmatprep.subr.mxu0 0.0
  %205 = vmatpush1.msra.mxu0 0.0
  %206 = vmatprep.subr.mxu0 0.0
  %207 = vmatpush1.msra.mxu0 0.0
  %208 = vmatprep.subr.mxu0 0.0
  %209 = vmatpush1.msra.mxu0 0.0
  %210 = vmatprep.subr.mxu0 0.0
  %211 = vmatpush1.msra.mxu0 0.0
  %212 = vmatprep.subr.mxu0 0.0
  %213 = vmatpush1.msra.mxu0 0.0
  %214 = vmatprep.subr.mxu0 0.0
  %215 = vmatpush1.msra.mxu0 %v129
  %216 = vmatprep.subr.mxu0 0.0
  %217 = vmatpush1.msra.mxu0 %v128
  %218 = vmatprep.subr.mxu0 0.0
  %219 = vmatpush1.msra.mxu0 %v127
  %220 = vmatprep.subr.mxu0 0.0
  %221 = vmatpush1.msra.mxu0 %v126
  %222 = vmatprep.subr.mxu0 0.0
  %223 = vmatpush2.msra.mxu0 0.0
  %224 = vmatprep.subr.mxu0 0.0
  %225 = vmatpush2.msra.mxu0 0.0
  %226 = vmatprep.subr.mxu0 0.0
  %227 = vmatpush2.msra.mxu0 0.0
  %228 = vmatprep.subr.mxu0 0.0
  %229 = vmatpush2.msra.mxu0 0.0
  %230 = vmatprep.subr.mxu0 0.0
  %231 = vmatpush2.msra.mxu0 0.0
  %232 = vmatprep.subr.mxu0 0.0
  %233 = vmatpush2.msra.mxu0 0.0
  %234 = vmatprep.subr.mxu0 0.0
  %235 = vmatpush2.msra.mxu0 0.0
  %236 = vmatprep.subr.mxu0 0.0
  %237 = vmatpush2.msra.mxu0 0.0
  %238 = vmatprep.subr.mxu0 0.0
  %239 = vmatpush2.msra.mxu0 0.0
  %240 = vmatprep.subr.mxu0 0.0
  %241 = vmatpush2.msra.mxu0 0.0
  %242 = vmatprep.subr.mxu0 0.0
  %243 = vmatpush2.msra.mxu0 0.0
  %244 = vmatprep.subr.mxu0 0.0
  %245 = vmatpush2.msra.mxu0 0.0
  %246 = vmatprep.subr.mxu0 0.0
  %247 = vmatpush2.msra.mxu0 0.0
  %248 = vmatprep.subr.mxu0 0.0
  %249 = vmatpush2.msra.mxu0 0.0
  %250 = vmatprep.subr.mxu0 0.0
  %251 = vmatpush2.msra.mxu0 0.0
  %252 = vmatprep.subr.mxu0 0.0
  %253 = vmatpush2.msra.mxu0 0.0
  %254 = vmatprep.mubr.f32.mxu0 0.0
  %255 = vmatmul.mubr.f32.gmra.mxu0 %v166
  %v256 = vpop.f32.mrf.mxu0
  %v257 = vadd.f32 0.0, %v256
  %v258 = vpop.f32.mrf.mxu0
  %259 = vmatprep.mubr.f32.mxu0 0.0
  %260 = vmatmul.mubr.f32.gmra.mxu0 %v168
  %v261 = vpop.f32.mrf.mxu0
  %v262 = vadd.f32 0.0, %v261
  %v263 = vpop.f32.mrf.mxu0
  %264 = vmatprep.mubr.f32.mxu0 0.0
  %265 = vmatmul.mubr.f32.gmra.mxu0 %v170
  %v266 = vpop.f32.mrf.mxu0
  %v267 = vadd.f32 0.0, %v266
  %v268 = vpop.f32.mrf.mxu0
  %269 = vmatprep.mubr.f32.mxu0 0.0
  %270 = vmatmul.mubr.f32.gmra.mxu0 %v172
  %v271 = vpop.f32.mrf.mxu0
  %v272 = vadd.f32 0.0, %v271
  %v273 = vpop.f32.mrf.mxu0
  %274 = vmatprep.mubr.f32.mxu0 0.0
  %275 = vmatmul.mubr.f32.gmra.mxu0 %v174
  %v276 = vpop.f32.mrf.mxu0
  %v277 = vadd.f32 0.0, %v276
  %v278 = vpop.f32.mrf.mxu0
  %279 = vmatprep.mubr.f32.mxu0 0.0
  %280 = vmatmul.mubr.f32.gmra.mxu0 %v176
  %v281 = vpop.f32.mrf.mxu0
  %v282 = vadd.f32 0.0, %v281
  %v283 = vpop.f32.mrf.mxu0
  %284 = vmatprep.mubr.f32.mxu0 0.0
  %285 = vmatmul.mubr.f32.gmra.mxu0 %v178
  %v286 = vpop.f32.mrf.mxu0
  %v287 = vadd.f32 0.0, %v286
  %v288 = vpop.f32.mrf.mxu0
  %289 = vmatprep.mubr.f32.mxu0 0.0
  %290 = vmatmul.mubr.f32.gmra.mxu0 %v180
  %v291 = vpop.f32.mrf.mxu0
  %v292 = vadd.f32 0.0, %v291
  %v293 = vpop.f32.mrf.mxu0
  %294 = vmatprep.mubr.f32.mxu0 0.0
  %295 = vmatmul.mubr.f32.gmra.mxu0 %v182
  %v296 = vpop.f32.mrf.mxu0
  %v297 = vadd.f32 0.0, %v296
  %v298 = vpop.f32.mrf.mxu0
  %299 = vmatprep.mubr.f32.mxu0 0.0
  %300 = vmatmul.mubr.f32.gmra.mxu0 %v184
  %v301 = vpop.f32.mrf.mxu0
  %v302 = vadd.f32 0.0, %v301
  %v303 = vpop.f32.mrf.mxu0
  %304 = vmatprep.mubr.f32.mxu0 0.0
  %305 = vmatmul.mubr.f32.gmra.mxu0 %v186
  %v306 = vpop.f32.mrf.mxu0
  %v307 = vadd.f32 0.0, %v306
  %v308 = vpop.f32.mrf.mxu0
  %309 = vmatprep.mubr.f32.mxu0 0.0
  %310 = vmatmul.mubr.f32.gmra.mxu0 %v188
  %v311 = vpop.f32.mrf.mxu0
  %v312 = vadd.f32 0.0, %v311
  %v313 = vpop.f32.mrf.mxu0
  %314 = vdwg.mxu0
  %v327 = vcombine.high %v257, %v257
  %v328 = vcombine.high %v262, %v262
  %v329 = vcombine.high %v267, %v267
  %v330 = vcombine.high %v272, %v272
  %v331 = vcombine.high %v277, %v277
  %v332 = vcombine.high %v282, %v282
  %v333 = vcombine.high %v287, %v287
  %v334 = vcombine.high %v292, %v292
  %v335 = vcombine.high %v297, %v297
  %v336 = vcombine.high %v302, %v302
  %v337 = vcombine.high %v307, %v307
  %v338 = vcombine.high %v312, %v312
  %v344 = vcombine.high %v123, %v123
  %v346 = vunpack.c.l.s4 1966171168
  %v347 = vunpack.c.0.s8 %v346
  %v348 = vlaneseq
  %v349 = vshrl.u32 %v348, 7
  %v350 = vsub.s32 %v347, %v349
  %v351 = vrot.slane %v123, %v350
  %v353 = vunpack.c.l.s4 1966171168
  %v354 = vunpack.c.0.s8 %v353
  %v355 = vlaneseq
  %v356 = vshrl.u32 %v355, 7
  %v357 = vsub.s32 %v354, %v356
  %v358 = vrot.slane %v344, %v357
  %v359 = vcombine.high %v351, %v351
  %v360 = vcombine.high %v358, %v358
  %v362 = vunpack.c.l.s4 1966171168
  %v363 = vunpack.c.0.s8 %v362
  %v364 = vlaneseq
  %v365 = vshrl.u32 %v364, 7
  %v366 = vsub.s32 %v363, %v365
  %v367 = vrot.slane %v351, %v366
  %v369 = vunpack.c.l.s4 1966171168
  %v370 = vunpack.c.0.s8 %v369
  %v371 = vlaneseq
  %v372 = vshrl.u32 %v371, 7
  %v373 = vsub.s32 %v370, %v372
  %v374 = vrot.slane %v358, %v373
  %v376 = vunpack.c.l.s4 1966171168
  %v377 = vunpack.c.0.s8 %v376
  %v378 = vlaneseq
  %v379 = vshrl.u32 %v378, 7
  %v380 = vsub.s32 %v377, %v379
  %v381 = vrot.slane %v359, %v380
  %v383 = vunpack.c.l.s4 1966171168
  %v384 = vunpack.c.0.s8 %v383
  %v385 = vlaneseq
  %v386 = vshrl.u32 %v385, 7
  %v387 = vsub.s32 %v384, %v386
  %v388 = vrot.slane %v360, %v387
  %v389 = vcombine.high %v367, %v367
  %v390 = vcombine.high %v374, %v374
  %v391 = vcombine.high %v381, %v381
  %v392 = vcombine.high %v388, %v388
  %v393 = vlaneseq
  %v394 = vshrl.u32 %v393, 7
  %v395 = vsub.s32 0, %v394
  %v396 = vrot.slane %v367, %v395
  %v397 = vlaneseq
  %v398 = vshrl.u32 %v397, 7
  %v399 = vsub.s32 0, %v398
  %v400 = vrot.slane %v381, %v399
  %v401 = vlaneseq
  %v402 = vshrl.u32 %v401, 7
  %v403 = vsub.s32 0, %v402
  %v404 = vrot.slane %v389, %v403
  %v405 = vlaneseq
  %v406 = vshrl.u32 %v405, 7
  %v407 = vsub.s32 0, %v406
  %v408 = vrot.slane %v391, %v407
  %v409 = vlaneseq
  %v410 = vshrl.u32 %v409, 7
  %v411 = vsub.s32 0, %v410
  %v412 = vrot.slane %v374, %v411
  %v413 = vlaneseq
  %v414 = vshrl.u32 %v413, 7
  %v415 = vsub.s32 0, %v414
  %v416 = vrot.slane %v388, %v415
  %v417 = vlaneseq
  %v418 = vshrl.u32 %v417, 7
  %v419 = vsub.s32 0, %v418
  %v420 = vrot.slane %v390, %v419
  %v421 = vlaneseq
  %v422 = vshrl.u32 %v421, 7
  %v423 = vsub.s32 0, %v422
  %v424 = vrot.slane %v392, %v423
  %v433 = vcombine.low %v257, %v327
  %v434 = vcombine.low %v328, %v267
  %v435 = vcombine.low %v272, %v330
  %v436 = vcombine.low %v331, %v282
  %v437 = vcombine.low %v287, %v333
  %v438 = vcombine.low %v334, %v297
  %v439 = vcombine.low %v302, %v336
  %v440 = vcombine.low %v337, %v312
  %v449 = vmul.f32 %v396, %v433
  %v450 = vmul.f32 %v396, %v262
  %v451 = vmul.f32 %v400, %v434
  %v452 = vmul.f32 %v400, %v329
  %v453 = vmul.f32 %v404, %v435
  %v454 = vmul.f32 %v404, %v277
  %v455 = vmul.f32 %v408, %v436
  %v456 = vmul.f32 %v408, %v332
  %v457 = vmul.f32 %v412, %v437
  %v458 = vmul.f32 %v412, %v292
  %v459 = vmul.f32 %v416, %v438
  %v460 = vmul.f32 %v416, %v335
  %v461 = vmul.f32 %v420, %v439
  %v462 = vmul.f32 %v420, %v307
  %v463 = vmul.f32 %v424, %v440
  %v464 = vmul.f32 %v424, %v338
  %v465 = vsel %vm52, %v449, 0.0
  %466 = vadd.xlane.f32.xlu0 %v465
  %v467 = vpop.xlane.xlu0 %466
  %vm468 = vcmask 257024
  %v469 = vsel %vm468, %v450, 0.0
  %470 = vadd.xlane.f32.xlu0 %v469
  %v471 = vpop.xlane.xlu0 %470
  %v472 = vsel %vm52, %v451, 0.0
  %473 = vadd.xlane.f32.xlu0 %v472
  %v474 = vpop.xlane.xlu0 %473
  %v475 = vsel %vm468, %v452, 0.0
  %476 = vadd.xlane.f32.xlu0 %v475
  %v477 = vpop.xlane.xlu0 %476
  %v478 = vsel %vm52, %v453, 0.0
  %479 = vadd.xlane.f32.xlu0 %v478
  %v480 = vpop.xlane.xlu0 %479
  %v481 = vsel %vm468, %v454, 0.0
  %482 = vadd.xlane.f32.xlu0 %v481
  %v483 = vpop.xlane.xlu0 %482
  %v484 = vsel %vm52, %v455, 0.0
  %485 = vadd.xlane.f32.xlu0 %v484
  %v486 = vpop.xlane.xlu0 %485
  %v487 = vsel %vm468, %v456, 0.0
  %488 = vadd.xlane.f32.xlu0 %v487
  %v489 = vpop.xlane.xlu0 %488
  %v490 = vsel %vm52, %v457, 0.0
  %491 = vadd.xlane.f32.xlu0 %v490
  %v492 = vpop.xlane.xlu0 %491
  %v493 = vsel %vm468, %v458, 0.0
  %494 = vadd.xlane.f32.xlu0 %v493
  %v495 = vpop.xlane.xlu0 %494
  %v496 = vsel %vm52, %v459, 0.0
  %497 = vadd.xlane.f32.xlu0 %v496
  %v498 = vpop.xlane.xlu0 %497
  %v499 = vsel %vm468, %v460, 0.0
  %500 = vadd.xlane.f32.xlu0 %v499
  %v501 = vpop.xlane.xlu0 %500
  %v502 = vsel %vm52, %v461, 0.0
  %503 = vadd.xlane.f32.xlu0 %v502
  %v504 = vpop.xlane.xlu0 %503
  %v505 = vsel %vm468, %v462, 0.0
  %506 = vadd.xlane.f32.xlu0 %v505
  %v507 = vpop.xlane.xlu0 %506
  %v508 = vsel %vm52, %v463, 0.0
  %509 = vadd.xlane.f32.xlu0 %v508
  %v510 = vpop.xlane.xlu0 %509
  %v511 = vsel %vm468, %v464, 0.0
  %512 = vadd.xlane.f32.xlu0 %v511
  %v513 = vpop.xlane.xlu0 %512
  %v514 = vmul.f32 %v467, 0.17677669
  %v515 = vmul.f32 %v471, 0.17677669
  %v516 = vmul.f32 %v474, 0.17677669
  %v517 = vmul.f32 %v477, 0.17677669
  %v518 = vmul.f32 %v480, 0.17677669
  %v519 = vmul.f32 %v483, 0.17677669
  %v520 = vmul.f32 %v486, 0.17677669
  %v521 = vmul.f32 %v489, 0.17677669
  %v522 = vmul.f32 %v492, 0.17677669
  %v523 = vmul.f32 %v495, 0.17677669
  %v524 = vmul.f32 %v498, 0.17677669
  %v525 = vmul.f32 %v501, 0.17677669
  %v526 = vmul.f32 %v504, 0.17677669
  %v527 = vmul.f32 %v507, 0.17677669
  %v528 = vmul.f32 %v510, 0.17677669
  %v529 = vmul.f32 %v513, 0.17677669
  %v530 = vld [vmem:[%s2] sm:$0xff]
  %v532 = vlaneseq
  %v533 = vshrl.u32 %v532, 7
  %v534 = vsub.s32 0, %v533
  %v535 = vrot.slane %v530, %v534
  %537 = vbcast.lane.b32.xlu0 %v535, 256
  %v538 = vpop.permute.xlu0 %537
  %s540 = sor.u32 256, 8
  %541 = vbcast.lane.b32.xlu0 %v535, %s540
  %v542 = vpop.permute.xlu0 %541
  %v543 = vlaneseq
  %v544 = vshrl.u32 %v543, 7
  %v545 = vsub.s32 1, %v544
  %v546 = vrot.slane %v530, %v545
  %548 = vbcast.lane.b32.xlu0 %v546, 256
  %v549 = vpop.permute.xlu0 %548
  %s551 = sor.u32 256, 8
  %552 = vbcast.lane.b32.xlu0 %v546, %s551
  %v553 = vpop.permute.xlu0 %552
  %v554 = vlaneseq
  %v555 = vshrl.u32 %v554, 7
  %v556 = vsub.s32 2, %v555
  %v557 = vrot.slane %v530, %v556
  %559 = vbcast.lane.b32.xlu0 %v557, 256
  %v560 = vpop.permute.xlu0 %559
  %s562 = sor.u32 256, 8
  %563 = vbcast.lane.b32.xlu0 %v557, %s562
  %v564 = vpop.permute.xlu0 %563
  %v565 = vlaneseq
  %v566 = vshrl.u32 %v565, 7
  %v567 = vsub.s32 3, %v566
  %v568 = vrot.slane %v530, %v567
  %570 = vbcast.lane.b32.xlu0 %v568, 256
  %v571 = vpop.permute.xlu0 %570
  %s573 = sor.u32 256, 8
  %574 = vbcast.lane.b32.xlu0 %v568, %s573
  %v575 = vpop.permute.xlu0 %574
  %v576 = vlaneseq
  %v577 = vshrl.u32 %v576, 7
  %v578 = vsub.s32 4, %v577
  %v579 = vrot.slane %v530, %v578
  %581 = vbcast.lane.b32.xlu0 %v579, 256
  %v582 = vpop.permute.xlu0 %581
  %s584 = sor.u32 256, 8
  %585 = vbcast.lane.b32.xlu0 %v579, %s584
  %v586 = vpop.permute.xlu0 %585
  %v587 = vlaneseq
  %v588 = vshrl.u32 %v587, 7
  %v589 = vsub.s32 5, %v588
  %v590 = vrot.slane %v530, %v589
  %592 = vbcast.lane.b32.xlu0 %v590, 256
  %v593 = vpop.permute.xlu0 %592
  %s595 = sor.u32 256, 8
  %596 = vbcast.lane.b32.xlu0 %v590, %s595
  %v597 = vpop.permute.xlu0 %596
  %v598 = vlaneseq
  %v599 = vshrl.u32 %v598, 7
  %v600 = vsub.s32 6, %v599
  %v601 = vrot.slane %v530, %v600
  %603 = vbcast.lane.b32.xlu0 %v601, 256
  %v604 = vpop.permute.xlu0 %603
  %s606 = sor.u32 256, 8
  %607 = vbcast.lane.b32.xlu0 %v601, %s606
  %v608 = vpop.permute.xlu0 %607
  %v609 = vlaneseq
  %v610 = vshrl.u32 %v609, 7
  %v611 = vsub.s32 7, %v610
  %v612 = vrot.slane %v530, %v611
  %614 = vbcast.lane.b32.xlu0 %v612, 256
  %v615 = vpop.permute.xlu0 %614
  %s617 = sor.u32 256, 8
  %618 = vbcast.lane.b32.xlu0 %v612, %s617
  %v619 = vpop.permute.xlu0 %618
  %v636 = vadd.f32 %v514, %v538
  %v637 = vadd.f32 %v515, %v542
  %v638 = vadd.f32 %v516, %v549
  %v639 = vadd.f32 %v517, %v553
  %v640 = vadd.f32 %v518, %v560
  %v641 = vadd.f32 %v519, %v564
  %v642 = vadd.f32 %v520, %v571
  %v643 = vadd.f32 %v521, %v575
  %v644 = vadd.f32 %v522, %v582
  %v645 = vadd.f32 %v523, %v586
  %v646 = vadd.f32 %v524, %v593
  %v647 = vadd.f32 %v525, %v597
  %v648 = vadd.f32 %v526, %v604
  %v649 = vadd.f32 %v527, %v608
  %v650 = vadd.f32 %v528, %v615
  %v651 = vadd.f32 %v529, %v619
  %668 = vset.pattern.permute.xlu0 0
  %669 = vperm.xlu0 %668, %v636
  %v670 = vpop.permute.xlu0 %669
  %671 = vset.pattern.permute.xlu0 0
  %672 = vperm.xlu0 %671, %v637
  %v673 = vpop.permute.xlu0 %672
  %674 = vset.pattern.permute.xlu0 0
  %675 = vperm.xlu0 %674, %v638
  %v676 = vpop.permute.xlu0 %675
  %677 = vset.pattern.permute.xlu0 0
  %678 = vperm.xlu0 %677, %v639
  %v679 = vpop.permute.xlu0 %678
  %680 = vset.pattern.permute.xlu0 0
  %681 = vperm.xlu0 %680, %v640
  %v682 = vpop.permute.xlu0 %681
  %683 = vset.pattern.permute.xlu0 0
  %684 = vperm.xlu0 %683, %v641
  %v685 = vpop.permute.xlu0 %684
  %686 = vset.pattern.permute.xlu0 0
  %687 = vperm.xlu0 %686, %v642
  %v688 = vpop.permute.xlu0 %687
  %689 = vset.pattern.permute.xlu0 0
  %690 = vperm.xlu0 %689, %v643
  %v691 = vpop.permute.xlu0 %690
  %692 = vset.pattern.permute.xlu0 0
  %693 = vperm.xlu0 %692, %v644
  %v694 = vpop.permute.xlu0 %693
  %695 = vset.pattern.permute.xlu0 0
  %696 = vperm.xlu0 %695, %v645
  %v697 = vpop.permute.xlu0 %696
  %698 = vset.pattern.permute.xlu0 0
  %699 = vperm.xlu0 %698, %v646
  %v700 = vpop.permute.xlu0 %699
  %701 = vset.pattern.permute.xlu0 0
  %702 = vperm.xlu0 %701, %v647
  %v703 = vpop.permute.xlu0 %702
  %704 = vset.pattern.permute.xlu0 0
  %705 = vperm.xlu0 %704, %v648
  %v706 = vpop.permute.xlu0 %705
  %707 = vset.pattern.permute.xlu0 0
  %708 = vperm.xlu0 %707, %v649
  %v709 = vpop.permute.xlu0 %708
  %710 = vset.pattern.permute.xlu0 0
  %711 = vperm.xlu0 %710, %v650
  %v712 = vpop.permute.xlu0 %711
  %713 = vset.pattern.permute.xlu0 0
  %714 = vperm.xlu0 %713, %v651
  %v715 = vpop.permute.xlu0 %714
  %v716 = vlaneseq
  %v717 = vand.u32 %v716, 127
  %v718 = vlaneseq
  %v719 = vshrl.u32 %v718, 7
  %v720 = vsub.s32 %v717, %v719
  %v721 = vrot.slane %v670, %v720
  %v722 = vadd.s32 %v717, 4294967288
  %v723 = vlaneseq
  %v724 = vshrl.u32 %v723, 7
  %v725 = vsub.s32 %v722, %v724
  %v726 = vrot.slane %v673, %v725
  %vm727 = vcmask 130112
  %v728 = vsel %vm727, %v726, %v721
  %v729 = vlaneseq
  %v730 = vshrl.u32 %v729, 7
  %v731 = vsub.s32 %v717, %v730
  %v732 = vrot.slane %v676, %v731
  %v733 = vlaneseq
  %v734 = vshrl.u32 %v733, 7
  %v735 = vsub.s32 %v722, %v734
  %v736 = vrot.slane %v679, %v735
  %v737 = vsel %vm727, %v736, %v732
  %v738 = vlaneseq
  %v739 = vshrl.u32 %v738, 7
  %v740 = vsub.s32 %v717, %v739
  %v741 = vrot.slane %v682, %v740
  %v742 = vlaneseq
  %v743 = vshrl.u32 %v742, 7
  %v744 = vsub.s32 %v722, %v743
  %v745 = vrot.slane %v685, %v744
  %v746 = vsel %vm727, %v745, %v741
  %v747 = vlaneseq
  %v748 = vshrl.u32 %v747, 7
  %v749 = vsub.s32 %v717, %v748
  %v750 = vrot.slane %v688, %v749
  %v751 = vlaneseq
  %v752 = vshrl.u32 %v751, 7
  %v753 = vsub.s32 %v722, %v752
  %v754 = vrot.slane %v691, %v753
  %v755 = vsel %vm727, %v754, %v750
  %v756 = vlaneseq
  %v757 = vshrl.u32 %v756, 7
  %v758 = vsub.s32 %v717, %v757
  %v759 = vrot.slane %v694, %v758
  %v760 = vlaneseq
  %v761 = vshrl.u32 %v760, 7
  %v762 = vsub.s32 %v722, %v761
  %v763 = vrot.slane %v697, %v762
  %v764 = vsel %vm727, %v763, %v759
  %v765 = vlaneseq
  %v766 = vshrl.u32 %v765, 7
  %v767 = vsub.s32 %v717, %v766
  %v768 = vrot.slane %v700, %v767
  %v769 = vlaneseq
  %v770 = vshrl.u32 %v769, 7
  %v771 = vsub.s32 %v722, %v770
  %v772 = vrot.slane %v703, %v771
  %v773 = vsel %vm727, %v772, %v768
  %v774 = vlaneseq
  %v775 = vshrl.u32 %v774, 7
  %v776 = vsub.s32 %v717, %v775
  %v777 = vrot.slane %v706, %v776
  %v778 = vlaneseq
  %v779 = vshrl.u32 %v778, 7
  %v780 = vsub.s32 %v722, %v779
  %v781 = vrot.slane %v709, %v780
  %v782 = vsel %vm727, %v781, %v777
  %v783 = vlaneseq
  %v784 = vshrl.u32 %v783, 7
  %v785 = vsub.s32 %v717, %v784
  %v786 = vrot.slane %v712, %v785
  %v787 = vlaneseq
  %v788 = vshrl.u32 %v787, 7
  %v789 = vsub.s32 %v722, %v788
  %v790 = vrot.slane %v715, %v789
  %v791 = vsel %vm727, %v790, %v786
  %vm792 = vcmask 1041409
  %v793 = vsel %vm792, %v737, %v728
  %vm794 = vcmask 1042434
  %v795 = vsel %vm794, %v746, %v793
  %vm796 = vcmask 1043459
  %v797 = vsel %vm796, %v755, %v795
  %vm798 = vcmask 1044484
  %v799 = vsel %vm798, %v764, %v797
  %vm800 = vcmask 1045509
  %v801 = vsel %vm800, %v773, %v799
  %vm802 = vcmask 1046534
  %v803 = vsel %vm802, %v782, %v801
  %vm804 = vcmask 1047559
  %v805 = vsel %vm804, %v791, %v803
  %vm807 = vcmask 97280
  %v808 = vsel %vm807, %v805, -inf
  %809 = vmax.xlane.f32.xlu0 %v808
  %v810 = vpop.xlane.xlu0 %809
  %v812 = vlaneseq
  %v813 = vshrl.u32 %v812, 7
  %v814 = vsub.s32 0, %v813
  %v815 = vrot.slane %v810, %v814
  %v816 = vlaneseq
  %v817 = vshrl.u32 %v816, 7
  %v818 = vsub.s32 1, %v817
  %v819 = vrot.slane %v810, %v818
  %v820 = vlaneseq
  %v821 = vshrl.u32 %v820, 7
  %v822 = vsub.s32 2, %v821
  %v823 = vrot.slane %v810, %v822
  %v824 = vlaneseq
  %v825 = vshrl.u32 %v824, 7
  %v826 = vsub.s32 3, %v825
  %v827 = vrot.slane %v810, %v826
  %v828 = vlaneseq
  %v829 = vshrl.u32 %v828, 7
  %v830 = vsub.s32 4, %v829
  %v831 = vrot.slane %v810, %v830
  %v832 = vlaneseq
  %v833 = vshrl.u32 %v832, 7
  %v834 = vsub.s32 5, %v833
  %v835 = vrot.slane %v810, %v834
  %v836 = vlaneseq
  %v837 = vshrl.u32 %v836, 7
  %v838 = vsub.s32 6, %v837
  %v839 = vrot.slane %v810, %v838
  %v840 = vlaneseq
  %v841 = vshrl.u32 %v840, 7
  %v842 = vsub.s32 7, %v841
  %v843 = vrot.slane %v810, %v842
  %v852 = vsub.f32 %v636, %v815
  %v853 = vsub.f32 %v637, %v815
  %v854 = vsub.f32 %v638, %v819
  %v855 = vsub.f32 %v639, %v819
  %v856 = vsub.f32 %v640, %v823
  %v857 = vsub.f32 %v641, %v823
  %v858 = vsub.f32 %v642, %v827
  %v859 = vsub.f32 %v643, %v827
  %v860 = vsub.f32 %v644, %v831
  %v861 = vsub.f32 %v645, %v831
  %v862 = vsub.f32 %v646, %v835
  %v863 = vsub.f32 %v647, %v835
  %v864 = vsub.f32 %v648, %v839
  %v865 = vsub.f32 %v649, %v839
  %v866 = vsub.f32 %v650, %v843
  %v867 = vsub.f32 %v651, %v843
  %v868 = vmul.f32 %v852, 1.442695
  %v869 = vpow.pop %v868
  %v870 = vmul.f32 %v853, 1.442695
  %v871 = vpow.pop %v870
  %v872 = vmul.f32 %v854, 1.442695
  %v873 = vpow.pop %v872
  %v874 = vmul.f32 %v855, 1.442695
  %v875 = vpow.pop %v874
  %v876 = vmul.f32 %v856, 1.442695
  %v877 = vpow.pop %v876
  %v878 = vmul.f32 %v857, 1.442695
  %v879 = vpow.pop %v878
  %v880 = vmul.f32 %v858, 1.442695
  %v881 = vpow.pop %v880
  %v882 = vmul.f32 %v859, 1.442695
  %v883 = vpow.pop %v882
  %v884 = vmul.f32 %v860, 1.442695
  %v885 = vpow.pop %v884
  %v886 = vmul.f32 %v861, 1.442695
  %v887 = vpow.pop %v886
  %v888 = vmul.f32 %v862, 1.442695
  %v889 = vpow.pop %v888
  %v890 = vmul.f32 %v863, 1.442695
  %v891 = vpow.pop %v890
  %v892 = vmul.f32 %v864, 1.442695
  %v893 = vpow.pop %v892
  %v894 = vmul.f32 %v865, 1.442695
  %v895 = vpow.pop %v894
  %v896 = vmul.f32 %v866, 1.442695
  %v897 = vpow.pop %v896
  %v898 = vmul.f32 %v867, 1.442695
  %v899 = vpow.pop %v898
  %916 = vset.pattern.permute.xlu0 0
  %917 = vperm.xlu0 %916, %v869
  %v918 = vpop.permute.xlu0 %917
  %919 = vset.pattern.permute.xlu0 0
  %920 = vperm.xlu0 %919, %v871
  %v921 = vpop.permute.xlu0 %920
  %922 = vset.pattern.permute.xlu0 0
  %923 = vperm.xlu0 %922, %v873
  %v924 = vpop.permute.xlu0 %923
  %925 = vset.pattern.permute.xlu0 0
  %926 = vperm.xlu0 %925, %v875
  %v927 = vpop.permute.xlu0 %926
  %928 = vset.pattern.permute.xlu0 0
  %929 = vperm.xlu0 %928, %v877
  %v930 = vpop.permute.xlu0 %929
  %931 = vset.pattern.permute.xlu0 0
  %932 = vperm.xlu0 %931, %v879
  %v933 = vpop.permute.xlu0 %932
  %934 = vset.pattern.permute.xlu0 0
  %935 = vperm.xlu0 %934, %v881
  %v936 = vpop.permute.xlu0 %935
  %937 = vset.pattern.permute.xlu0 0
  %938 = vperm.xlu0 %937, %v883
  %v939 = vpop.permute.xlu0 %938
  %940 = vset.pattern.permute.xlu0 0
  %941 = vperm.xlu0 %940, %v885
  %v942 = vpop.permute.xlu0 %941
  %943 = vset.pattern.permute.xlu0 0
  %944 = vperm.xlu0 %943, %v887
  %v945 = vpop.permute.xlu0 %944
  %946 = vset.pattern.permute.xlu0 0
  %947 = vperm.xlu0 %946, %v889
  %v948 = vpop.permute.xlu0 %947
  %949 = vset.pattern.permute.xlu0 0
  %950 = vperm.xlu0 %949, %v891
  %v951 = vpop.permute.xlu0 %950
  %952 = vset.pattern.permute.xlu0 0
  %953 = vperm.xlu0 %952, %v893
  %v954 = vpop.permute.xlu0 %953
  %955 = vset.pattern.permute.xlu0 0
  %956 = vperm.xlu0 %955, %v895
  %v957 = vpop.permute.xlu0 %956
  %958 = vset.pattern.permute.xlu0 0
  %959 = vperm.xlu0 %958, %v897
  %v960 = vpop.permute.xlu0 %959
  %961 = vset.pattern.permute.xlu0 0
  %962 = vperm.xlu0 %961, %v899
  %v963 = vpop.permute.xlu0 %962
  %v964 = vlaneseq
  %v965 = vshrl.u32 %v964, 7
  %v966 = vsub.s32 %v717, %v965
  %v967 = vrot.slane %v918, %v966
  %v968 = vlaneseq
  %v969 = vshrl.u32 %v968, 7
  %v970 = vsub.s32 %v722, %v969
  %v971 = vrot.slane %v921, %v970
  %v972 = vsel %vm727, %v971, %v967
  %v973 = vlaneseq
  %v974 = vshrl.u32 %v973, 7
  %v975 = vsub.s32 %v717, %v974
  %v976 = vrot.slane %v924, %v975
  %v977 = vlaneseq
  %v978 = vshrl.u32 %v977, 7
  %v979 = vsub.s32 %v722, %v978
  %v980 = vrot.slane %v927, %v979
  %v981 = vsel %vm727, %v980, %v976
  %v982 = vlaneseq
  %v983 = vshrl.u32 %v982, 7
  %v984 = vsub.s32 %v717, %v983
  %v985 = vrot.slane %v930, %v984
  %v986 = vlaneseq
  %v987 = vshrl.u32 %v986, 7
  %v988 = vsub.s32 %v722, %v987
  %v989 = vrot.slane %v933, %v988
  %v990 = vsel %vm727, %v989, %v985
  %v991 = vlaneseq
  %v992 = vshrl.u32 %v991, 7
  %v993 = vsub.s32 %v717, %v992
  %v994 = vrot.slane %v936, %v993
  %v995 = vlaneseq
  %v996 = vshrl.u32 %v995, 7
  %v997 = vsub.s32 %v722, %v996
  %v998 = vrot.slane %v939, %v997
  %v999 = vsel %vm727, %v998, %v994
  %v1000 = vlaneseq
  %v1001 = vshrl.u32 %v1000, 7
  %v1002 = vsub.s32 %v717, %v1001
  %v1003 = vrot.slane %v942, %v1002
  %v1004 = vlaneseq
  %v1005 = vshrl.u32 %v1004, 7
  %v1006 = vsub.s32 %v722, %v1005
  %v1007 = vrot.slane %v945, %v1006
  %v1008 = vsel %vm727, %v1007, %v1003
  %v1009 = vlaneseq
  %v1010 = vshrl.u32 %v1009, 7
  %v1011 = vsub.s32 %v717, %v1010
  %v1012 = vrot.slane %v948, %v1011
  %v1013 = vlaneseq
  %v1014 = vshrl.u32 %v1013, 7
  %v1015 = vsub.s32 %v722, %v1014
  %v1016 = vrot.slane %v951, %v1015
  %v1017 = vsel %vm727, %v1016, %v1012
  %v1018 = vlaneseq
  %v1019 = vshrl.u32 %v1018, 7
  %v1020 = vsub.s32 %v717, %v1019
  %v1021 = vrot.slane %v954, %v1020
  %v1022 = vlaneseq
  %v1023 = vshrl.u32 %v1022, 7
  %v1024 = vsub.s32 %v722, %v1023
  %v1025 = vrot.slane %v957, %v1024
  %v1026 = vsel %vm727, %v1025, %v1021
  %v1027 = vlaneseq
  %v1028 = vshrl.u32 %v1027, 7
  %v1029 = vsub.s32 %v717, %v1028
  %v1030 = vrot.slane %v960, %v1029
  %v1031 = vlaneseq
  %v1032 = vshrl.u32 %v1031, 7
  %v1033 = vsub.s32 %v722, %v1032
  %v1034 = vrot.slane %v963, %v1033
  %v1035 = vsel %vm727, %v1034, %v1030
  %v1036 = vsel %vm792, %v981, %v972
  %v1037 = vsel %vm794, %v990, %v1036
  %v1038 = vsel %vm796, %v999, %v1037
  %v1039 = vsel %vm798, %v1008, %v1038
  %v1040 = vsel %vm800, %v1017, %v1039
  %v1041 = vsel %vm802, %v1026, %v1040
  %v1042 = vsel %vm804, %v1035, %v1041
  %v1044 = vsel %vm807, %v1042, 0.0
  %1045 = vadd.xlane.f32.xlu0 %v1044
  %v1046 = vpop.xlane.xlu0 %1045
  %v1047 = vrcp.pop %v1046
  %v1049 = vlaneseq
  %v1050 = vshrl.u32 %v1049, 7
  %v1051 = vsub.s32 0, %v1050
  %v1052 = vrot.slane %v1047, %v1051
  %v1053 = vlaneseq
  %v1054 = vshrl.u32 %v1053, 7
  %v1055 = vsub.s32 1, %v1054
  %v1056 = vrot.slane %v1047, %v1055
  %v1057 = vlaneseq
  %v1058 = vshrl.u32 %v1057, 7
  %v1059 = vsub.s32 2, %v1058
  %v1060 = vrot.slane %v1047, %v1059
  %v1061 = vlaneseq
  %v1062 = vshrl.u32 %v1061, 7
  %v1063 = vsub.s32 3, %v1062
  %v1064 = vrot.slane %v1047, %v1063
  %v1065 = vlaneseq
  %v1066 = vshrl.u32 %v1065, 7
  %v1067 = vsub.s32 4, %v1066
  %v1068 = vrot.slane %v1047, %v1067
  %v1069 = vlaneseq
  %v1070 = vshrl.u32 %v1069, 7
  %v1071 = vsub.s32 5, %v1070
  %v1072 = vrot.slane %v1047, %v1071
  %v1073 = vlaneseq
  %v1074 = vshrl.u32 %v1073, 7
  %v1075 = vsub.s32 6, %v1074
  %v1076 = vrot.slane %v1047, %v1075
  %v1077 = vlaneseq
  %v1078 = vshrl.u32 %v1077, 7
  %v1079 = vsub.s32 7, %v1078
  %v1080 = vrot.slane %v1047, %v1079
  %v1089 = vmul.f32 %v869, %v1052
  %v1090 = vmul.f32 %v871, %v1052
  %v1091 = vmul.f32 %v873, %v1056
  %v1092 = vmul.f32 %v875, %v1056
  %v1093 = vmul.f32 %v877, %v1060
  %v1094 = vmul.f32 %v879, %v1060
  %v1095 = vmul.f32 %v881, %v1064
  %v1096 = vmul.f32 %v883, %v1064
  %v1097 = vmul.f32 %v885, %v1068
  %v1098 = vmul.f32 %v887, %v1068
  %v1099 = vmul.f32 %v889, %v1072
  %v1100 = vmul.f32 %v891, %v1072
  %v1101 = vmul.f32 %v893, %v1076
  %v1102 = vmul.f32 %v895, %v1076
  %v1103 = vmul.f32 %v897, %v1080
  %v1104 = vmul.f32 %v899, %v1080
  %1106 = vset.pattern.permute.xlu0 0
  %1107 = vperm.xlu0 %1106, %v1089
  %v1108 = vpop.permute.xlu0 %1107
  %1111 = vset.pattern.permute.xlu0 0
  %1112 = vperm.xlu0 %1111, %v1090
  %v1113 = vpop.permute.xlu0 %1112
  %1116 = vset.pattern.permute.xlu0 0
  %1117 = vperm.xlu0 %1116, %v1091
  %v1118 = vpop.permute.xlu0 %1117
  %1121 = vset.pattern.permute.xlu0 0
  %1122 = vperm.xlu0 %1121, %v1092
  %v1123 = vpop.permute.xlu0 %1122
  %1126 = vset.pattern.permute.xlu0 0
  %1127 = vperm.xlu0 %1126, %v1093
  %v1128 = vpop.permute.xlu0 %1127
  %1131 = vset.pattern.permute.xlu0 0
  %1132 = vperm.xlu0 %1131, %v1094
  %v1133 = vpop.permute.xlu0 %1132
  %1136 = vset.pattern.permute.xlu0 0
  %1137 = vperm.xlu0 %1136, %v1095
  %v1138 = vpop.permute.xlu0 %1137
  %1141 = vset.pattern.permute.xlu0 0
  %1142 = vperm.xlu0 %1141, %v1096
  %v1143 = vpop.permute.xlu0 %1142
  %1146 = vset.pattern.permute.xlu0 0
  %1147 = vperm.xlu0 %1146, %v1097
  %v1148 = vpop.permute.xlu0 %1147
  %1151 = vset.pattern.permute.xlu0 0
  %1152 = vperm.xlu0 %1151, %v1098
  %v1153 = vpop.permute.xlu0 %1152
  %1156 = vset.pattern.permute.xlu0 0
  %1157 = vperm.xlu0 %1156, %v1099
  %v1158 = vpop.permute.xlu0 %1157
  %1161 = vset.pattern.permute.xlu0 0
  %1162 = vperm.xlu0 %1161, %v1100
  %v1163 = vpop.permute.xlu0 %1162
  %1166 = vset.pattern.permute.xlu0 0
  %1167 = vperm.xlu0 %1166, %v1101
  %v1168 = vpop.permute.xlu0 %1167
  %1171 = vset.pattern.permute.xlu0 0
  %1172 = vperm.xlu0 %1171, %v1102
  %v1173 = vpop.permute.xlu0 %1172
  %1176 = vset.pattern.permute.xlu0 0
  %1177 = vperm.xlu0 %1176, %v1103
  %v1178 = vpop.permute.xlu0 %1177
  %1181 = vset.pattern.permute.xlu0 0
  %1182 = vperm.xlu0 %1181, %v1104
  %v1183 = vpop.permute.xlu0 %1182
  %1185 = vrot.lane.b32.xlu0 %v433, 96
  %v1186 = vpop.permute.xlu0 %1185
  %1187 = vrot.lane.b32.xlu0 %v262, 96
  %v1188 = vpop.permute.xlu0 %1187
  %1189 = vrot.lane.b32.xlu0 %v434, 96
  %v1190 = vpop.permute.xlu0 %1189
  %1191 = vrot.lane.b32.xlu0 %v329, 96
  %v1192 = vpop.permute.xlu0 %1191
  %1193 = vrot.lane.b32.xlu0 %v435, 96
  %v1194 = vpop.permute.xlu0 %1193
  %1195 = vrot.lane.b32.xlu0 %v277, 96
  %v1196 = vpop.permute.xlu0 %1195
  %1197 = vrot.lane.b32.xlu0 %v436, 96
  %v1198 = vpop.permute.xlu0 %1197
  %1199 = vrot.lane.b32.xlu0 %v332, 96
  %v1200 = vpop.permute.xlu0 %1199
  %1201 = vrot.lane.b32.xlu0 %v437, 96
  %v1202 = vpop.permute.xlu0 %1201
  %1203 = vrot.lane.b32.xlu0 %v292, 96
  %v1204 = vpop.permute.xlu0 %1203
  %1205 = vrot.lane.b32.xlu0 %v438, 96
  %v1206 = vpop.permute.xlu0 %1205
  %1207 = vrot.lane.b32.xlu0 %v335, 96
  %v1208 = vpop.permute.xlu0 %1207
  %1209 = vrot.lane.b32.xlu0 %v439, 96
  %v1210 = vpop.permute.xlu0 %1209
  %1211 = vrot.lane.b32.xlu0 %v307, 96
  %v1212 = vpop.permute.xlu0 %1211
  %1213 = vrot.lane.b32.xlu0 %v440, 96
  %v1214 = vpop.permute.xlu0 %1213
  %1215 = vrot.lane.b32.xlu0 %v338, 96
  %v1216 = vpop.permute.xlu0 %1215
  %v1233 = vmul.f32 %v1108, %v1186
  %v1234 = vmul.f32 %v1113, %v1188
  %v1235 = vmul.f32 %v1118, %v1190
  %v1236 = vmul.f32 %v1123, %v1192
  %v1237 = vmul.f32 %v1128, %v1194
  %v1238 = vmul.f32 %v1133, %v1196
  %v1239 = vmul.f32 %v1138, %v1198
  %v1240 = vmul.f32 %v1143, %v1200
  %v1241 = vmul.f32 %v1148, %v1202
  %v1242 = vmul.f32 %v1153, %v1204
  %v1243 = vmul.f32 %v1158, %v1206
  %v1244 = vmul.f32 %v1163, %v1208
  %v1245 = vmul.f32 %v1168, %v1210
  %v1246 = vmul.f32 %v1173, %v1212
  %v1247 = vmul.f32 %v1178, %v1214
  %v1248 = vmul.f32 %v1183, %v1216
  %v1249 = vsel %vm52, %v1233, 0.0
  %v1250 = vsel %vm468, %v1234, 0.0
  %v1251 = vadd.f32 %v1249, %v1250
  %v1252 = vrot.slane %v1251, 4
  %v1253 = vadd.f32 %v1251, %v1252
  %v1254 = vrot.slane %v1253, 2
  %v1255 = vadd.f32 %v1253, %v1254
  %v1256 = vrot.slane %v1255, 1
  %v1257 = vadd.f32 %v1255, %v1256
  %v1258 = vsel %vm52, %v1235, 0.0
  %v1259 = vsel %vm468, %v1236, 0.0
  %v1260 = vadd.f32 %v1258, %v1259
  %v1261 = vrot.slane %v1260, 4
  %v1262 = vadd.f32 %v1260, %v1261
  %v1263 = vrot.slane %v1262, 2
  %v1264 = vadd.f32 %v1262, %v1263
  %v1265 = vrot.slane %v1264, 1
  %v1266 = vadd.f32 %v1264, %v1265
  %v1267 = vsel %vm52, %v1237, 0.0
  %v1268 = vsel %vm468, %v1238, 0.0
  %v1269 = vadd.f32 %v1267, %v1268
  %v1270 = vrot.slane %v1269, 4
  %v1271 = vadd.f32 %v1269, %v1270
  %v1272 = vrot.slane %v1271, 2
  %v1273 = vadd.f32 %v1271, %v1272
  %v1274 = vrot.slane %v1273, 1
  %v1275 = vadd.f32 %v1273, %v1274
  %v1276 = vsel %vm52, %v1239, 0.0
  %v1277 = vsel %vm468, %v1240, 0.0
  %v1278 = vadd.f32 %v1276, %v1277
  %v1279 = vrot.slane %v1278, 4
  %v1280 = vadd.f32 %v1278, %v1279
  %v1281 = vrot.slane %v1280, 2
  %v1282 = vadd.f32 %v1280, %v1281
  %v1283 = vrot.slane %v1282, 1
  %v1284 = vadd.f32 %v1282, %v1283
  %v1285 = vsel %vm52, %v1241, 0.0
  %v1286 = vsel %vm468, %v1242, 0.0
  %v1287 = vadd.f32 %v1285, %v1286
  %v1288 = vrot.slane %v1287, 4
  %v1289 = vadd.f32 %v1287, %v1288
  %v1290 = vrot.slane %v1289, 2
  %v1291 = vadd.f32 %v1289, %v1290
  %v1292 = vrot.slane %v1291, 1
  %v1293 = vadd.f32 %v1291, %v1292
  %v1294 = vsel %vm52, %v1243, 0.0
  %v1295 = vsel %vm468, %v1244, 0.0
  %v1296 = vadd.f32 %v1294, %v1295
  %v1297 = vrot.slane %v1296, 4
  %v1298 = vadd.f32 %v1296, %v1297
  %v1299 = vrot.slane %v1298, 2
  %v1300 = vadd.f32 %v1298, %v1299
  %v1301 = vrot.slane %v1300, 1
  %v1302 = vadd.f32 %v1300, %v1301
  %v1303 = vsel %vm52, %v1245, 0.0
  %v1304 = vsel %vm468, %v1246, 0.0
  %v1305 = vadd.f32 %v1303, %v1304
  %v1306 = vrot.slane %v1305, 4
  %v1307 = vadd.f32 %v1305, %v1306
  %v1308 = vrot.slane %v1307, 2
  %v1309 = vadd.f32 %v1307, %v1308
  %v1310 = vrot.slane %v1309, 1
  %v1311 = vadd.f32 %v1309, %v1310
  %v1312 = vsel %vm52, %v1247, 0.0
  %v1313 = vsel %vm468, %v1248, 0.0
  %v1314 = vadd.f32 %v1312, %v1313
  %v1315 = vrot.slane %v1314, 4
  %v1316 = vadd.f32 %v1314, %v1315
  %v1317 = vrot.slane %v1316, 2
  %v1318 = vadd.f32 %v1316, %v1317
  %v1319 = vrot.slane %v1318, 1
  %v1320 = vadd.f32 %v1318, %v1319
  %v1321 = vld [vmem:[%s5] sm:$0xff]
  %v1322 = vld [vmem:[%s5 + $0x8] sm:$0xff]
  %v1323 = vld [vmem:[%s5 + $0x10] sm:$0xff]
  %v1324 = vld [vmem:[%s5 + $0x18] sm:$0xff]
  %v1333 = vsel %vm792, %v1266, %v1257
  %v1334 = vsel %vm794, %v1275, %v1333
  %v1335 = vsel %vm796, %v1284, %v1334
  %v1336 = vsel %vm798, %v1293, %v1335
  %v1337 = vsel %vm800, %v1302, %v1336
  %v1338 = vsel %vm802, %v1311, %v1337
  %v1339 = vsel %vm804, %v1320, %v1338
  %v1340 = vsel %vm52, %v1339, 0
  %1342 = vmatprep.subr.mxu0 0.0
  %1343 = vmatpush1.msra.mxu0 0.0
  %1344 = vmatprep.subr.mxu0 0.0
  %1345 = vmatpush1.msra.mxu0 0.0
  %1346 = vmatprep.subr.mxu0 0.0
  %1347 = vmatpush1.msra.mxu0 0.0
  %1348 = vmatprep.subr.mxu0 0.0
  %1349 = vmatpush1.msra.mxu0 0.0
  %1350 = vmatprep.subr.mxu0 0.0
  %1351 = vmatpush1.msra.mxu0 0.0
  %1352 = vmatprep.subr.mxu0 0.0
  %1353 = vmatpush1.msra.mxu0 0.0
  %1354 = vmatprep.subr.mxu0 0.0
  %1355 = vmatpush1.msra.mxu0 0.0
  %1356 = vmatprep.subr.mxu0 0.0
  %1357 = vmatpush1.msra.mxu0 0.0
  %1358 = vmatprep.subr.mxu0 0.0
  %1359 = vmatpush1.msra.mxu0 0.0
  %1360 = vmatprep.subr.mxu0 0.0
  %1361 = vmatpush1.msra.mxu0 0.0
  %1362 = vmatprep.subr.mxu0 0.0
  %1363 = vmatpush1.msra.mxu0 0.0
  %1364 = vmatprep.subr.mxu0 0.0
  %1365 = vmatpush1.msra.mxu0 0.0
  %1366 = vmatprep.subr.mxu0 0.0
  %1367 = vmatpush1.msra.mxu0 %v1324
  %1368 = vmatprep.subr.mxu0 0.0
  %1369 = vmatpush1.msra.mxu0 %v1323
  %1370 = vmatprep.subr.mxu0 0.0
  %1371 = vmatpush1.msra.mxu0 %v1322
  %1372 = vmatprep.subr.mxu0 0.0
  %1373 = vmatpush1.msra.mxu0 %v1321
  %1374 = vmatprep.subr.mxu0 0.0
  %1375 = vmatpush2.msra.mxu0 0.0
  %1376 = vmatprep.subr.mxu0 0.0
  %1377 = vmatpush2.msra.mxu0 0.0
  %1378 = vmatprep.subr.mxu0 0.0
  %1379 = vmatpush2.msra.mxu0 0.0
  %1380 = vmatprep.subr.mxu0 0.0
  %1381 = vmatpush2.msra.mxu0 0.0
  %1382 = vmatprep.subr.mxu0 0.0
  %1383 = vmatpush2.msra.mxu0 0.0
  %1384 = vmatprep.subr.mxu0 0.0
  %1385 = vmatpush2.msra.mxu0 0.0
  %1386 = vmatprep.subr.mxu0 0.0
  %1387 = vmatpush2.msra.mxu0 0.0
  %1388 = vmatprep.subr.mxu0 0.0
  %1389 = vmatpush2.msra.mxu0 0.0
  %1390 = vmatprep.subr.mxu0 0.0
  %1391 = vmatpush2.msra.mxu0 0.0
  %1392 = vmatprep.subr.mxu0 0.0
  %1393 = vmatpush2.msra.mxu0 0.0
  %1394 = vmatprep.subr.mxu0 0.0
  %1395 = vmatpush2.msra.mxu0 0.0
  %1396 = vmatprep.subr.mxu0 0.0
  %1397 = vmatpush2.msra.mxu0 0.0
  %1398 = vmatprep.subr.mxu0 0.0
  %1399 = vmatpush2.msra.mxu0 0.0
  %1400 = vmatprep.subr.mxu0 0.0
  %1401 = vmatpush2.msra.mxu0 0.0
  %1402 = vmatprep.subr.mxu0 0.0
  %1403 = vmatpush2.msra.mxu0 0.0
  %1404 = vmatprep.subr.mxu0 0.0
  %1405 = vmatpush2.msra.mxu0 0.0
  %1406 = vmatprep.mubr.f32.mxu0 0.0
  %1407 = vmatmul.mubr.f32.gmra.mxu0 %v1340
  %v1408 = vpop.f32.mrf.mxu0
  %v1409 = vadd.f32 0.0, %v1408
  %v1410 = vpop.f32.mrf.mxu0
  %1411 = vdwg.mxu0
  %1412 = vst.msk [vmem:[%s8] sm:$0xff] %vm52, %v1409
  %v1413 = vld [vmem:[%s6] sm:$0xff]
  %v1414 = vld [vmem:[%s6 + $0x8] sm:$0xff]
  %v1415 = vld [vmem:[%s6 + $0x10] sm:$0xff]
  %v1416 = vld [vmem:[%s6 + $0x18] sm:$0xff]
  %v1417 = vld [vmem:[%s7] sm:$0x1]
  %v1419 = vlaneseq
  %v1420 = vshrl.u32 %v1419, 7
  %v1421 = vsub.s32 0, %v1420
  %v1422 = vrot.slane %v1417, %v1421
  %v1425 = vsel %vm52, %v1409, 0
  %1427 = vmatprep.subr.mxu0 0.0
  %1428 = vmatpush1.msra.mxu0 0.0
  %1429 = vmatprep.subr.mxu0 0.0
  %1430 = vmatpush1.msra.mxu0 0.0
  %1431 = vmatprep.subr.mxu0 0.0
  %1432 = vmatpush1.msra.mxu0 0.0
  %1433 = vmatprep.subr.mxu0 0.0
  %1434 = vmatpush1.msra.mxu0 0.0
  %1435 = vmatprep.subr.mxu0 0.0
  %1436 = vmatpush1.msra.mxu0 0.0
  %1437 = vmatprep.subr.mxu0 0.0
  %1438 = vmatpush1.msra.mxu0 0.0
  %1439 = vmatprep.subr.mxu0 0.0
  %1440 = vmatpush1.msra.mxu0 0.0
  %1441 = vmatprep.subr.mxu0 0.0
  %1442 = vmatpush1.msra.mxu0 0.0
  %1443 = vmatprep.subr.mxu0 0.0
  %1444 = vmatpush1.msra.mxu0 0.0
  %1445 = vmatprep.subr.mxu0 0.0
  %1446 = vmatpush1.msra.mxu0 0.0
  %1447 = vmatprep.subr.mxu0 0.0
  %1448 = vmatpush1.msra.mxu0 0.0
  %1449 = vmatprep.subr.mxu0 0.0
  %1450 = vmatpush1.msra.mxu0 0.0
  %1451 = vmatprep.subr.mxu0 0.0
  %1452 = vmatpush1.msra.mxu0 %v1416
  %1453 = vmatprep.subr.mxu0 0.0
  %1454 = vmatpush1.msra.mxu0 %v1415
  %1455 = vmatprep.subr.mxu0 0.0
  %1456 = vmatpush1.msra.mxu0 %v1414
  %1457 = vmatprep.subr.mxu0 0.0
  %1458 = vmatpush1.msra.mxu0 %v1413
  %1459 = vmatprep.subr.mxu0 0.0
  %1460 = vmatpush2.msra.mxu0 0.0
  %1461 = vmatprep.subr.mxu0 0.0
  %1462 = vmatpush2.msra.mxu0 0.0
  %1463 = vmatprep.subr.mxu0 0.0
  %1464 = vmatpush2.msra.mxu0 0.0
  %1465 = vmatprep.subr.mxu0 0.0
  %1466 = vmatpush2.msra.mxu0 0.0
  %1467 = vmatprep.subr.mxu0 0.0
  %1468 = vmatpush2.msra.mxu0 0.0
  %1469 = vmatprep.subr.mxu0 0.0
  %1470 = vmatpush2.msra.mxu0 0.0
  %1471 = vmatprep.subr.mxu0 0.0
  %1472 = vmatpush2.msra.mxu0 0.0
  %1473 = vmatprep.subr.mxu0 0.0
  %1474 = vmatpush2.msra.mxu0 0.0
  %1475 = vmatprep.subr.mxu0 0.0
  %1476 = vmatpush2.msra.mxu0 0.0
  %1477 = vmatprep.subr.mxu0 0.0
  %1478 = vmatpush2.msra.mxu0 0.0
  %1479 = vmatprep.subr.mxu0 0.0
  %1480 = vmatpush2.msra.mxu0 0.0
  %1481 = vmatprep.subr.mxu0 0.0
  %1482 = vmatpush2.msra.mxu0 0.0
  %1483 = vmatprep.subr.mxu0 0.0
  %1484 = vmatpush2.msra.mxu0 0.0
  %1485 = vmatprep.subr.mxu0 0.0
  %1486 = vmatpush2.msra.mxu0 0.0
  %1487 = vmatprep.subr.mxu0 0.0
  %1488 = vmatpush2.msra.mxu0 0.0
  %1489 = vmatprep.subr.mxu0 0.0
  %1490 = vmatpush2.msra.mxu0 0.0
  %1491 = vmatprep.mubr.f32.mxu0 0.0
  %1492 = vmatmul.mubr.f32.gmra.mxu0 %v1425
  %v1493 = vpop.f32.mrf.mxu0
  %v1494 = vadd.f32 %v1422, %v1493
  %v1495 = vpop.f32.mrf.mxu0
  %1496 = vdwg.mxu0
  %1497 = vmax.xlane.f32.xlu0 %v1494
  %v1498 = vpop.xlane.xlu0 %1497
  %v1499 = vsub.f32 %v1494, %v1498
  %v1500 = vmul.f32 %v1499, 1.442695
  %v1501 = vpow.pop %v1500
  %1502 = vadd.xlane.f32.xlu0 %v1501
  %v1503 = vpop.xlane.xlu0 %1502
  %v1504 = vrcp.pop %v1503
  %v1505 = vmul.f32 %v1501, %v1504
  %1506 = vst [vmem:[%s9] sm:$0xff] %v1505
  // Predicated region
  $region34: #{graph_explorer_forward.32} parent=0 // pred_check
    _
  $region35: #{graph_explorer_forward.32} parent=0 // pred_check_branch
    %1508 = sbr.rel (0) target = $region37
  $region36: #{graph_explorer_forward.32} parent=0 // pred_region
    _
  $region37: #{graph_explorer_forward.32} parent=0 // pred_fallthru
    _
  // Predicated region
  $region38: #{graph_explorer_forward.32} parent=0 // pred_check
    _
  $region39: #{graph_explorer_forward.32} parent=0 // pred_check_branch
    %1510 = sbr.rel (0) target = $region41
  $region40: #{graph_explorer_forward.32} parent=0 // pred_region
    _
  $region41: #{graph_explorer_forward.32} parent=0 // pred_fallthru
    _
  // Predicated region
  $region42: #{graph_explorer_forward.32} parent=0 // pred_check
    _
  $region43: #{graph_explorer_forward.32} parent=0 // pred_check_branch
    %1512 = sbr.rel (0) target = $region45
  $region44: #{graph_explorer_forward.32} parent=0 // pred_region
    _
  $region45: #{graph_explorer_forward.32} parent=0 // pred_fallthru
    _
  // Predicated region
  $region46: #{graph_explorer_forward.32} parent=0 // pred_check
    _
  $region47: #{graph_explorer_forward.32} parent=0 // pred_check_branch
    %1514 = sbr.rel (0) target = $region49
  $region48: #{graph_explorer_forward.32} parent=0 // pred_region
    _
  $region49: #{graph_explorer_forward.32} parent=0 // pred_fallthru
    _

// kernel: graph_explorer_forward.33
$region0: #{graph_explorer_forward.33}
  #allocation0 [shape = 'u32[]', space=smem, size = 0x4, offset = 0x4, fixed_abs, tag = 'smem constant byte address 0x4 - core index']
  #allocation1 [shape = 'u32[144,128]{1,0:T(1,128)}', space=vmem, size = 0x12000, scoped, tag = 'internal scratch']
  %s0 = inlined_call_operand.vmem [shape: f32[8,32], index: 0, kind: input, shape index: {}]
  %s1 = inlined_call_operand.vmem [shape: f32[8,32], index: 1, kind: input, shape index: {}]
  %s2 = inlined_call_operand.vmem [shape: f32[32,96], index: 2, kind: input, shape index: {}]
  %s3 = inlined_call_operand.vmem [shape: f32[32,96], index: 3, kind: input, shape index: {}]
  %s4 = inlined_call_operand.vmem [shape: f32[1,96], index: 4, kind: input, shape index: {}]
  %s5 = inlined_call_operand.vmem [shape: f32[1,96], index: 5, kind: input, shape index: {}]
  %s6 = inlined_call_operand.vmem [shape: f32[32,128], index: 6, kind: input, shape index: {}]
  %s7 = inlined_call_operand.vmem [shape: f32[1,128], index: 7, kind: input, shape index: {}]
  %s8 = inlined_call_operand.vmem [shape: f32[8,32], index: 8, kind: output, shape index: {0}]
  %s9 = inlined_call_operand.vmem [shape: f32[8,128], index: 9, kind: output, shape index: {1}]
  %10 = xla_tuple %s8, %s9
  %s11 = sld [smem:[#allocation0]]
  $region50: #{graph_explorer_forward.33} parent=0
    _
  %s13 = ssub.s32 1, %s11
  %s14 = scalar_select 0, %s13, %s11
  // Predicated region
  $region2: #{graph_explorer_forward.33} parent=0 // pred_check
    _
  $region3: #{graph_explorer_forward.33} parent=0 // pred_check_branch
    %16 = sbr.rel (0) target = $region5
  $region4: #{graph_explorer_forward.33} parent=0 // pred_region
    _
  $region5: #{graph_explorer_forward.33} parent=0 // pred_fallthru
    _
  // Predicated region
  $region6: #{graph_explorer_forward.33} parent=0 // pred_check
    _
  $region7: #{graph_explorer_forward.33} parent=0 // pred_check_branch
    %18 = sbr.rel (0) target = $region9
  $region8: #{graph_explorer_forward.33} parent=0 // pred_region
    _
  $region9: #{graph_explorer_forward.33} parent=0 // pred_fallthru
    _
  // Predicated region
  $region10: #{graph_explorer_forward.33} parent=0 // pred_check
    _
  $region11: #{graph_explorer_forward.33} parent=0 // pred_check_branch
    %20 = sbr.rel (0) target = $region13
  $region12: #{graph_explorer_forward.33} parent=0 // pred_region
    _
  $region13: #{graph_explorer_forward.33} parent=0 // pred_fallthru
    _
  // Predicated region
  $region14: #{graph_explorer_forward.33} parent=0 // pred_check
    _
  $region15: #{graph_explorer_forward.33} parent=0 // pred_check_branch
    %22 = sbr.rel (0) target = $region17
  $region16: #{graph_explorer_forward.33} parent=0 // pred_region
    _
  $region17: #{graph_explorer_forward.33} parent=0 // pred_fallthru
    _
  // Predicated region
  $region18: #{graph_explorer_forward.33} parent=0 // pred_check
    _
  $region19: #{graph_explorer_forward.33} parent=0 // pred_check_branch
    %24 = sbr.rel (0) target = $region21
  $region20: #{graph_explorer_forward.33} parent=0 // pred_region
    _
  $region21: #{graph_explorer_forward.33} parent=0 // pred_fallthru
    _
  // Predicated region
  $region22: #{graph_explorer_forward.33} parent=0 // pred_check
    _
  $region23: #{graph_explorer_forward.33} parent=0 // pred_check_branch
    %26 = sbr.rel (0) target = $region25
  $region24: #{graph_explorer_forward.33} parent=0 // pred_region
    _
  $region25: #{graph_explorer_forward.33} parent=0 // pred_fallthru
    _
  // Predicated region
  $region26: #{graph_explorer_forward.33} parent=0 // pred_check
    _
  $region27: #{graph_explorer_forward.33} parent=0 // pred_check_branch
    %28 = sbr.rel (0) target = $region29
  $region28: #{graph_explorer_forward.33} parent=0 // pred_region
    _
  $region29: #{graph_explorer_forward.33} parent=0 // pred_fallthru
    _
  // Predicated region
  $region30: #{graph_explorer_forward.33} parent=0 // pred_check
    _
  $region31: #{graph_explorer_forward.33} parent=0 // pred_check_branch
    %30 = sbr.rel (0) target = $region33
  $region32: #{graph_explorer_forward.33} parent=0 // pred_region
    _
  $region33: #{graph_explorer_forward.33} parent=0 // pred_fallthru
    _
  %v31 = vld [vmem:[%s0] sm:$0xff]
  %v32 = vld [vmem:[%s1] sm:$0xff]
  %v33 = vld [vmem:[%s2] sm:$0xff]
  %v34 = vld [vmem:[%s2 + $0x8] sm:$0xff]
  %v35 = vld [vmem:[%s2 + $0x10] sm:$0xff]
  %v36 = vld [vmem:[%s2 + $0x18] sm:$0xff]
  %v37 = vld [vmem:[%s4] sm:$0x1]
  %v39 = vlaneseq
  %v40 = vshrl.u32 %v39, 7
  %v41 = vsub.s32 0, %v40
  %v42 = vrot.slane %v37, %v41
  %vm44 = vcmask 261120
  %v46 = vsel %vm44, %v31, 0
  %48 = vmatprep.subr.mxu0 0.0
  %49 = vmatpush1.msra.mxu0 0.0
  %50 = vmatprep.subr.mxu0 0.0
  %51 = vmatpush1.msra.mxu0 0.0
  %52 = vmatprep.subr.mxu0 0.0
  %53 = vmatpush1.msra.mxu0 0.0
  %54 = vmatprep.subr.mxu0 0.0
  %55 = vmatpush1.msra.mxu0 0.0
  %56 = vmatprep.subr.mxu0 0.0
  %57 = vmatpush1.msra.mxu0 0.0
  %58 = vmatprep.subr.mxu0 0.0
  %59 = vmatpush1.msra.mxu0 0.0
  %60 = vmatprep.subr.mxu0 0.0
  %61 = vmatpush1.msra.mxu0 0.0
  %62 = vmatprep.subr.mxu0 0.0
  %63 = vmatpush1.msra.mxu0 0.0
  %64 = vmatprep.subr.mxu0 0.0
  %65 = vmatpush1.msra.mxu0 0.0
  %66 = vmatprep.subr.mxu0 0.0
  %67 = vmatpush1.msra.mxu0 0.0
  %68 = vmatprep.subr.mxu0 0.0
  %69 = vmatpush1.msra.mxu0 0.0
  %70 = vmatprep.subr.mxu0 0.0
  %71 = vmatpush1.msra.mxu0 0.0
  %72 = vmatprep.subr.mxu0 0.0
  %73 = vmatpush1.msra.mxu0 %v36
  %74 = vmatprep.subr.mxu0 0.0
  %75 = vmatpush1.msra.mxu0 %v35
  %76 = vmatprep.subr.mxu0 0.0
  %77 = vmatpush1.msra.mxu0 %v34
  %78 = vmatprep.subr.mxu0 0.0
  %79 = vmatpush1.msra.mxu0 %v33
  %80 = vmatprep.subr.mxu0 0.0
  %81 = vmatpush2.msra.mxu0 0.0
  %82 = vmatprep.subr.mxu0 0.0
  %83 = vmatpush2.msra.mxu0 0.0
  %84 = vmatprep.subr.mxu0 0.0
  %85 = vmatpush2.msra.mxu0 0.0
  %86 = vmatprep.subr.mxu0 0.0
  %87 = vmatpush2.msra.mxu0 0.0
  %88 = vmatprep.subr.mxu0 0.0
  %89 = vmatpush2.msra.mxu0 0.0
  %90 = vmatprep.subr.mxu0 0.0
  %91 = vmatpush2.msra.mxu0 0.0
  %92 = vmatprep.subr.mxu0 0.0
  %93 = vmatpush2.msra.mxu0 0.0
  %94 = vmatprep.subr.mxu0 0.0
  %95 = vmatpush2.msra.mxu0 0.0
  %96 = vmatprep.subr.mxu0 0.0
  %97 = vmatpush2.msra.mxu0 0.0
  %98 = vmatprep.subr.mxu0 0.0
  %99 = vmatpush2.msra.mxu0 0.0
  %100 = vmatprep.subr.mxu0 0.0
  %101 = vmatpush2.msra.mxu0 0.0
  %102 = vmatprep.subr.mxu0 0.0
  %103 = vmatpush2.msra.mxu0 0.0
  %104 = vmatprep.subr.mxu0 0.0
  %105 = vmatpush2.msra.mxu0 0.0
  %106 = vmatprep.subr.mxu0 0.0
  %107 = vmatpush2.msra.mxu0 0.0
  %108 = vmatprep.subr.mxu0 0.0
  %109 = vmatpush2.msra.mxu0 0.0
  %110 = vmatprep.subr.mxu0 0.0
  %111 = vmatpush2.msra.mxu0 0.0
  %112 = vmatprep.mubr.f32.mxu0 0.0
  %113 = vmatmul.mubr.f32.gmra.mxu0 %v46
  %v114 = vpop.f32.mrf.mxu0
  %v115 = vadd.f32 %v42, %v114
  %v116 = vpop.f32.mrf.mxu0
  %117 = vdwg.mxu0
  %v118 = vld [vmem:[%s3] sm:$0xff]
  %v119 = vld [vmem:[%s3 + $0x8] sm:$0xff]
  %v120 = vld [vmem:[%s3 + $0x10] sm:$0xff]
  %v121 = vld [vmem:[%s3 + $0x18] sm:$0xff]
  %v122 = vld [vmem:[%s5] sm:$0x1]
  %v124 = vlaneseq
  %v125 = vshrl.u32 %v124, 7
  %v126 = vsub.s32 0, %v125
  %v127 = vrot.slane %v122, %v126
  %v130 = vsel %vm44, %v32, 0
  %132 = vmatprep.subr.mxu0 0.0
  %133 = vmatpush1.msra.mxu0 0.0
  %134 = vmatprep.subr.mxu0 0.0
  %135 = vmatpush1.msra.mxu0 0.0
  %136 = vmatprep.subr.mxu0 0.0
  %137 = vmatpush1.msra.mxu0 0.0
  %138 = vmatprep.subr.mxu0 0.0
  %139 = vmatpush1.msra.mxu0 0.0
  %140 = vmatprep.subr.mxu0 0.0
  %141 = vmatpush1.msra.mxu0 0.0
  %142 = vmatprep.subr.mxu0 0.0
  %143 = vmatpush1.msra.mxu0 0.0
  %144 = vmatprep.subr.mxu0 0.0
  %145 = vmatpush1.msra.mxu0 0.0
  %146 = vmatprep.subr.mxu0 0.0
  %147 = vmatpush1.msra.mxu0 0.0
  %148 = vmatprep.subr.mxu0 0.0
  %149 = vmatpush1.msra.mxu0 0.0
  %150 = vmatprep.subr.mxu0 0.0
  %151 = vmatpush1.msra.mxu0 0.0
  %152 = vmatprep.subr.mxu0 0.0
  %153 = vmatpush1.msra.mxu0 0.0
  %154 = vmatprep.subr.mxu0 0.0
  %155 = vmatpush1.msra.mxu0 0.0
  %156 = vmatprep.subr.mxu0 0.0
  %157 = vmatpush1.msra.mxu0 %v121
  %158 = vmatprep.subr.mxu0 0.0
  %159 = vmatpush1.msra.mxu0 %v120
  %160 = vmatprep.subr.mxu0 0.0
  %161 = vmatpush1.msra.mxu0 %v119
  %162 = vmatprep.subr.mxu0 0.0
  %163 = vmatpush1.msra.mxu0 %v118
  %164 = vmatprep.subr.mxu0 0.0
  %165 = vmatpush2.msra.mxu0 0.0
  %166 = vmatprep.subr.mxu0 0.0
  %167 = vmatpush2.msra.mxu0 0.0
  %168 = vmatprep.subr.mxu0 0.0
  %169 = vmatpush2.msra.mxu0 0.0
  %170 = vmatprep.subr.mxu0 0.0
  %171 = vmatpush2.msra.mxu0 0.0
  %172 = vmatprep.subr.mxu0 0.0
  %173 = vmatpush2.msra.mxu0 0.0
  %174 = vmatprep.subr.mxu0 0.0
  %175 = vmatpush2.msra.mxu0 0.0
  %176 = vmatprep.subr.mxu0 0.0
  %177 = vmatpush2.msra.mxu0 0.0
  %178 = vmatprep.subr.mxu0 0.0
  %179 = vmatpush2.msra.mxu0 0.0
  %180 = vmatprep.subr.mxu0 0.0
  %181 = vmatpush2.msra.mxu0 0.0
  %182 = vmatprep.subr.mxu0 0.0
  %183 = vmatpush2.msra.mxu0 0.0
  %184 = vmatprep.subr.mxu0 0.0
  %185 = vmatpush2.msra.mxu0 0.0
  %186 = vmatprep.subr.mxu0 0.0
  %187 = vmatpush2.msra.mxu0 0.0
  %188 = vmatprep.subr.mxu0 0.0
  %189 = vmatpush2.msra.mxu0 0.0
  %190 = vmatprep.subr.mxu0 0.0
  %191 = vmatpush2.msra.mxu0 0.0
  %192 = vmatprep.subr.mxu0 0.0
  %193 = vmatpush2.msra.mxu0 0.0
  %194 = vmatprep.subr.mxu0 0.0
  %195 = vmatpush2.msra.mxu0 0.0
  %196 = vmatprep.mubr.f32.mxu0 0.0
  %197 = vmatmul.mubr.f32.gmra.mxu0 %v130
  %v198 = vpop.f32.mrf.mxu0
  %v199 = vadd.f32 %v127, %v198
  %v200 = vpop.f32.mrf.mxu0
  %201 = vdwg.mxu0
  %v202 = vadd.f32 %v115, %v199
  %v203 = vxor.u32 %v202, 2147483648
  %v204 = vmul.f32 %v203, 1.442695
  %v205 = vpow.pop %v204
  %v206 = vadd.f32 %v205, 1.0
  %v207 = vrcp.pop %v206
  %v208 = vmul.f32 1.0, %v207
  %210 = vrot.lane.b32.xlu0 %v199, 64
  %v211 = vpop.permute.xlu0 %210
  %v213 = vmul.f32 %v208, %v211
  %215 = vrot.lane.b32.xlu0 %v213, 64
  %v216 = vpop.permute.xlu0 %215
  %v218 = vadd.f32 %v115, %v216
  %v219 = vtanh.pop %v218
  %v220 = vsub.f32 1.0, %v208
  %222 = vrot.lane.b32.xlu0 %v219, 96
  %v223 = vpop.permute.xlu0 %222
  %v225 = vmul.f32 %v220, %v223
  %226 = vrot.lane.b32.xlu0 %v32, 32
  %v227 = vpop.permute.xlu0 %226
  %v229 = vmul.f32 %v208, %v227
  %v230 = vadd.f32 %v225, %v229
  %232 = vrot.lane.b32.xlu0 %v230, 96
  %v233 = vpop.permute.xlu0 %232
  %235 = vst.msk [vmem:[%s8] sm:$0xff] %vm44, %v233
  %v236 = vld [vmem:[%s6] sm:$0xff]
  %v237 = vld [vmem:[%s6 + $0x8] sm:$0xff]
  %v238 = vld [vmem:[%s6 + $0x10] sm:$0xff]
  %v239 = vld [vmem:[%s6 + $0x18] sm:$0xff]
  %v240 = vld [vmem:[%s7] sm:$0x1]
  %v242 = vlaneseq
  %v243 = vshrl.u32 %v242, 7
  %v244 = vsub.s32 0, %v243
  %v245 = vrot.slane %v240, %v244
  %v247 = vsel %vm44, %v233, 0
  %249 = vmatprep.subr.mxu0 0.0
  %250 = vmatpush1.msra.mxu0 0.0
  %251 = vmatprep.subr.mxu0 0.0
  %252 = vmatpush1.msra.mxu0 0.0
  %253 = vmatprep.subr.mxu0 0.0
  %254 = vmatpush1.msra.mxu0 0.0
  %255 = vmatprep.subr.mxu0 0.0
  %256 = vmatpush1.msra.mxu0 0.0
  %257 = vmatprep.subr.mxu0 0.0
  %258 = vmatpush1.msra.mxu0 0.0
  %259 = vmatprep.subr.mxu0 0.0
  %260 = vmatpush1.msra.mxu0 0.0
  %261 = vmatprep.subr.mxu0 0.0
  %262 = vmatpush1.msra.mxu0 0.0
  %263 = vmatprep.subr.mxu0 0.0
  %264 = vmatpush1.msra.mxu0 0.0
  %265 = vmatprep.subr.mxu0 0.0
  %266 = vmatpush1.msra.mxu0 0.0
  %267 = vmatprep.subr.mxu0 0.0
  %268 = vmatpush1.msra.mxu0 0.0
  %269 = vmatprep.subr.mxu0 0.0
  %270 = vmatpush1.msra.mxu0 0.0
  %271 = vmatprep.subr.mxu0 0.0
  %272 = vmatpush1.msra.mxu0 0.0
  %273 = vmatprep.subr.mxu0 0.0
  %274 = vmatpush1.msra.mxu0 %v239
  %275 = vmatprep.subr.mxu0 0.0
  %276 = vmatpush1.msra.mxu0 %v238
  %277 = vmatprep.subr.mxu0 0.0
  %278 = vmatpush1.msra.mxu0 %v237
  %279 = vmatprep.subr.mxu0 0.0
  %280 = vmatpush1.msra.mxu0 %v236
  %281 = vmatprep.subr.mxu0 0.0
  %282 = vmatpush2.msra.mxu0 0.0
  %283 = vmatprep.subr.mxu0 0.0
  %284 = vmatpush2.msra.mxu0 0.0
  %285 = vmatprep.subr.mxu0 0.0
  %286 = vmatpush2.msra.mxu0 0.0
  %287 = vmatprep.subr.mxu0 0.0
  %288 = vmatpush2.msra.mxu0 0.0
  %289 = vmatprep.subr.mxu0 0.0
  %290 = vmatpush2.msra.mxu0 0.0
  %291 = vmatprep.subr.mxu0 0.0
  %292 = vmatpush2.msra.mxu0 0.0
  %293 = vmatprep.subr.mxu0 0.0
  %294 = vmatpush2.msra.mxu0 0.0
  %295 = vmatprep.subr.mxu0 0.0
  %296 = vmatpush2.msra.mxu0 0.0
  %297 = vmatprep.subr.mxu0 0.0
  %298 = vmatpush2.msra.mxu0 0.0
  %299 = vmatprep.subr.mxu0 0.0
  %300 = vmatpush2.msra.mxu0 0.0
  %301 = vmatprep.subr.mxu0 0.0
  %302 = vmatpush2.msra.mxu0 0.0
  %303 = vmatprep.subr.mxu0 0.0
  %304 = vmatpush2.msra.mxu0 0.0
  %305 = vmatprep.subr.mxu0 0.0
  %306 = vmatpush2.msra.mxu0 0.0
  %307 = vmatprep.subr.mxu0 0.0
  %308 = vmatpush2.msra.mxu0 0.0
  %309 = vmatprep.subr.mxu0 0.0
  %310 = vmatpush2.msra.mxu0 0.0
  %311 = vmatprep.subr.mxu0 0.0
  %312 = vmatpush2.msra.mxu0 0.0
  %313 = vmatprep.mubr.f32.mxu0 0.0
  %314 = vmatmul.mubr.f32.gmra.mxu0 %v247
  %v315 = vpop.f32.mrf.mxu0
  %v316 = vadd.f32 %v245, %v315
  %v317 = vpop.f32.mrf.mxu0
  %318 = vdwg.mxu0
  %319 = vmax.xlane.f32.xlu0 %v316
  %v320 = vpop.xlane.xlu0 %319
  %v321 = vsub.f32 %v316, %v320
  %v322 = vmul.f32 %v321, 1.442695
  %v323 = vpow.pop %v322
  %324 = vadd.xlane.f32.xlu0 %v323
  %v325 = vpop.xlane.xlu0 %324
  %v326 = vrcp.pop %v325
  %v327 = vmul.f32 %v323, %v326
  %328 = vst [vmem:[%s9] sm:$0xff] %v327
  // Predicated region
  $region34: #{graph_explorer_forward.33} parent=0 // pred_check
    _
  $region35: #{graph_explorer_forward.33} parent=0 // pred_check_branch
    %330 = sbr.rel (0) target = $region37
  $region36: #{graph_explorer_forward.33} parent=0 // pred_region
    _
  $region37: #{graph_explorer_forward.33} parent=0 // pred_fallthru
    _
  // Predicated region
  $region38: #{graph_explorer_forward.33} parent=0 // pred_check
    _
  $region39: #{graph_explorer_forward.33} parent=0 // pred_check_branch
    %332 = sbr.rel (0) target = $region41
  $region40: #{graph_explorer_forward.33} parent=0 // pred_region
    _
  $region41: #{graph_explorer_forward.33} parent=0 // pred_fallthru
    _
  // Predicated region
  $region42: #{graph_explorer_forward.33} parent=0 // pred_check
    _
  $region43: #{graph_explorer_forward.33} parent=0 // pred_check_branch
    %334 = sbr.rel (0) target = $region45
  $region44: #{graph_explorer_forward.33} parent=0 // pred_region
    _
  $region45: #{graph_explorer_forward.33} parent=0 // pred_fallthru
    _
  // Predicated region
  $region46: #{graph_explorer_forward.33} parent=0 // pred_check
    _
  $region47: #{graph_explorer_forward.33} parent=0 // pred_check_branch
    %336 = sbr.rel (0) target = $region49
  $region48: #{graph_explorer_forward.33} parent=0 // pred_region
    _
  $region49: #{graph_explorer_forward.33} parent=0 // pred_fallthru
    _

// kernel: graph_explorer_forward.34
$region0: #{graph_explorer_forward.34}
  #allocation0 [shape = 'u32[]', space=smem, size = 0x4, offset = 0x4, fixed_abs, tag = 'smem constant byte address 0x4 - core index']
  #allocation1 [shape = 'u32[144,128]{1,0:T(1,128)}', space=vmem, size = 0x12000, scoped, tag = 'internal scratch']
  %s0 = inlined_call_operand.vmem [shape: f32[8,32], index: 0, kind: input, shape index: {}]
  %s1 = inlined_call_operand.vmem [shape: f32[8,32], index: 1, kind: input, shape index: {}]
  %s2 = inlined_call_operand.vmem [shape: f32[32,96], index: 2, kind: input, shape index: {}]
  %s3 = inlined_call_operand.vmem [shape: f32[32,96], index: 3, kind: input, shape index: {}]
  %s4 = inlined_call_operand.vmem [shape: f32[1,96], index: 4, kind: input, shape index: {}]
  %s5 = inlined_call_operand.vmem [shape: f32[1,96], index: 5, kind: input, shape index: {}]
  %s6 = inlined_call_operand.vmem [shape: f32[32,128], index: 6, kind: input, shape index: {}]
  %s7 = inlined_call_operand.vmem [shape: f32[1,128], index: 7, kind: input, shape index: {}]
  %s8 = inlined_call_operand.hbm [shape: f32[8,32], index: 8, kind: output, shape index: {0}]
  %s9 = inlined_call_operand.vmem [shape: f32[8,128], index: 9, kind: output, shape index: {1}]
  %10 = xla_tuple %s8, %s9
  %s11 = sld [smem:[#allocation0]]
  $region50: #{graph_explorer_forward.34} parent=0
    _
  %s13 = ssub.s32 1, %s11
  %s14 = scalar_select 0, %s13, %s11
  $region1: #{graph_explorer_forward.34} parent=0
    #allocation2 [shape = 'u8[4096]{0}', space=vmem, size = 0x1000, scoped, tag = 'output window, operand 0, single buffered']
    #allocation3 [shape = 's32[1]{0}', space=sflag, size = 0x4, scoped, tag = 'scoped memory for graph_explorer_forward.34']
    %15 = vsyncpa [#allocation3], 0
    // Predicated region
    $region2: #{graph_explorer_forward.34} parent=1 // pred_check
      _
    $region3: #{graph_explorer_forward.34} parent=1 // pred_check_branch
      %17 = sbr.rel (0) target = $region5
    $region4: #{graph_explorer_forward.34} parent=1 // pred_region
      _
    $region5: #{graph_explorer_forward.34} parent=1 // pred_fallthru
      _
    // Predicated region
    $region6: #{graph_explorer_forward.34} parent=1 // pred_check
      _
    $region7: #{graph_explorer_forward.34} parent=1 // pred_check_branch
      %19 = sbr.rel (0) target = $region9
    $region8: #{graph_explorer_forward.34} parent=1 // pred_region
      _
    $region9: #{graph_explorer_forward.34} parent=1 // pred_fallthru
      _
    // Predicated region
    $region10: #{graph_explorer_forward.34} parent=1 // pred_check
      _
    $region11: #{graph_explorer_forward.34} parent=1 // pred_check_branch
      %21 = sbr.rel (0) target = $region13
    $region12: #{graph_explorer_forward.34} parent=1 // pred_region
      _
    $region13: #{graph_explorer_forward.34} parent=1 // pred_fallthru
      _
    // Predicated region
    $region14: #{graph_explorer_forward.34} parent=1 // pred_check
      _
    $region15: #{graph_explorer_forward.34} parent=1 // pred_check_branch
      %23 = sbr.rel (0) target = $region17
    $region16: #{graph_explorer_forward.34} parent=1 // pred_region
      _
    $region17: #{graph_explorer_forward.34} parent=1 // pred_fallthru
      _
    // Predicated region
    $region18: #{graph_explorer_forward.34} parent=1 // pred_check
      _
    $region19: #{graph_explorer_forward.34} parent=1 // pred_check_branch
      %25 = sbr.rel (0) target = $region21
    $region20: #{graph_explorer_forward.34} parent=1 // pred_region
      _
    $region21: #{graph_explorer_forward.34} parent=1 // pred_fallthru
      _
    // Predicated region
    $region22: #{graph_explorer_forward.34} parent=1 // pred_check
      _
    $region23: #{graph_explorer_forward.34} parent=1 // pred_check_branch
      %27 = sbr.rel (0) target = $region25
    $region24: #{graph_explorer_forward.34} parent=1 // pred_region
      _
    $region25: #{graph_explorer_forward.34} parent=1 // pred_fallthru
      _
    // Predicated region
    $region26: #{graph_explorer_forward.34} parent=1 // pred_check
      _
    $region27: #{graph_explorer_forward.34} parent=1 // pred_check_branch
      %29 = sbr.rel (0) target = $region29
    $region28: #{graph_explorer_forward.34} parent=1 // pred_region
      _
    $region29: #{graph_explorer_forward.34} parent=1 // pred_fallthru
      _
    // Predicated region
    $region30: #{graph_explorer_forward.34} parent=1 // pred_check
      _
    $region31: #{graph_explorer_forward.34} parent=1 // pred_check_branch
      %31 = sbr.rel (0) target = $region33
    $region32: #{graph_explorer_forward.34} parent=1 // pred_region
      _
    $region33: #{graph_explorer_forward.34} parent=1 // pred_fallthru
      _
    %v32 = vld [vmem:[%s0] sm:$0xff]
    %v33 = vld [vmem:[%s1] sm:$0xff]
    %v34 = vld [vmem:[%s2] sm:$0xff]
    %v35 = vld [vmem:[%s2 + $0x8] sm:$0xff]
    %v36 = vld [vmem:[%s2 + $0x10] sm:$0xff]
    %v37 = vld [vmem:[%s2 + $0x18] sm:$0xff]
    %v38 = vld [vmem:[%s4] sm:$0x1]
    %v40 = vlaneseq
    %v41 = vshrl.u32 %v40, 7
    %v42 = vsub.s32 0, %v41
    %v43 = vrot.slane %v38, %v42
    %vm45 = vcmask 261120
    %v47 = vsel %vm45, %v32, 0
    %49 = vmatprep.subr.mxu0 0.0
    %50 = vmatpush1.msra.mxu0 0.0
    %51 = vmatprep.subr.mxu0 0.0
    %52 = vmatpush1.msra.mxu0 0.0
    %53 = vmatprep.subr.mxu0 0.0
    %54 = vmatpush1.msra.mxu0 0.0
    %55 = vmatprep.subr.mxu0 0.0
    %56 = vmatpush1.msra.mxu0 0.0
    %57 = vmatprep.subr.mxu0 0.0
    %58 = vmatpush1.msra.mxu0 0.0
    %59 = vmatprep.subr.mxu0 0.0
    %60 = vmatpush1.msra.mxu0 0.0
    %61 = vmatprep.subr.mxu0 0.0
    %62 = vmatpush1.msra.mxu0 0.0
    %63 = vmatprep.subr.mxu0 0.0
    %64 = vmatpush1.msra.mxu0 0.0
    %65 = vmatprep.subr.mxu0 0.0
    %66 = vmatpush1.msra.mxu0 0.0
    %67 = vmatprep.subr.mxu0 0.0
    %68 = vmatpush1.msra.mxu0 0.0
    %69 = vmatprep.subr.mxu0 0.0
    %70 = vmatpush1.msra.mxu0 0.0
    %71 = vmatprep.subr.mxu0 0.0
    %72 = vmatpush1.msra.mxu0 0.0
    %73 = vmatprep.subr.mxu0 0.0
    %74 = vmatpush1.msra.mxu0 %v37
    %75 = vmatprep.subr.mxu0 0.0
    %76 = vmatpush1.msra.mxu0 %v36
    %77 = vmatprep.subr.mxu0 0.0
    %78 = vmatpush1.msra.mxu0 %v35
    %79 = vmatprep.subr.mxu0 0.0
    %80 = vmatpush1.msra.mxu0 %v34
    %81 = vmatprep.subr.mxu0 0.0
    %82 = vmatpush2.msra.mxu0 0.0
    %83 = vmatprep.subr.mxu0 0.0
    %84 = vmatpush2.msra.mxu0 0.0
    %85 = vmatprep.subr.mxu0 0.0
    %86 = vmatpush2.msra.mxu0 0.0
    %87 = vmatprep.subr.mxu0 0.0
    %88 = vmatpush2.msra.mxu0 0.0
    %89 = vmatprep.subr.mxu0 0.0
    %90 = vmatpush2.msra.mxu0 0.0
    %91 = vmatprep.subr.mxu0 0.0
    %92 = vmatpush2.msra.mxu0 0.0
    %93 = vmatprep.subr.mxu0 0.0
    %94 = vmatpush2.msra.mxu0 0.0
    %95 = vmatprep.subr.mxu0 0.0
    %96 = vmatpush2.msra.mxu0 0.0
    %97 = vmatprep.subr.mxu0 0.0
    %98 = vmatpush2.msra.mxu0 0.0
    %99 = vmatprep.subr.mxu0 0.0
    %100 = vmatpush2.msra.mxu0 0.0
    %101 = vmatprep.subr.mxu0 0.0
    %102 = vmatpush2.msra.mxu0 0.0
    %103 = vmatprep.subr.mxu0 0.0
    %104 = vmatpush2.msra.mxu0 0.0
    %105 = vmatprep.subr.mxu0 0.0
    %106 = vmatpush2.msra.mxu0 0.0
    %107 = vmatprep.subr.mxu0 0.0
    %108 = vmatpush2.msra.mxu0 0.0
    %109 = vmatprep.subr.mxu0 0.0
    %110 = vmatpush2.msra.mxu0 0.0
    %111 = vmatprep.subr.mxu0 0.0
    %112 = vmatpush2.msra.mxu0 0.0
    %113 = vmatprep.mubr.f32.mxu0 0.0
    %114 = vmatmul.mubr.f32.gmra.mxu0 %v47
    %v115 = vpop.f32.mrf.mxu0
    %v116 = vadd.f32 %v43, %v115
    %v117 = vpop.f32.mrf.mxu0
    %118 = vdwg.mxu0
    %v119 = vld [vmem:[%s3] sm:$0xff]
    %v120 = vld [vmem:[%s3 + $0x8] sm:$0xff]
    %v121 = vld [vmem:[%s3 + $0x10] sm:$0xff]
    %v122 = vld [vmem:[%s3 + $0x18] sm:$0xff]
    %v123 = vld [vmem:[%s5] sm:$0x1]
    %v125 = vlaneseq
    %v126 = vshrl.u32 %v125, 7
    %v127 = vsub.s32 0, %v126
    %v128 = vrot.slane %v123, %v127
    %v131 = vsel %vm45, %v33, 0
    %133 = vmatprep.subr.mxu0 0.0
    %134 = vmatpush1.msra.mxu0 0.0
    %135 = vmatprep.subr.mxu0 0.0
    %136 = vmatpush1.msra.mxu0 0.0
    %137 = vmatprep.subr.mxu0 0.0
    %138 = vmatpush1.msra.mxu0 0.0
    %139 = vmatprep.subr.mxu0 0.0
    %140 = vmatpush1.msra.mxu0 0.0
    %141 = vmatprep.subr.mxu0 0.0
    %142 = vmatpush1.msra.mxu0 0.0
    %143 = vmatprep.subr.mxu0 0.0
    %144 = vmatpush1.msra.mxu0 0.0
    %145 = vmatprep.subr.mxu0 0.0
    %146 = vmatpush1.msra.mxu0 0.0
    %147 = vmatprep.subr.mxu0 0.0
    %148 = vmatpush1.msra.mxu0 0.0
    %149 = vmatprep.subr.mxu0 0.0
    %150 = vmatpush1.msra.mxu0 0.0
    %151 = vmatprep.subr.mxu0 0.0
    %152 = vmatpush1.msra.mxu0 0.0
    %153 = vmatprep.subr.mxu0 0.0
    %154 = vmatpush1.msra.mxu0 0.0
    %155 = vmatprep.subr.mxu0 0.0
    %156 = vmatpush1.msra.mxu0 0.0
    %157 = vmatprep.subr.mxu0 0.0
    %158 = vmatpush1.msra.mxu0 %v122
    %159 = vmatprep.subr.mxu0 0.0
    %160 = vmatpush1.msra.mxu0 %v121
    %161 = vmatprep.subr.mxu0 0.0
    %162 = vmatpush1.msra.mxu0 %v120
    %163 = vmatprep.subr.mxu0 0.0
    %164 = vmatpush1.msra.mxu0 %v119
    %165 = vmatprep.subr.mxu0 0.0
    %166 = vmatpush2.msra.mxu0 0.0
    %167 = vmatprep.subr.mxu0 0.0
    %168 = vmatpush2.msra.mxu0 0.0
    %169 = vmatprep.subr.mxu0 0.0
    %170 = vmatpush2.msra.mxu0 0.0
    %171 = vmatprep.subr.mxu0 0.0
    %172 = vmatpush2.msra.mxu0 0.0
    %173 = vmatprep.subr.mxu0 0.0
    %174 = vmatpush2.msra.mxu0 0.0
    %175 = vmatprep.subr.mxu0 0.0
    %176 = vmatpush2.msra.mxu0 0.0
    %177 = vmatprep.subr.mxu0 0.0
    %178 = vmatpush2.msra.mxu0 0.0
    %179 = vmatprep.subr.mxu0 0.0
    %180 = vmatpush2.msra.mxu0 0.0
    %181 = vmatprep.subr.mxu0 0.0
    %182 = vmatpush2.msra.mxu0 0.0
    %183 = vmatprep.subr.mxu0 0.0
    %184 = vmatpush2.msra.mxu0 0.0
    %185 = vmatprep.subr.mxu0 0.0
    %186 = vmatpush2.msra.mxu0 0.0
    %187 = vmatprep.subr.mxu0 0.0
    %188 = vmatpush2.msra.mxu0 0.0
    %189 = vmatprep.subr.mxu0 0.0
    %190 = vmatpush2.msra.mxu0 0.0
    %191 = vmatprep.subr.mxu0 0.0
    %192 = vmatpush2.msra.mxu0 0.0
    %193 = vmatprep.subr.mxu0 0.0
    %194 = vmatpush2.msra.mxu0 0.0
    %195 = vmatprep.subr.mxu0 0.0
    %196 = vmatpush2.msra.mxu0 0.0
    %197 = vmatprep.mubr.f32.mxu0 0.0
    %198 = vmatmul.mubr.f32.gmra.mxu0 %v131
    %v199 = vpop.f32.mrf.mxu0
    %v200 = vadd.f32 %v128, %v199
    %v201 = vpop.f32.mrf.mxu0
    %202 = vdwg.mxu0
    %v203 = vadd.f32 %v116, %v200
    %v204 = vxor.u32 %v203, 2147483648
    %v205 = vmul.f32 %v204, 1.442695
    %v206 = vpow.pop %v205
    %v207 = vadd.f32 %v206, 1.0
    %v208 = vrcp.pop %v207
    %v209 = vmul.f32 1.0, %v208
    %211 = vrot.lane.b32.xlu0 %v200, 64
    %v212 = vpop.permute.xlu0 %211
    %v214 = vmul.f32 %v209, %v212
    %216 = vrot.lane.b32.xlu0 %v214, 64
    %v217 = vpop.permute.xlu0 %216
    %v219 = vadd.f32 %v116, %v217
    %v220 = vtanh.pop %v219
    %v221 = vsub.f32 1.0, %v209
    %223 = vrot.lane.b32.xlu0 %v220, 96
    %v224 = vpop.permute.xlu0 %223
    %v226 = vmul.f32 %v221, %v224
    %227 = vrot.lane.b32.xlu0 %v33, 32
    %v228 = vpop.permute.xlu0 %227
    %v230 = vmul.f32 %v209, %v228
    %v231 = vadd.f32 %v226, %v230
    %233 = vrot.lane.b32.xlu0 %v231, 96
    %v234 = vpop.permute.xlu0 %233
    %236 = vst.msk [vmem:[#allocation2] sm:$0xff] %vm45, %v234
    %v237 = vld [vmem:[%s6] sm:$0xff]
    %v238 = vld [vmem:[%s6 + $0x8] sm:$0xff]
    %v239 = vld [vmem:[%s6 + $0x10] sm:$0xff]
    %v240 = vld [vmem:[%s6 + $0x18] sm:$0xff]
    %v241 = vld [vmem:[%s7] sm:$0x1]
    %v243 = vlaneseq
    %v244 = vshrl.u32 %v243, 7
    %v245 = vsub.s32 0, %v244
    %v246 = vrot.slane %v241, %v245
    %v248 = vsel %vm45, %v234, 0
    %250 = vmatprep.subr.mxu0 0.0
    %251 = vmatpush1.msra.mxu0 0.0
    %252 = vmatprep.subr.mxu0 0.0
    %253 = vmatpush1.msra.mxu0 0.0
    %254 = vmatprep.subr.mxu0 0.0
    %255 = vmatpush1.msra.mxu0 0.0
    %256 = vmatprep.subr.mxu0 0.0
    %257 = vmatpush1.msra.mxu0 0.0
    %258 = vmatprep.subr.mxu0 0.0
    %259 = vmatpush1.msra.mxu0 0.0
    %260 = vmatprep.subr.mxu0 0.0
    %261 = vmatpush1.msra.mxu0 0.0
    %262 = vmatprep.subr.mxu0 0.0
    %263 = vmatpush1.msra.mxu0 0.0
    %264 = vmatprep.subr.mxu0 0.0
    %265 = vmatpush1.msra.mxu0 0.0
    %266 = vmatprep.subr.mxu0 0.0
    %267 = vmatpush1.msra.mxu0 0.0
    %268 = vmatprep.subr.mxu0 0.0
    %269 = vmatpush1.msra.mxu0 0.0
    %270 = vmatprep.subr.mxu0 0.0
    %271 = vmatpush1.msra.mxu0 0.0
    %272 = vmatprep.subr.mxu0 0.0
    %273 = vmatpush1.msra.mxu0 0.0
    %274 = vmatprep.subr.mxu0 0.0
    %275 = vmatpush1.msra.mxu0 %v240
    %276 = vmatprep.subr.mxu0 0.0
    %277 = vmatpush1.msra.mxu0 %v239
    %278 = vmatprep.subr.mxu0 0.0
    %279 = vmatpush1.msra.mxu0 %v238
    %280 = vmatprep.subr.mxu0 0.0
    %281 = vmatpush1.msra.mxu0 %v237
    %282 = vmatprep.subr.mxu0 0.0
    %283 = vmatpush2.msra.mxu0 0.0
    %284 = vmatprep.subr.mxu0 0.0
    %285 = vmatpush2.msra.mxu0 0.0
    %286 = vmatprep.subr.mxu0 0.0
    %287 = vmatpush2.msra.mxu0 0.0
    %288 = vmatprep.subr.mxu0 0.0
    %289 = vmatpush2.msra.mxu0 0.0
    %290 = vmatprep.subr.mxu0 0.0
    %291 = vmatpush2.msra.mxu0 0.0
    %292 = vmatprep.subr.mxu0 0.0
    %293 = vmatpush2.msra.mxu0 0.0
    %294 = vmatprep.subr.mxu0 0.0
    %295 = vmatpush2.msra.mxu0 0.0
    %296 = vmatprep.subr.mxu0 0.0
    %297 = vmatpush2.msra.mxu0 0.0
    %298 = vmatprep.subr.mxu0 0.0
    %299 = vmatpush2.msra.mxu0 0.0
    %300 = vmatprep.subr.mxu0 0.0
    %301 = vmatpush2.msra.mxu0 0.0
    %302 = vmatprep.subr.mxu0 0.0
    %303 = vmatpush2.msra.mxu0 0.0
    %304 = vmatprep.subr.mxu0 0.0
    %305 = vmatpush2.msra.mxu0 0.0
    %306 = vmatprep.subr.mxu0 0.0
    %307 = vmatpush2.msra.mxu0 0.0
    %308 = vmatprep.subr.mxu0 0.0
    %309 = vmatpush2.msra.mxu0 0.0
    %310 = vmatprep.subr.mxu0 0.0
    %311 = vmatpush2.msra.mxu0 0.0
    %312 = vmatprep.subr.mxu0 0.0
    %313 = vmatpush2.msra.mxu0 0.0
    %314 = vmatprep.mubr.f32.mxu0 0.0
    %315 = vmatmul.mubr.f32.gmra.mxu0 %v248
    %v316 = vpop.f32.mrf.mxu0
    %v317 = vadd.f32 %v246, %v316
    %v318 = vpop.f32.mrf.mxu0
    %319 = vdwg.mxu0
    %320 = vmax.xlane.f32.xlu0 %v317
    %v321 = vpop.xlane.xlu0 %320
    %v322 = vsub.f32 %v317, %v321
    %v323 = vmul.f32 %v322, 1.442695
    %v324 = vpow.pop %v323
    %325 = vadd.xlane.f32.xlu0 %v324
    %v326 = vpop.xlane.xlu0 %325
    %v327 = vrcp.pop %v326
    %v328 = vmul.f32 %v324, %v327
    %329 = vst [vmem:[%s9] sm:$0xff] %v328
    // Predicated region
    $region34: #{graph_explorer_forward.34} parent=1 // pred_check
      _
    $region35: #{graph_explorer_forward.34} parent=1 // pred_check_branch
      %331 = sbr.rel (0) target = $region37
    $region36: #{graph_explorer_forward.34} parent=1 // pred_region
      %s333 = ssub.s32 128, 128
      %334 = vsyncadd [#allocation3], %s333
      %s336 = sshll.u32 [#allocation2], 4
      %s337 = int_to_ptr.vmem [resolvable:$true] %s336
      %339 = dma.vmem_to_hbm [thread:$0]  %s337, 128, %s8, [#allocation3]
    $region37: #{graph_explorer_forward.34} parent=1 // pred_fallthru
      _
    // Predicated region
    $region38: #{graph_explorer_forward.34} parent=1 // pred_check
      _
    $region39: #{graph_explorer_forward.34} parent=1 // pred_check_branch
      %341 = sbr.rel (0) target = $region41
    $region40: #{graph_explorer_forward.34} parent=1 // pred_region
      _
    $region41: #{graph_explorer_forward.34} parent=1 // pred_fallthru
      _
    // Predicated region
    $region42: #{graph_explorer_forward.34} parent=1 // pred_check
      _
    $region43: #{graph_explorer_forward.34} parent=1 // pred_check_branch
      %343 = sbr.rel (0) target = $region45
    $region44: #{graph_explorer_forward.34} parent=1 // pred_region
      %344 = dma.done [#allocation3], 128
    $region45: #{graph_explorer_forward.34} parent=1 // pred_fallthru
      _
    // Predicated region
    $region46: #{graph_explorer_forward.34} parent=1 // pred_check
      _
    $region47: #{graph_explorer_forward.34} parent=1 // pred_check_branch
      %346 = sbr.rel (0) target = $region49
    $region48: #{graph_explorer_forward.34} parent=1 // pred_region
      _
    $region49: #{graph_explorer_forward.34} parent=1 // pred_fallthru
      _
    %347 = vsyncpa [#allocation3], 1

// kernel: graph_explorer_forward.53
$region0: #{graph_explorer_forward.53}
  #allocation0 [shape = 'u32[]', space=smem, size = 0x4, offset = 0x4, fixed_abs, tag = 'smem constant byte address 0x4 - core index']
  #allocation1 [shape = 'u32[144,128]{1,0:T(1,128)}', space=vmem, size = 0x12000, scoped, tag = 'internal scratch']
  %s0 = inlined_call_operand.vmem [shape: f32[8,32], index: 0, kind: input, shape index: {}]
  %s1 = inlined_call_operand.vmem [shape: f32[8,12,32], index: 1, kind: input, shape index: {}]
  %s2 = inlined_call_operand.vmem [shape: f32[8,12], index: 2, kind: input, shape index: {}]
  %s3 = inlined_call_operand.vmem [shape: f32[32,32], index: 3, kind: input, shape index: {}]
  %s4 = inlined_call_operand.vmem [shape: f32[32,64], index: 4, kind: input, shape index: {}]
  %s5 = inlined_call_operand.vmem [shape: f32[32,32], index: 5, kind: input, shape index: {}]
  %s6 = inlined_call_operand.vmem [shape: f32[32,128], index: 6, kind: input, shape index: {}]
  %s7 = inlined_call_operand.vmem [shape: f32[1,128], index: 7, kind: input, shape index: {}]
  %s8 = inlined_call_operand.vmem [shape: f32[8,32], index: 8, kind: output, shape index: {0}]
  %s9 = inlined_call_operand.hbm [shape: f32[8,128], index: 9, kind: output, shape index: {1}]
  %10 = xla_tuple %s8, %s9
  %s11 = sld [smem:[#allocation0]]
  $region50: #{graph_explorer_forward.53} parent=0
    _
  %s13 = ssub.s32 1, %s11
  %s14 = scalar_select 0, %s13, %s11
  $region1: #{graph_explorer_forward.53} parent=0
    #allocation2 [shape = 'u8[4096]{0}', space=vmem, size = 0x1000, scoped, tag = 'output window, operand 1, single buffered']
    #allocation3 [shape = 's32[1]{0}', space=sflag, size = 0x4, scoped, tag = 'scoped memory for graph_explorer_forward.53']
    %15 = vsyncpa [#allocation3], 0
    // Predicated region
    $region2: #{graph_explorer_forward.53} parent=1 // pred_check
      _
    $region3: #{graph_explorer_forward.53} parent=1 // pred_check_branch
      %17 = sbr.rel (0) target = $region5
    $region4: #{graph_explorer_forward.53} parent=1 // pred_region
      _
    $region5: #{graph_explorer_forward.53} parent=1 // pred_fallthru
      _
    // Predicated region
    $region6: #{graph_explorer_forward.53} parent=1 // pred_check
      _
    $region7: #{graph_explorer_forward.53} parent=1 // pred_check_branch
      %19 = sbr.rel (0) target = $region9
    $region8: #{graph_explorer_forward.53} parent=1 // pred_region
      _
    $region9: #{graph_explorer_forward.53} parent=1 // pred_fallthru
      _
    // Predicated region
    $region10: #{graph_explorer_forward.53} parent=1 // pred_check
      _
    $region11: #{graph_explorer_forward.53} parent=1 // pred_check_branch
      %21 = sbr.rel (0) target = $region13
    $region12: #{graph_explorer_forward.53} parent=1 // pred_region
      _
    $region13: #{graph_explorer_forward.53} parent=1 // pred_fallthru
      _
    // Predicated region
    $region14: #{graph_explorer_forward.53} parent=1 // pred_check
      _
    $region15: #{graph_explorer_forward.53} parent=1 // pred_check_branch
      %23 = sbr.rel (0) target = $region17
    $region16: #{graph_explorer_forward.53} parent=1 // pred_region
      _
    $region17: #{graph_explorer_forward.53} parent=1 // pred_fallthru
      _
    // Predicated region
    $region18: #{graph_explorer_forward.53} parent=1 // pred_check
      _
    $region19: #{graph_explorer_forward.53} parent=1 // pred_check_branch
      %25 = sbr.rel (0) target = $region21
    $region20: #{graph_explorer_forward.53} parent=1 // pred_region
      _
    $region21: #{graph_explorer_forward.53} parent=1 // pred_fallthru
      _
    // Predicated region
    $region22: #{graph_explorer_forward.53} parent=1 // pred_check
      _
    $region23: #{graph_explorer_forward.53} parent=1 // pred_check_branch
      %27 = sbr.rel (0) target = $region25
    $region24: #{graph_explorer_forward.53} parent=1 // pred_region
      _
    $region25: #{graph_explorer_forward.53} parent=1 // pred_fallthru
      _
    // Predicated region
    $region26: #{graph_explorer_forward.53} parent=1 // pred_check
      _
    $region27: #{graph_explorer_forward.53} parent=1 // pred_check_branch
      %29 = sbr.rel (0) target = $region29
    $region28: #{graph_explorer_forward.53} parent=1 // pred_region
      _
    $region29: #{graph_explorer_forward.53} parent=1 // pred_fallthru
      _
    // Predicated region
    $region30: #{graph_explorer_forward.53} parent=1 // pred_check
      _
    $region31: #{graph_explorer_forward.53} parent=1 // pred_check_branch
      %31 = sbr.rel (0) target = $region33
    $region32: #{graph_explorer_forward.53} parent=1 // pred_region
      _
    $region33: #{graph_explorer_forward.53} parent=1 // pred_fallthru
      _
    %v32 = vld [vmem:[%s0] sm:$0xff]
    %v33 = vld [vmem:[%s1] sm:$0xff]
    %v34 = vld [vmem:[%s1 + $0x8] sm:$0xf]
    %v35 = vld [vmem:[%s1 + $0x10] sm:$0xff]
    %v36 = vld [vmem:[%s1 + $0x18] sm:$0xf]
    %v37 = vld [vmem:[%s1 + $0x20] sm:$0xff]
    %v38 = vld [vmem:[%s1 + $0x28] sm:$0xf]
    %v39 = vld [vmem:[%s1 + $0x30] sm:$0xff]
    %v40 = vld [vmem:[%s1 + $0x38] sm:$0xf]
    %v41 = vld [vmem:[%s1 + $0x40] sm:$0xff]
    %v42 = vld [vmem:[%s1 + $0x48] sm:$0xf]
    %v43 = vld [vmem:[%s1 + $0x50] sm:$0xff]
    %v44 = vld [vmem:[%s1 + $0x58] sm:$0xf]
    %v45 = vld [vmem:[%s1 + $0x60] sm:$0xff]
    %v46 = vld [vmem:[%s1 + $0x68] sm:$0xf]
    %v47 = vld [vmem:[%s1 + $0x70] sm:$0xff]
    %v48 = vld [vmem:[%s1 + $0x78] sm:$0xf]
    %v49 = vld [vmem:[%s3] sm:$0xff]
    %v50 = vld [vmem:[%s3 + $0x8] sm:$0xff]
    %v51 = vld [vmem:[%s3 + $0x10] sm:$0xff]
    %v52 = vld [vmem:[%s3 + $0x18] sm:$0xff]
    %vm53 = vcmask 261120
    %v55 = vsel %vm53, %v32, 0
    %57 = vmatprep.subr.mxu0 0.0
    %58 = vmatpush1.msra.mxu0 0.0
    %59 = vmatprep.subr.mxu0 0.0
    %60 = vmatpush1.msra.mxu0 0.0
    %61 = vmatprep.subr.mxu0 0.0
    %62 = vmatpush1.msra.mxu0 0.0
    %63 = vmatprep.subr.mxu0 0.0
    %64 = vmatpush1.msra.mxu0 0.0
    %65 = vmatprep.subr.mxu0 0.0
    %66 = vmatpush1.msra.mxu0 0.0
    %67 = vmatprep.subr.mxu0 0.0
    %68 = vmatpush1.msra.mxu0 0.0
    %69 = vmatprep.subr.mxu0 0.0
    %70 = vmatpush1.msra.mxu0 0.0
    %71 = vmatprep.subr.mxu0 0.0
    %72 = vmatpush1.msra.mxu0 0.0
    %73 = vmatprep.subr.mxu0 0.0
    %74 = vmatpush1.msra.mxu0 0.0
    %75 = vmatprep.subr.mxu0 0.0
    %76 = vmatpush1.msra.mxu0 0.0
    %77 = vmatprep.subr.mxu0 0.0
    %78 = vmatpush1.msra.mxu0 0.0
    %79 = vmatprep.subr.mxu0 0.0
    %80 = vmatpush1.msra.mxu0 0.0
    %81 = vmatprep.subr.mxu0 0.0
    %82 = vmatpush1.msra.mxu0 %v52
    %83 = vmatprep.subr.mxu0 0.0
    %84 = vmatpush1.msra.mxu0 %v51
    %85 = vmatprep.subr.mxu0 0.0
    %86 = vmatpush1.msra.mxu0 %v50
    %87 = vmatprep.subr.mxu0 0.0
    %88 = vmatpush1.msra.mxu0 %v49
    %89 = vmatprep.subr.mxu0 0.0
    %90 = vmatpush2.msra.mxu0 0.0
    %91 = vmatprep.subr.mxu0 0.0
    %92 = vmatpush2.msra.mxu0 0.0
    %93 = vmatprep.subr.mxu0 0.0
    %94 = vmatpush2.msra.mxu0 0.0
    %95 = vmatprep.subr.mxu0 0.0
    %96 = vmatpush2.msra.mxu0 0.0
    %97 = vmatprep.subr.mxu0 0.0
    %98 = vmatpush2.msra.mxu0 0.0
    %99 = vmatprep.subr.mxu0 0.0
    %100 = vmatpush2.msra.mxu0 0.0
    %101 = vmatprep.subr.mxu0 0.0
    %102 = vmatpush2.msra.mxu0 0.0
    %103 = vmatprep.subr.mxu0 0.0
    %104 = vmatpush2.msra.mxu0 0.0
    %105 = vmatprep.subr.mxu0 0.0
    %106 = vmatpush2.msra.mxu0 0.0
    %107 = vmatprep.subr.mxu0 0.0
    %108 = vmatpush2.msra.mxu0 0.0
    %109 = vmatprep.subr.mxu0 0.0
    %110 = vmatpush2.msra.mxu0 0.0
    %111 = vmatprep.subr.mxu0 0.0
    %112 = vmatpush2.msra.mxu0 0.0
    %113 = vmatprep.subr.mxu0 0.0
    %114 = vmatpush2.msra.mxu0 0.0
    %115 = vmatprep.subr.mxu0 0.0
    %116 = vmatpush2.msra.mxu0 0.0
    %117 = vmatprep.subr.mxu0 0.0
    %118 = vmatpush2.msra.mxu0 0.0
    %119 = vmatprep.subr.mxu0 0.0
    %120 = vmatpush2.msra.mxu0 0.0
    %121 = vmatprep.mubr.f32.mxu0 0.0
    %122 = vmatmul.mubr.f32.gmra.mxu0 %v55
    %v123 = vpop.f32.mrf.mxu0
    %v124 = vadd.f32 0.0, %v123
    %v125 = vpop.f32.mrf.mxu0
    %126 = vdwg.mxu0
    %v127 = vld [vmem:[%s4] sm:$0xff]
    %v128 = vld [vmem:[%s4 + $0x8] sm:$0xff]
    %v129 = vld [vmem:[%s4 + $0x10] sm:$0xff]
    %v130 = vld [vmem:[%s4 + $0x18] sm:$0xff]
    %v147 = vcombine.high %v33, %v33
    %v148 = vcombine.high %v35, %v35
    %v149 = vcombine.high %v37, %v37
    %v150 = vcombine.high %v39, %v39
    %v151 = vcombine.high %v41, %v41
    %v152 = vcombine.high %v43, %v43
    %v153 = vcombine.high %v45, %v45
    %v154 = vcombine.high %v47, %v47
    %v155 = vcombine.low %v33, %v147
    %v156 = vcombine.low %v34, %v35
    %v157 = vcombine.low %v148, %v36
    %v158 = vcombine.low %v37, %v149
    %v159 = vcombine.low %v38, %v39
    %v160 = vcombine.low %v150, %v40
    %v161 = vcombine.low %v41, %v151
    %v162 = vcombine.low %v42, %v43
    %v163 = vcombine.low %v152, %v44
    %v164 = vcombine.low %v45, %v153
    %v165 = vcombine.low %v46, %v47
    %v166 = vcombine.low %v154, %v48
    %v167 = vsel %vm53, %v155, 0
    %v169 = vsel %vm53, %v156, 0
    %v171 = vsel %vm53, %v157, 0
    %v173 = vsel %vm53, %v158, 0
    %v175 = vsel %vm53, %v159, 0
    %v177 = vsel %vm53, %v160, 0
    %v179 = vsel %vm53, %v161, 0
    %v181 = vsel %vm53, %v162, 0
    %v183 = vsel %vm53, %v163, 0
    %v185 = vsel %vm53, %v164, 0
    %v187 = vsel %vm53, %v165, 0
    %v189 = vsel %vm53, %v166, 0
    %191 = vmatprep.subr.mxu0 0.0
    %192 = vmatpush1.msra.mxu0 0.0
    %193 = vmatprep.subr.mxu0 0.0
    %194 = vmatpush1.msra.mxu0 0.0
    %195 = vmatprep.subr.mxu0 0.0
    %196 = vmatpush1.msra.mxu0 0.0
    %197 = vmatprep.subr.mxu0 0.0
    %198 = vmatpush1.msra.mxu0 0.0
    %199 = vmatprep.subr.mxu0 0.0
    %200 = vmatpush1.msra.mxu0 0.0
    %201 = vmatprep.subr.mxu0 0.0
    %202 = vmatpush1.msra.mxu0 0.0
    %203 = vmatprep.subr.mxu0 0.0
    %204 = vmatpush1.msra.mxu0 0.0
    %205 = vmatprep.subr.mxu0 0.0
    %206 = vmatpush1.msra.mxu0 0.0
    %207 = vmatprep.subr.mxu0 0.0
    %208 = vmatpush1.msra.mxu0 0.0
    %209 = vmatprep.subr.mxu0 0.0
    %210 = vmatpush1.msra.mxu0 0.0
    %211 = vmatprep.subr.mxu0 0.0
    %212 = vmatpush1.msra.mxu0 0.0
    %213 = vmatprep.subr.mxu0 0.0
    %214 = vmatpush1.msra.mxu0 0.0
    %215 = vmatprep.subr.mxu0 0.0
    %216 = vmatpush1.msra.mxu0 %v130
    %217 = vmatprep.subr.mxu0 0.0
    %218 = vmatpush1.msra.mxu0 %v129
    %219 = vmatprep.subr.mxu0 0.0
    %220 = vmatpush1.msra.mxu0 %v128
    %221 = vmatprep.subr.mxu0 0.0
    %222 = vmatpush1.msra.mxu0 %v127
    %223 = vmatprep.subr.mxu0 0.0
    %224 = vmatpush2.msra.mxu0 0.0
    %225 = vmatprep.subr.mxu0 0.0
    %226 = vmatpush2.msra.mxu0 0.0
    %227 = vmatprep.subr.mxu0 0.0
    %228 = vmatpush2.msra.mxu0 0.0
    %229 = vmatprep.subr.mxu0 0.0
    %230 = vmatpush2.msra.mxu0 0.0
    %231 = vmatprep.subr.mxu0 0.0
    %232 = vmatpush2.msra.mxu0 0.0
    %233 = vmatprep.subr.mxu0 0.0
    %234 = vmatpush2.msra.mxu0 0.0
    %235 = vmatprep.subr.mxu0 0.0
    %236 = vmatpush2.msra.mxu0 0.0
    %237 = vmatprep.subr.mxu0 0.0
    %238 = vmatpush2.msra.mxu0 0.0
    %239 = vmatprep.subr.mxu0 0.0
    %240 = vmatpush2.msra.mxu0 0.0
    %241 = vmatprep.subr.mxu0 0.0
    %242 = vmatpush2.msra.mxu0 0.0
    %243 = vmatprep.subr.mxu0 0.0
    %244 = vmatpush2.msra.mxu0 0.0
    %245 = vmatprep.subr.mxu0 0.0
    %246 = vmatpush2.msra.mxu0 0.0
    %247 = vmatprep.subr.mxu0 0.0
    %248 = vmatpush2.msra.mxu0 0.0
    %249 = vmatprep.subr.mxu0 0.0
    %250 = vmatpush2.msra.mxu0 0.0
    %251 = vmatprep.subr.mxu0 0.0
    %252 = vmatpush2.msra.mxu0 0.0
    %253 = vmatprep.subr.mxu0 0.0
    %254 = vmatpush2.msra.mxu0 0.0
    %255 = vmatprep.mubr.f32.mxu0 0.0
    %256 = vmatmul.mubr.f32.gmra.mxu0 %v167
    %v257 = vpop.f32.mrf.mxu0
    %v258 = vadd.f32 0.0, %v257
    %v259 = vpop.f32.mrf.mxu0
    %260 = vmatprep.mubr.f32.mxu0 0.0
    %261 = vmatmul.mubr.f32.gmra.mxu0 %v169
    %v262 = vpop.f32.mrf.mxu0
    %v263 = vadd.f32 0.0, %v262
    %v264 = vpop.f32.mrf.mxu0
    %265 = vmatprep.mubr.f32.mxu0 0.0
    %266 = vmatmul.mubr.f32.gmra.mxu0 %v171
    %v267 = vpop.f32.mrf.mxu0
    %v268 = vadd.f32 0.0, %v267
    %v269 = vpop.f32.mrf.mxu0
    %270 = vmatprep.mubr.f32.mxu0 0.0
    %271 = vmatmul.mubr.f32.gmra.mxu0 %v173
    %v272 = vpop.f32.mrf.mxu0
    %v273 = vadd.f32 0.0, %v272
    %v274 = vpop.f32.mrf.mxu0
    %275 = vmatprep.mubr.f32.mxu0 0.0
    %276 = vmatmul.mubr.f32.gmra.mxu0 %v175
    %v277 = vpop.f32.mrf.mxu0
    %v278 = vadd.f32 0.0, %v277
    %v279 = vpop.f32.mrf.mxu0
    %280 = vmatprep.mubr.f32.mxu0 0.0
    %281 = vmatmul.mubr.f32.gmra.mxu0 %v177
    %v282 = vpop.f32.mrf.mxu0
    %v283 = vadd.f32 0.0, %v282
    %v284 = vpop.f32.mrf.mxu0
    %285 = vmatprep.mubr.f32.mxu0 0.0
    %286 = vmatmul.mubr.f32.gmra.mxu0 %v179
    %v287 = vpop.f32.mrf.mxu0
    %v288 = vadd.f32 0.0, %v287
    %v289 = vpop.f32.mrf.mxu0
    %290 = vmatprep.mubr.f32.mxu0 0.0
    %291 = vmatmul.mubr.f32.gmra.mxu0 %v181
    %v292 = vpop.f32.mrf.mxu0
    %v293 = vadd.f32 0.0, %v292
    %v294 = vpop.f32.mrf.mxu0
    %295 = vmatprep.mubr.f32.mxu0 0.0
    %296 = vmatmul.mubr.f32.gmra.mxu0 %v183
    %v297 = vpop.f32.mrf.mxu0
    %v298 = vadd.f32 0.0, %v297
    %v299 = vpop.f32.mrf.mxu0
    %300 = vmatprep.mubr.f32.mxu0 0.0
    %301 = vmatmul.mubr.f32.gmra.mxu0 %v185
    %v302 = vpop.f32.mrf.mxu0
    %v303 = vadd.f32 0.0, %v302
    %v304 = vpop.f32.mrf.mxu0
    %305 = vmatprep.mubr.f32.mxu0 0.0
    %306 = vmatmul.mubr.f32.gmra.mxu0 %v187
    %v307 = vpop.f32.mrf.mxu0
    %v308 = vadd.f32 0.0, %v307
    %v309 = vpop.f32.mrf.mxu0
    %310 = vmatprep.mubr.f32.mxu0 0.0
    %311 = vmatmul.mubr.f32.gmra.mxu0 %v189
    %v312 = vpop.f32.mrf.mxu0
    %v313 = vadd.f32 0.0, %v312
    %v314 = vpop.f32.mrf.mxu0
    %315 = vdwg.mxu0
    %v328 = vcombine.high %v258, %v258
    %v329 = vcombine.high %v263, %v263
    %v330 = vcombine.high %v268, %v268
    %v331 = vcombine.high %v273, %v273
    %v332 = vcombine.high %v278, %v278
    %v333 = vcombine.high %v283, %v283
    %v334 = vcombine.high %v288, %v288
    %v335 = vcombine.high %v293, %v293
    %v336 = vcombine.high %v298, %v298
    %v337 = vcombine.high %v303, %v303
    %v338 = vcombine.high %v308, %v308
    %v339 = vcombine.high %v313, %v313
    %v345 = vcombine.high %v124, %v124
    %v347 = vunpack.c.l.s4 1966171168
    %v348 = vunpack.c.0.s8 %v347
    %v349 = vlaneseq
    %v350 = vshrl.u32 %v349, 7
    %v351 = vsub.s32 %v348, %v350
    %v352 = vrot.slane %v124, %v351
    %v354 = vunpack.c.l.s4 1966171168
    %v355 = vunpack.c.0.s8 %v354
    %v356 = vlaneseq
    %v357 = vshrl.u32 %v356, 7
    %v358 = vsub.s32 %v355, %v357
    %v359 = vrot.slane %v345, %v358
    %v360 = vcombine.high %v352, %v352
    %v361 = vcombine.high %v359, %v359
    %v363 = vunpack.c.l.s4 1966171168
    %v364 = vunpack.c.0.s8 %v363
    %v365 = vlaneseq
    %v366 = vshrl.u32 %v365, 7
    %v367 = vsub.s32 %v364, %v366
    %v368 = vrot.slane %v352, %v367
    %v370 = vunpack.c.l.s4 1966171168
    %v371 = vunpack.c.0.s8 %v370
    %v372 = vlaneseq
    %v373 = vshrl.u32 %v372, 7
    %v374 = vsub.s32 %v371, %v373
    %v375 = vrot.slane %v359, %v374
    %v377 = vunpack.c.l.s4 1966171168
    %v378 = vunpack.c.0.s8 %v377
    %v379 = vlaneseq
    %v380 = vshrl.u32 %v379, 7
    %v381 = vsub.s32 %v378, %v380
    %v382 = vrot.slane %v360, %v381
    %v384 = vunpack.c.l.s4 1966171168
    %v385 = vunpack.c.0.s8 %v384
    %v386 = vlaneseq
    %v387 = vshrl.u32 %v386, 7
    %v388 = vsub.s32 %v385, %v387
    %v389 = vrot.slane %v361, %v388
    %v390 = vcombine.high %v368, %v368
    %v391 = vcombine.high %v375, %v375
    %v392 = vcombine.high %v382, %v382
    %v393 = vcombine.high %v389, %v389
    %v394 = vlaneseq
    %v395 = vshrl.u32 %v394, 7
    %v396 = vsub.s32 0, %v395
    %v397 = vrot.slane %v368, %v396
    %v398 = vlaneseq
    %v399 = vshrl.u32 %v398, 7
    %v400 = vsub.s32 0, %v399
    %v401 = vrot.slane %v382, %v400
    %v402 = vlaneseq
    %v403 = vshrl.u32 %v402, 7
    %v404 = vsub.s32 0, %v403
    %v405 = vrot.slane %v390, %v404
    %v406 = vlaneseq
    %v407 = vshrl.u32 %v406, 7
    %v408 = vsub.s32 0, %v407
    %v409 = vrot.slane %v392, %v408
    %v410 = vlaneseq
    %v411 = vshrl.u32 %v410, 7
    %v412 = vsub.s32 0, %v411
    %v413 = vrot.slane %v375, %v412
    %v414 = vlaneseq
    %v415 = vshrl.u32 %v414, 7
    %v416 = vsub.s32 0, %v415
    %v417 = vrot.slane %v389, %v416
    %v418 = vlaneseq
    %v419 = vshrl.u32 %v418, 7
    %v420 = vsub.s32 0, %v419
    %v421 = vrot.slane %v391, %v420
    %v422 = vlaneseq
    %v423 = vshrl.u32 %v422, 7
    %v424 = vsub.s32 0, %v423
    %v425 = vrot.slane %v393, %v424
    %v434 = vcombine.low %v258, %v328
    %v435 = vcombine.low %v329, %v268
    %v436 = vcombine.low %v273, %v331
    %v437 = vcombine.low %v332, %v283
    %v438 = vcombine.low %v288, %v334
    %v439 = vcombine.low %v335, %v298
    %v440 = vcombine.low %v303, %v337
    %v441 = vcombine.low %v338, %v313
    %v450 = vmul.f32 %v397, %v434
    %v451 = vmul.f32 %v397, %v263
    %v452 = vmul.f32 %v401, %v435
    %v453 = vmul.f32 %v401, %v330
    %v454 = vmul.f32 %v405, %v436
    %v455 = vmul.f32 %v405, %v278
    %v456 = vmul.f32 %v409, %v437
    %v457 = vmul.f32 %v409, %v333
    %v458 = vmul.f32 %v413, %v438
    %v459 = vmul.f32 %v413, %v293
    %v460 = vmul.f32 %v417, %v439
    %v461 = vmul.f32 %v417, %v336
    %v462 = vmul.f32 %v421, %v440
    %v463 = vmul.f32 %v421, %v308
    %v464 = vmul.f32 %v425, %v441
    %v465 = vmul.f32 %v425, %v339
    %v466 = vsel %vm53, %v450, 0.0
    %467 = vadd.xlane.f32.xlu0 %v466
    %v468 = vpop.xlane.xlu0 %467
    %vm469 = vcmask 257024
    %v470 = vsel %vm469, %v451, 0.0
    %471 = vadd.xlane.f32.xlu0 %v470
    %v472 = vpop.xlane.xlu0 %471
    %v473 = vsel %vm53, %v452, 0.0
    %474 = vadd.xlane.f32.xlu0 %v473
    %v475 = vpop.xlane.xlu0 %474
    %v476 = vsel %vm469, %v453, 0.0
    %477 = vadd.xlane.f32.xlu0 %v476
    %v478 = vpop.xlane.xlu0 %477
    %v479 = vsel %vm53, %v454, 0.0
    %480 = vadd.xlane.f32.xlu0 %v479
    %v481 = vpop.xlane.xlu0 %480
    %v482 = vsel %vm469, %v455, 0.0
    %483 = vadd.xlane.f32.xlu0 %v482
    %v484 = vpop.xlane.xlu0 %483
    %v485 = vsel %vm53, %v456, 0.0
    %486 = vadd.xlane.f32.xlu0 %v485
    %v487 = vpop.xlane.xlu0 %486
    %v488 = vsel %vm469, %v457, 0.0
    %489 = vadd.xlane.f32.xlu0 %v488
    %v490 = vpop.xlane.xlu0 %489
    %v491 = vsel %vm53, %v458, 0.0
    %492 = vadd.xlane.f32.xlu0 %v491
    %v493 = vpop.xlane.xlu0 %492
    %v494 = vsel %vm469, %v459, 0.0
    %495 = vadd.xlane.f32.xlu0 %v494
    %v496 = vpop.xlane.xlu0 %495
    %v497 = vsel %vm53, %v460, 0.0
    %498 = vadd.xlane.f32.xlu0 %v497
    %v499 = vpop.xlane.xlu0 %498
    %v500 = vsel %vm469, %v461, 0.0
    %501 = vadd.xlane.f32.xlu0 %v500
    %v502 = vpop.xlane.xlu0 %501
    %v503 = vsel %vm53, %v462, 0.0
    %504 = vadd.xlane.f32.xlu0 %v503
    %v505 = vpop.xlane.xlu0 %504
    %v506 = vsel %vm469, %v463, 0.0
    %507 = vadd.xlane.f32.xlu0 %v506
    %v508 = vpop.xlane.xlu0 %507
    %v509 = vsel %vm53, %v464, 0.0
    %510 = vadd.xlane.f32.xlu0 %v509
    %v511 = vpop.xlane.xlu0 %510
    %v512 = vsel %vm469, %v465, 0.0
    %513 = vadd.xlane.f32.xlu0 %v512
    %v514 = vpop.xlane.xlu0 %513
    %v515 = vmul.f32 %v468, 0.17677669
    %v516 = vmul.f32 %v472, 0.17677669
    %v517 = vmul.f32 %v475, 0.17677669
    %v518 = vmul.f32 %v478, 0.17677669
    %v519 = vmul.f32 %v481, 0.17677669
    %v520 = vmul.f32 %v484, 0.17677669
    %v521 = vmul.f32 %v487, 0.17677669
    %v522 = vmul.f32 %v490, 0.17677669
    %v523 = vmul.f32 %v493, 0.17677669
    %v524 = vmul.f32 %v496, 0.17677669
    %v525 = vmul.f32 %v499, 0.17677669
    %v526 = vmul.f32 %v502, 0.17677669
    %v527 = vmul.f32 %v505, 0.17677669
    %v528 = vmul.f32 %v508, 0.17677669
    %v529 = vmul.f32 %v511, 0.17677669
    %v530 = vmul.f32 %v514, 0.17677669
    %v531 = vld [vmem:[%s2] sm:$0xff]
    %v533 = vlaneseq
    %v534 = vshrl.u32 %v533, 7
    %v535 = vsub.s32 0, %v534
    %v536 = vrot.slane %v531, %v535
    %538 = vbcast.lane.b32.xlu0 %v536, 256
    %v539 = vpop.permute.xlu0 %538
    %s541 = sor.u32 256, 8
    %542 = vbcast.lane.b32.xlu0 %v536, %s541
    %v543 = vpop.permute.xlu0 %542
    %v544 = vlaneseq
    %v545 = vshrl.u32 %v544, 7
    %v546 = vsub.s32 1, %v545
    %v547 = vrot.slane %v531, %v546
    %549 = vbcast.lane.b32.xlu0 %v547, 256
    %v550 = vpop.permute.xlu0 %549
    %s552 = sor.u32 256, 8
    %553 = vbcast.lane.b32.xlu0 %v547, %s552
    %v554 = vpop.permute.xlu0 %553
    %v555 = vlaneseq
    %v556 = vshrl.u32 %v555, 7
    %v557 = vsub.s32 2, %v556
    %v558 = vrot.slane %v531, %v557
    %560 = vbcast.lane.b32.xlu0 %v558, 256
    %v561 = vpop.permute.xlu0 %560
    %s563 = sor.u32 256, 8
    %564 = vbcast.lane.b32.xlu0 %v558, %s563
    %v565 = vpop.permute.xlu0 %564
    %v566 = vlaneseq
    %v567 = vshrl.u32 %v566, 7
    %v568 = vsub.s32 3, %v567
    %v569 = vrot.slane %v531, %v568
    %571 = vbcast.lane.b32.xlu0 %v569, 256
    %v572 = vpop.permute.xlu0 %571
    %s574 = sor.u32 256, 8
    %575 = vbcast.lane.b32.xlu0 %v569, %s574
    %v576 = vpop.permute.xlu0 %575
    %v577 = vlaneseq
    %v578 = vshrl.u32 %v577, 7
    %v579 = vsub.s32 4, %v578
    %v580 = vrot.slane %v531, %v579
    %582 = vbcast.lane.b32.xlu0 %v580, 256
    %v583 = vpop.permute.xlu0 %582
    %s585 = sor.u32 256, 8
    %586 = vbcast.lane.b32.xlu0 %v580, %s585
    %v587 = vpop.permute.xlu0 %586
    %v588 = vlaneseq
    %v589 = vshrl.u32 %v588, 7
    %v590 = vsub.s32 5, %v589
    %v591 = vrot.slane %v531, %v590
    %593 = vbcast.lane.b32.xlu0 %v591, 256
    %v594 = vpop.permute.xlu0 %593
    %s596 = sor.u32 256, 8
    %597 = vbcast.lane.b32.xlu0 %v591, %s596
    %v598 = vpop.permute.xlu0 %597
    %v599 = vlaneseq
    %v600 = vshrl.u32 %v599, 7
    %v601 = vsub.s32 6, %v600
    %v602 = vrot.slane %v531, %v601
    %604 = vbcast.lane.b32.xlu0 %v602, 256
    %v605 = vpop.permute.xlu0 %604
    %s607 = sor.u32 256, 8
    %608 = vbcast.lane.b32.xlu0 %v602, %s607
    %v609 = vpop.permute.xlu0 %608
    %v610 = vlaneseq
    %v611 = vshrl.u32 %v610, 7
    %v612 = vsub.s32 7, %v611
    %v613 = vrot.slane %v531, %v612
    %615 = vbcast.lane.b32.xlu0 %v613, 256
    %v616 = vpop.permute.xlu0 %615
    %s618 = sor.u32 256, 8
    %619 = vbcast.lane.b32.xlu0 %v613, %s618
    %v620 = vpop.permute.xlu0 %619
    %v637 = vadd.f32 %v515, %v539
    %v638 = vadd.f32 %v516, %v543
    %v639 = vadd.f32 %v517, %v550
    %v640 = vadd.f32 %v518, %v554
    %v641 = vadd.f32 %v519, %v561
    %v642 = vadd.f32 %v520, %v565
    %v643 = vadd.f32 %v521, %v572
    %v644 = vadd.f32 %v522, %v576
    %v645 = vadd.f32 %v523, %v583
    %v646 = vadd.f32 %v524, %v587
    %v647 = vadd.f32 %v525, %v594
    %v648 = vadd.f32 %v526, %v598
    %v649 = vadd.f32 %v527, %v605
    %v650 = vadd.f32 %v528, %v609
    %v651 = vadd.f32 %v529, %v616
    %v652 = vadd.f32 %v530, %v620
    %669 = vset.pattern.permute.xlu0 0
    %670 = vperm.xlu0 %669, %v637
    %v671 = vpop.permute.xlu0 %670
    %672 = vset.pattern.permute.xlu0 0
    %673 = vperm.xlu0 %672, %v638
    %v674 = vpop.permute.xlu0 %673
    %675 = vset.pattern.permute.xlu0 0
    %676 = vperm.xlu0 %675, %v639
    %v677 = vpop.permute.xlu0 %676
    %678 = vset.pattern.permute.xlu0 0
    %679 = vperm.xlu0 %678, %v640
    %v680 = vpop.permute.xlu0 %679
    %681 = vset.pattern.permute.xlu0 0
    %682 = vperm.xlu0 %681, %v641
    %v683 = vpop.permute.xlu0 %682
    %684 = vset.pattern.permute.xlu0 0
    %685 = vperm.xlu0 %684, %v642
    %v686 = vpop.permute.xlu0 %685
    %687 = vset.pattern.permute.xlu0 0
    %688 = vperm.xlu0 %687, %v643
    %v689 = vpop.permute.xlu0 %688
    %690 = vset.pattern.permute.xlu0 0
    %691 = vperm.xlu0 %690, %v644
    %v692 = vpop.permute.xlu0 %691
    %693 = vset.pattern.permute.xlu0 0
    %694 = vperm.xlu0 %693, %v645
    %v695 = vpop.permute.xlu0 %694
    %696 = vset.pattern.permute.xlu0 0
    %697 = vperm.xlu0 %696, %v646
    %v698 = vpop.permute.xlu0 %697
    %699 = vset.pattern.permute.xlu0 0
    %700 = vperm.xlu0 %699, %v647
    %v701 = vpop.permute.xlu0 %700
    %702 = vset.pattern.permute.xlu0 0
    %703 = vperm.xlu0 %702, %v648
    %v704 = vpop.permute.xlu0 %703
    %705 = vset.pattern.permute.xlu0 0
    %706 = vperm.xlu0 %705, %v649
    %v707 = vpop.permute.xlu0 %706
    %708 = vset.pattern.permute.xlu0 0
    %709 = vperm.xlu0 %708, %v650
    %v710 = vpop.permute.xlu0 %709
    %711 = vset.pattern.permute.xlu0 0
    %712 = vperm.xlu0 %711, %v651
    %v713 = vpop.permute.xlu0 %712
    %714 = vset.pattern.permute.xlu0 0
    %715 = vperm.xlu0 %714, %v652
    %v716 = vpop.permute.xlu0 %715
    %v717 = vlaneseq
    %v718 = vand.u32 %v717, 127
    %v719 = vlaneseq
    %v720 = vshrl.u32 %v719, 7
    %v721 = vsub.s32 %v718, %v720
    %v722 = vrot.slane %v671, %v721
    %v723 = vadd.s32 %v718, 4294967288
    %v724 = vlaneseq
    %v725 = vshrl.u32 %v724, 7
    %v726 = vsub.s32 %v723, %v725
    %v727 = vrot.slane %v674, %v726
    %vm728 = vcmask 130112
    %v729 = vsel %vm728, %v727, %v722
    %v730 = vlaneseq
    %v731 = vshrl.u32 %v730, 7
    %v732 = vsub.s32 %v718, %v731
    %v733 = vrot.slane %v677, %v732
    %v734 = vlaneseq
    %v735 = vshrl.u32 %v734, 7
    %v736 = vsub.s32 %v723, %v735
    %v737 = vrot.slane %v680, %v736
    %v738 = vsel %vm728, %v737, %v733
    %v739 = vlaneseq
    %v740 = vshrl.u32 %v739, 7
    %v741 = vsub.s32 %v718, %v740
    %v742 = vrot.slane %v683, %v741
    %v743 = vlaneseq
    %v744 = vshrl.u32 %v743, 7
    %v745 = vsub.s32 %v723, %v744
    %v746 = vrot.slane %v686, %v745
    %v747 = vsel %vm728, %v746, %v742
    %v748 = vlaneseq
    %v749 = vshrl.u32 %v748, 7
    %v750 = vsub.s32 %v718, %v749
    %v751 = vrot.slane %v689, %v750
    %v752 = vlaneseq
    %v753 = vshrl.u32 %v752, 7
    %v754 = vsub.s32 %v723, %v753
    %v755 = vrot.slane %v692, %v754
    %v756 = vsel %vm728, %v755, %v751
    %v757 = vlaneseq
    %v758 = vshrl.u32 %v757, 7
    %v759 = vsub.s32 %v718, %v758
    %v760 = vrot.slane %v695, %v759
    %v761 = vlaneseq
    %v762 = vshrl.u32 %v761, 7
    %v763 = vsub.s32 %v723, %v762
    %v764 = vrot.slane %v698, %v763
    %v765 = vsel %vm728, %v764, %v760
    %v766 = vlaneseq
    %v767 = vshrl.u32 %v766, 7
    %v768 = vsub.s32 %v718, %v767
    %v769 = vrot.slane %v701, %v768
    %v770 = vlaneseq
    %v771 = vshrl.u32 %v770, 7
    %v772 = vsub.s32 %v723, %v771
    %v773 = vrot.slane %v704, %v772
    %v774 = vsel %vm728, %v773, %v769
    %v775 = vlaneseq
    %v776 = vshrl.u32 %v775, 7
    %v777 = vsub.s32 %v718, %v776
    %v778 = vrot.slane %v707, %v777
    %v779 = vlaneseq
    %v780 = vshrl.u32 %v779, 7
    %v781 = vsub.s32 %v723, %v780
    %v782 = vrot.slane %v710, %v781
    %v783 = vsel %vm728, %v782, %v778
    %v784 = vlaneseq
    %v785 = vshrl.u32 %v784, 7
    %v786 = vsub.s32 %v718, %v785
    %v787 = vrot.slane %v713, %v786
    %v788 = vlaneseq
    %v789 = vshrl.u32 %v788, 7
    %v790 = vsub.s32 %v723, %v789
    %v791 = vrot.slane %v716, %v790
    %v792 = vsel %vm728, %v791, %v787
    %vm793 = vcmask 1041409
    %v794 = vsel %vm793, %v738, %v729
    %vm795 = vcmask 1042434
    %v796 = vsel %vm795, %v747, %v794
    %vm797 = vcmask 1043459
    %v798 = vsel %vm797, %v756, %v796
    %vm799 = vcmask 1044484
    %v800 = vsel %vm799, %v765, %v798
    %vm801 = vcmask 1045509
    %v802 = vsel %vm801, %v774, %v800
    %vm803 = vcmask 1046534
    %v804 = vsel %vm803, %v783, %v802
    %vm805 = vcmask 1047559
    %v806 = vsel %vm805, %v792, %v804
    %vm808 = vcmask 97280
    %v809 = vsel %vm808, %v806, -inf
    %810 = vmax.xlane.f32.xlu0 %v809
    %v811 = vpop.xlane.xlu0 %810
    %v813 = vlaneseq
    %v814 = vshrl.u32 %v813, 7
    %v815 = vsub.s32 0, %v814
    %v816 = vrot.slane %v811, %v815
    %v817 = vlaneseq
    %v818 = vshrl.u32 %v817, 7
    %v819 = vsub.s32 1, %v818
    %v820 = vrot.slane %v811, %v819
    %v821 = vlaneseq
    %v822 = vshrl.u32 %v821, 7
    %v823 = vsub.s32 2, %v822
    %v824 = vrot.slane %v811, %v823
    %v825 = vlaneseq
    %v826 = vshrl.u32 %v825, 7
    %v827 = vsub.s32 3, %v826
    %v828 = vrot.slane %v811, %v827
    %v829 = vlaneseq
    %v830 = vshrl.u32 %v829, 7
    %v831 = vsub.s32 4, %v830
    %v832 = vrot.slane %v811, %v831
    %v833 = vlaneseq
    %v834 = vshrl.u32 %v833, 7
    %v835 = vsub.s32 5, %v834
    %v836 = vrot.slane %v811, %v835
    %v837 = vlaneseq
    %v838 = vshrl.u32 %v837, 7
    %v839 = vsub.s32 6, %v838
    %v840 = vrot.slane %v811, %v839
    %v841 = vlaneseq
    %v842 = vshrl.u32 %v841, 7
    %v843 = vsub.s32 7, %v842
    %v844 = vrot.slane %v811, %v843
    %v853 = vsub.f32 %v637, %v816
    %v854 = vsub.f32 %v638, %v816
    %v855 = vsub.f32 %v639, %v820
    %v856 = vsub.f32 %v640, %v820
    %v857 = vsub.f32 %v641, %v824
    %v858 = vsub.f32 %v642, %v824
    %v859 = vsub.f32 %v643, %v828
    %v860 = vsub.f32 %v644, %v828
    %v861 = vsub.f32 %v645, %v832
    %v862 = vsub.f32 %v646, %v832
    %v863 = vsub.f32 %v647, %v836
    %v864 = vsub.f32 %v648, %v836
    %v865 = vsub.f32 %v649, %v840
    %v866 = vsub.f32 %v650, %v840
    %v867 = vsub.f32 %v651, %v844
    %v868 = vsub.f32 %v652, %v844
    %v869 = vmul.f32 %v853, 1.442695
    %v870 = vpow.pop %v869
    %v871 = vmul.f32 %v854, 1.442695
    %v872 = vpow.pop %v871
    %v873 = vmul.f32 %v855, 1.442695
    %v874 = vpow.pop %v873
    %v875 = vmul.f32 %v856, 1.442695
    %v876 = vpow.pop %v875
    %v877 = vmul.f32 %v857, 1.442695
    %v878 = vpow.pop %v877
    %v879 = vmul.f32 %v858, 1.442695
    %v880 = vpow.pop %v879
    %v881 = vmul.f32 %v859, 1.442695
    %v882 = vpow.pop %v881
    %v883 = vmul.f32 %v860, 1.442695
    %v884 = vpow.pop %v883
    %v885 = vmul.f32 %v861, 1.442695
    %v886 = vpow.pop %v885
    %v887 = vmul.f32 %v862, 1.442695
    %v888 = vpow.pop %v887
    %v889 = vmul.f32 %v863, 1.442695
    %v890 = vpow.pop %v889
    %v891 = vmul.f32 %v864, 1.442695
    %v892 = vpow.pop %v891
    %v893 = vmul.f32 %v865, 1.442695
    %v894 = vpow.pop %v893
    %v895 = vmul.f32 %v866, 1.442695
    %v896 = vpow.pop %v895
    %v897 = vmul.f32 %v867, 1.442695
    %v898 = vpow.pop %v897
    %v899 = vmul.f32 %v868, 1.442695
    %v900 = vpow.pop %v899
    %917 = vset.pattern.permute.xlu0 0
    %918 = vperm.xlu0 %917, %v870
    %v919 = vpop.permute.xlu0 %918
    %920 = vset.pattern.permute.xlu0 0
    %921 = vperm.xlu0 %920, %v872
    %v922 = vpop.permute.xlu0 %921
    %923 = vset.pattern.permute.xlu0 0
    %924 = vperm.xlu0 %923, %v874
    %v925 = vpop.permute.xlu0 %924
    %926 = vset.pattern.permute.xlu0 0
    %927 = vperm.xlu0 %926, %v876
    %v928 = vpop.permute.xlu0 %927
    %929 = vset.pattern.permute.xlu0 0
    %930 = vperm.xlu0 %929, %v878
    %v931 = vpop.permute.xlu0 %930
    %932 = vset.pattern.permute.xlu0 0
    %933 = vperm.xlu0 %932, %v880
    %v934 = vpop.permute.xlu0 %933
    %935 = vset.pattern.permute.xlu0 0
    %936 = vperm.xlu0 %935, %v882
    %v937 = vpop.permute.xlu0 %936
    %938 = vset.pattern.permute.xlu0 0
    %939 = vperm.xlu0 %938, %v884
    %v940 = vpop.permute.xlu0 %939
    %941 = vset.pattern.permute.xlu0 0
    %942 = vperm.xlu0 %941, %v886
    %v943 = vpop.permute.xlu0 %942
    %944 = vset.pattern.permute.xlu0 0
    %945 = vperm.xlu0 %944, %v888
    %v946 = vpop.permute.xlu0 %945
    %947 = vset.pattern.permute.xlu0 0
    %948 = vperm.xlu0 %947, %v890
    %v949 = vpop.permute.xlu0 %948
    %950 = vset.pattern.permute.xlu0 0
    %951 = vperm.xlu0 %950, %v892
    %v952 = vpop.permute.xlu0 %951
    %953 = vset.pattern.permute.xlu0 0
    %954 = vperm.xlu0 %953, %v894
    %v955 = vpop.permute.xlu0 %954
    %956 = vset.pattern.permute.xlu0 0
    %957 = vperm.xlu0 %956, %v896
    %v958 = vpop.permute.xlu0 %957
    %959 = vset.pattern.permute.xlu0 0
    %960 = vperm.xlu0 %959, %v898
    %v961 = vpop.permute.xlu0 %960
    %962 = vset.pattern.permute.xlu0 0
    %963 = vperm.xlu0 %962, %v900
    %v964 = vpop.permute.xlu0 %963
    %v965 = vlaneseq
    %v966 = vshrl.u32 %v965, 7
    %v967 = vsub.s32 %v718, %v966
    %v968 = vrot.slane %v919, %v967
    %v969 = vlaneseq
    %v970 = vshrl.u32 %v969, 7
    %v971 = vsub.s32 %v723, %v970
    %v972 = vrot.slane %v922, %v971
    %v973 = vsel %vm728, %v972, %v968
    %v974 = vlaneseq
    %v975 = vshrl.u32 %v974, 7
    %v976 = vsub.s32 %v718, %v975
    %v977 = vrot.slane %v925, %v976
    %v978 = vlaneseq
    %v979 = vshrl.u32 %v978, 7
    %v980 = vsub.s32 %v723, %v979
    %v981 = vrot.slane %v928, %v980
    %v982 = vsel %vm728, %v981, %v977
    %v983 = vlaneseq
    %v984 = vshrl.u32 %v983, 7
    %v985 = vsub.s32 %v718, %v984
    %v986 = vrot.slane %v931, %v985
    %v987 = vlaneseq
    %v988 = vshrl.u32 %v987, 7
    %v989 = vsub.s32 %v723, %v988
    %v990 = vrot.slane %v934, %v989
    %v991 = vsel %vm728, %v990, %v986
    %v992 = vlaneseq
    %v993 = vshrl.u32 %v992, 7
    %v994 = vsub.s32 %v718, %v993
    %v995 = vrot.slane %v937, %v994
    %v996 = vlaneseq
    %v997 = vshrl.u32 %v996, 7
    %v998 = vsub.s32 %v723, %v997
    %v999 = vrot.slane %v940, %v998
    %v1000 = vsel %vm728, %v999, %v995
    %v1001 = vlaneseq
    %v1002 = vshrl.u32 %v1001, 7
    %v1003 = vsub.s32 %v718, %v1002
    %v1004 = vrot.slane %v943, %v1003
    %v1005 = vlaneseq
    %v1006 = vshrl.u32 %v1005, 7
    %v1007 = vsub.s32 %v723, %v1006
    %v1008 = vrot.slane %v946, %v1007
    %v1009 = vsel %vm728, %v1008, %v1004
    %v1010 = vlaneseq
    %v1011 = vshrl.u32 %v1010, 7
    %v1012 = vsub.s32 %v718, %v1011
    %v1013 = vrot.slane %v949, %v1012
    %v1014 = vlaneseq
    %v1015 = vshrl.u32 %v1014, 7
    %v1016 = vsub.s32 %v723, %v1015
    %v1017 = vrot.slane %v952, %v1016
    %v1018 = vsel %vm728, %v1017, %v1013
    %v1019 = vlaneseq
    %v1020 = vshrl.u32 %v1019, 7
    %v1021 = vsub.s32 %v718, %v1020
    %v1022 = vrot.slane %v955, %v1021
    %v1023 = vlaneseq
    %v1024 = vshrl.u32 %v1023, 7
    %v1025 = vsub.s32 %v723, %v1024
    %v1026 = vrot.slane %v958, %v1025
    %v1027 = vsel %vm728, %v1026, %v1022
    %v1028 = vlaneseq
    %v1029 = vshrl.u32 %v1028, 7
    %v1030 = vsub.s32 %v718, %v1029
    %v1031 = vrot.slane %v961, %v1030
    %v1032 = vlaneseq
    %v1033 = vshrl.u32 %v1032, 7
    %v1034 = vsub.s32 %v723, %v1033
    %v1035 = vrot.slane %v964, %v1034
    %v1036 = vsel %vm728, %v1035, %v1031
    %v1037 = vsel %vm793, %v982, %v973
    %v1038 = vsel %vm795, %v991, %v1037
    %v1039 = vsel %vm797, %v1000, %v1038
    %v1040 = vsel %vm799, %v1009, %v1039
    %v1041 = vsel %vm801, %v1018, %v1040
    %v1042 = vsel %vm803, %v1027, %v1041
    %v1043 = vsel %vm805, %v1036, %v1042
    %v1045 = vsel %vm808, %v1043, 0.0
    %1046 = vadd.xlane.f32.xlu0 %v1045
    %v1047 = vpop.xlane.xlu0 %1046
    %v1048 = vrcp.pop %v1047
    %v1050 = vlaneseq
    %v1051 = vshrl.u32 %v1050, 7
    %v1052 = vsub.s32 0, %v1051
    %v1053 = vrot.slane %v1048, %v1052
    %v1054 = vlaneseq
    %v1055 = vshrl.u32 %v1054, 7
    %v1056 = vsub.s32 1, %v1055
    %v1057 = vrot.slane %v1048, %v1056
    %v1058 = vlaneseq
    %v1059 = vshrl.u32 %v1058, 7
    %v1060 = vsub.s32 2, %v1059
    %v1061 = vrot.slane %v1048, %v1060
    %v1062 = vlaneseq
    %v1063 = vshrl.u32 %v1062, 7
    %v1064 = vsub.s32 3, %v1063
    %v1065 = vrot.slane %v1048, %v1064
    %v1066 = vlaneseq
    %v1067 = vshrl.u32 %v1066, 7
    %v1068 = vsub.s32 4, %v1067
    %v1069 = vrot.slane %v1048, %v1068
    %v1070 = vlaneseq
    %v1071 = vshrl.u32 %v1070, 7
    %v1072 = vsub.s32 5, %v1071
    %v1073 = vrot.slane %v1048, %v1072
    %v1074 = vlaneseq
    %v1075 = vshrl.u32 %v1074, 7
    %v1076 = vsub.s32 6, %v1075
    %v1077 = vrot.slane %v1048, %v1076
    %v1078 = vlaneseq
    %v1079 = vshrl.u32 %v1078, 7
    %v1080 = vsub.s32 7, %v1079
    %v1081 = vrot.slane %v1048, %v1080
    %v1090 = vmul.f32 %v870, %v1053
    %v1091 = vmul.f32 %v872, %v1053
    %v1092 = vmul.f32 %v874, %v1057
    %v1093 = vmul.f32 %v876, %v1057
    %v1094 = vmul.f32 %v878, %v1061
    %v1095 = vmul.f32 %v880, %v1061
    %v1096 = vmul.f32 %v882, %v1065
    %v1097 = vmul.f32 %v884, %v1065
    %v1098 = vmul.f32 %v886, %v1069
    %v1099 = vmul.f32 %v888, %v1069
    %v1100 = vmul.f32 %v890, %v1073
    %v1101 = vmul.f32 %v892, %v1073
    %v1102 = vmul.f32 %v894, %v1077
    %v1103 = vmul.f32 %v896, %v1077
    %v1104 = vmul.f32 %v898, %v1081
    %v1105 = vmul.f32 %v900, %v1081
    %1107 = vset.pattern.permute.xlu0 0
    %1108 = vperm.xlu0 %1107, %v1090
    %v1109 = vpop.permute.xlu0 %1108
    %1112 = vset.pattern.permute.xlu0 0
    %1113 = vperm.xlu0 %1112, %v1091
    %v1114 = vpop.permute.xlu0 %1113
    %1117 = vset.pattern.permute.xlu0 0
    %1118 = vperm.xlu0 %1117, %v1092
    %v1119 = vpop.permute.xlu0 %1118
    %1122 = vset.pattern.permute.xlu0 0
    %1123 = vperm.xlu0 %1122, %v1093
    %v1124 = vpop.permute.xlu0 %1123
    %1127 = vset.pattern.permute.xlu0 0
    %1128 = vperm.xlu0 %1127, %v1094
    %v1129 = vpop.permute.xlu0 %1128
    %1132 = vset.pattern.permute.xlu0 0
    %1133 = vperm.xlu0 %1132, %v1095
    %v1134 = vpop.permute.xlu0 %1133
    %1137 = vset.pattern.permute.xlu0 0
    %1138 = vperm.xlu0 %1137, %v1096
    %v1139 = vpop.permute.xlu0 %1138
    %1142 = vset.pattern.permute.xlu0 0
    %1143 = vperm.xlu0 %1142, %v1097
    %v1144 = vpop.permute.xlu0 %1143
    %1147 = vset.pattern.permute.xlu0 0
    %1148 = vperm.xlu0 %1147, %v1098
    %v1149 = vpop.permute.xlu0 %1148
    %1152 = vset.pattern.permute.xlu0 0
    %1153 = vperm.xlu0 %1152, %v1099
    %v1154 = vpop.permute.xlu0 %1153
    %1157 = vset.pattern.permute.xlu0 0
    %1158 = vperm.xlu0 %1157, %v1100
    %v1159 = vpop.permute.xlu0 %1158
    %1162 = vset.pattern.permute.xlu0 0
    %1163 = vperm.xlu0 %1162, %v1101
    %v1164 = vpop.permute.xlu0 %1163
    %1167 = vset.pattern.permute.xlu0 0
    %1168 = vperm.xlu0 %1167, %v1102
    %v1169 = vpop.permute.xlu0 %1168
    %1172 = vset.pattern.permute.xlu0 0
    %1173 = vperm.xlu0 %1172, %v1103
    %v1174 = vpop.permute.xlu0 %1173
    %1177 = vset.pattern.permute.xlu0 0
    %1178 = vperm.xlu0 %1177, %v1104
    %v1179 = vpop.permute.xlu0 %1178
    %1182 = vset.pattern.permute.xlu0 0
    %1183 = vperm.xlu0 %1182, %v1105
    %v1184 = vpop.permute.xlu0 %1183
    %1186 = vrot.lane.b32.xlu0 %v434, 96
    %v1187 = vpop.permute.xlu0 %1186
    %1188 = vrot.lane.b32.xlu0 %v263, 96
    %v1189 = vpop.permute.xlu0 %1188
    %1190 = vrot.lane.b32.xlu0 %v435, 96
    %v1191 = vpop.permute.xlu0 %1190
    %1192 = vrot.lane.b32.xlu0 %v330, 96
    %v1193 = vpop.permute.xlu0 %1192
    %1194 = vrot.lane.b32.xlu0 %v436, 96
    %v1195 = vpop.permute.xlu0 %1194
    %1196 = vrot.lane.b32.xlu0 %v278, 96
    %v1197 = vpop.permute.xlu0 %1196
    %1198 = vrot.lane.b32.xlu0 %v437, 96
    %v1199 = vpop.permute.xlu0 %1198
    %1200 = vrot.lane.b32.xlu0 %v333, 96
    %v1201 = vpop.permute.xlu0 %1200
    %1202 = vrot.lane.b32.xlu0 %v438, 96
    %v1203 = vpop.permute.xlu0 %1202
    %1204 = vrot.lane.b32.xlu0 %v293, 96
    %v1205 = vpop.permute.xlu0 %1204
    %1206 = vrot.lane.b32.xlu0 %v439, 96
    %v1207 = vpop.permute.xlu0 %1206
    %1208 = vrot.lane.b32.xlu0 %v336, 96
    %v1209 = vpop.permute.xlu0 %1208
    %1210 = vrot.lane.b32.xlu0 %v440, 96
    %v1211 = vpop.permute.xlu0 %1210
    %1212 = vrot.lane.b32.xlu0 %v308, 96
    %v1213 = vpop.permute.xlu0 %1212
    %1214 = vrot.lane.b32.xlu0 %v441, 96
    %v1215 = vpop.permute.xlu0 %1214
    %1216 = vrot.lane.b32.xlu0 %v339, 96
    %v1217 = vpop.permute.xlu0 %1216
    %v1234 = vmul.f32 %v1109, %v1187
    %v1235 = vmul.f32 %v1114, %v1189
    %v1236 = vmul.f32 %v1119, %v1191
    %v1237 = vmul.f32 %v1124, %v1193
    %v1238 = vmul.f32 %v1129, %v1195
    %v1239 = vmul.f32 %v1134, %v1197
    %v1240 = vmul.f32 %v1139, %v1199
    %v1241 = vmul.f32 %v1144, %v1201
    %v1242 = vmul.f32 %v1149, %v1203
    %v1243 = vmul.f32 %v1154, %v1205
    %v1244 = vmul.f32 %v1159, %v1207
    %v1245 = vmul.f32 %v1164, %v1209
    %v1246 = vmul.f32 %v1169, %v1211
    %v1247 = vmul.f32 %v1174, %v1213
    %v1248 = vmul.f32 %v1179, %v1215
    %v1249 = vmul.f32 %v1184, %v1217
    %v1250 = vsel %vm53, %v1234, 0.0
    %v1251 = vsel %vm469, %v1235, 0.0
    %v1252 = vadd.f32 %v1250, %v1251
    %v1253 = vrot.slane %v1252, 4
    %v1254 = vadd.f32 %v1252, %v1253
    %v1255 = vrot.slane %v1254, 2
    %v1256 = vadd.f32 %v1254, %v1255
    %v1257 = vrot.slane %v1256, 1
    %v1258 = vadd.f32 %v1256, %v1257
    %v1259 = vsel %vm53, %v1236, 0.0
    %v1260 = vsel %vm469, %v1237, 0.0
    %v1261 = vadd.f32 %v1259, %v1260
    %v1262 = vrot.slane %v1261, 4
    %v1263 = vadd.f32 %v1261, %v1262
    %v1264 = vrot.slane %v1263, 2
    %v1265 = vadd.f32 %v1263, %v1264
    %v1266 = vrot.slane %v1265, 1
    %v1267 = vadd.f32 %v1265, %v1266
    %v1268 = vsel %vm53, %v1238, 0.0
    %v1269 = vsel %vm469, %v1239, 0.0
    %v1270 = vadd.f32 %v1268, %v1269
    %v1271 = vrot.slane %v1270, 4
    %v1272 = vadd.f32 %v1270, %v1271
    %v1273 = vrot.slane %v1272, 2
    %v1274 = vadd.f32 %v1272, %v1273
    %v1275 = vrot.slane %v1274, 1
    %v1276 = vadd.f32 %v1274, %v1275
    %v1277 = vsel %vm53, %v1240, 0.0
    %v1278 = vsel %vm469, %v1241, 0.0
    %v1279 = vadd.f32 %v1277, %v1278
    %v1280 = vrot.slane %v1279, 4
    %v1281 = vadd.f32 %v1279, %v1280
    %v1282 = vrot.slane %v1281, 2
    %v1283 = vadd.f32 %v1281, %v1282
    %v1284 = vrot.slane %v1283, 1
    %v1285 = vadd.f32 %v1283, %v1284
    %v1286 = vsel %vm53, %v1242, 0.0
    %v1287 = vsel %vm469, %v1243, 0.0
    %v1288 = vadd.f32 %v1286, %v1287
    %v1289 = vrot.slane %v1288, 4
    %v1290 = vadd.f32 %v1288, %v1289
    %v1291 = vrot.slane %v1290, 2
    %v1292 = vadd.f32 %v1290, %v1291
    %v1293 = vrot.slane %v1292, 1
    %v1294 = vadd.f32 %v1292, %v1293
    %v1295 = vsel %vm53, %v1244, 0.0
    %v1296 = vsel %vm469, %v1245, 0.0
    %v1297 = vadd.f32 %v1295, %v1296
    %v1298 = vrot.slane %v1297, 4
    %v1299 = vadd.f32 %v1297, %v1298
    %v1300 = vrot.slane %v1299, 2
    %v1301 = vadd.f32 %v1299, %v1300
    %v1302 = vrot.slane %v1301, 1
    %v1303 = vadd.f32 %v1301, %v1302
    %v1304 = vsel %vm53, %v1246, 0.0
    %v1305 = vsel %vm469, %v1247, 0.0
    %v1306 = vadd.f32 %v1304, %v1305
    %v1307 = vrot.slane %v1306, 4
    %v1308 = vadd.f32 %v1306, %v1307
    %v1309 = vrot.slane %v1308, 2
    %v1310 = vadd.f32 %v1308, %v1309
    %v1311 = vrot.slane %v1310, 1
    %v1312 = vadd.f32 %v1310, %v1311
    %v1313 = vsel %vm53, %v1248, 0.0
    %v1314 = vsel %vm469, %v1249, 0.0
    %v1315 = vadd.f32 %v1313, %v1314
    %v1316 = vrot.slane %v1315, 4
    %v1317 = vadd.f32 %v1315, %v1316
    %v1318 = vrot.slane %v1317, 2
    %v1319 = vadd.f32 %v1317, %v1318
    %v1320 = vrot.slane %v1319, 1
    %v1321 = vadd.f32 %v1319, %v1320
    %v1322 = vld [vmem:[%s5] sm:$0xff]
    %v1323 = vld [vmem:[%s5 + $0x8] sm:$0xff]
    %v1324 = vld [vmem:[%s5 + $0x10] sm:$0xff]
    %v1325 = vld [vmem:[%s5 + $0x18] sm:$0xff]
    %v1334 = vsel %vm793, %v1267, %v1258
    %v1335 = vsel %vm795, %v1276, %v1334
    %v1336 = vsel %vm797, %v1285, %v1335
    %v1337 = vsel %vm799, %v1294, %v1336
    %v1338 = vsel %vm801, %v1303, %v1337
    %v1339 = vsel %vm803, %v1312, %v1338
    %v1340 = vsel %vm805, %v1321, %v1339
    %v1341 = vsel %vm53, %v1340, 0
    %1343 = vmatprep.subr.mxu0 0.0
    %1344 = vmatpush1.msra.mxu0 0.0
    %1345 = vmatprep.subr.mxu0 0.0
    %1346 = vmatpush1.msra.mxu0 0.0
    %1347 = vmatprep.subr.mxu0 0.0
    %1348 = vmatpush1.msra.mxu0 0.0
    %1349 = vmatprep.subr.mxu0 0.0
    %1350 = vmatpush1.msra.mxu0 0.0
    %1351 = vmatprep.subr.mxu0 0.0
    %1352 = vmatpush1.msra.mxu0 0.0
    %1353 = vmatprep.subr.mxu0 0.0
    %1354 = vmatpush1.msra.mxu0 0.0
    %1355 = vmatprep.subr.mxu0 0.0
    %1356 = vmatpush1.msra.mxu0 0.0
    %1357 = vmatprep.subr.mxu0 0.0
    %1358 = vmatpush1.msra.mxu0 0.0
    %1359 = vmatprep.subr.mxu0 0.0
    %1360 = vmatpush1.msra.mxu0 0.0
    %1361 = vmatprep.subr.mxu0 0.0
    %1362 = vmatpush1.msra.mxu0 0.0
    %1363 = vmatprep.subr.mxu0 0.0
    %1364 = vmatpush1.msra.mxu0 0.0
    %1365 = vmatprep.subr.mxu0 0.0
    %1366 = vmatpush1.msra.mxu0 0.0
    %1367 = vmatprep.subr.mxu0 0.0
    %1368 = vmatpush1.msra.mxu0 %v1325
    %1369 = vmatprep.subr.mxu0 0.0
    %1370 = vmatpush1.msra.mxu0 %v1324
    %1371 = vmatprep.subr.mxu0 0.0
    %1372 = vmatpush1.msra.mxu0 %v1323
    %1373 = vmatprep.subr.mxu0 0.0
    %1374 = vmatpush1.msra.mxu0 %v1322
    %1375 = vmatprep.subr.mxu0 0.0
    %1376 = vmatpush2.msra.mxu0 0.0
    %1377 = vmatprep.subr.mxu0 0.0
    %1378 = vmatpush2.msra.mxu0 0.0
    %1379 = vmatprep.subr.mxu0 0.0
    %1380 = vmatpush2.msra.mxu0 0.0
    %1381 = vmatprep.subr.mxu0 0.0
    %1382 = vmatpush2.msra.mxu0 0.0
    %1383 = vmatprep.subr.mxu0 0.0
    %1384 = vmatpush2.msra.mxu0 0.0
    %1385 = vmatprep.subr.mxu0 0.0
    %1386 = vmatpush2.msra.mxu0 0.0
    %1387 = vmatprep.subr.mxu0 0.0
    %1388 = vmatpush2.msra.mxu0 0.0
    %1389 = vmatprep.subr.mxu0 0.0
    %1390 = vmatpush2.msra.mxu0 0.0
    %1391 = vmatprep.subr.mxu0 0.0
    %1392 = vmatpush2.msra.mxu0 0.0
    %1393 = vmatprep.subr.mxu0 0.0
    %1394 = vmatpush2.msra.mxu0 0.0
    %1395 = vmatprep.subr.mxu0 0.0
    %1396 = vmatpush2.msra.mxu0 0.0
    %1397 = vmatprep.subr.mxu0 0.0
    %1398 = vmatpush2.msra.mxu0 0.0
    %1399 = vmatprep.subr.mxu0 0.0
    %1400 = vmatpush2.msra.mxu0 0.0
    %1401 = vmatprep.subr.mxu0 0.0
    %1402 = vmatpush2.msra.mxu0 0.0
    %1403 = vmatprep.subr.mxu0 0.0
    %1404 = vmatpush2.msra.mxu0 0.0
    %1405 = vmatprep.subr.mxu0 0.0
    %1406 = vmatpush2.msra.mxu0 0.0
    %1407 = vmatprep.mubr.f32.mxu0 0.0
    %1408 = vmatmul.mubr.f32.gmra.mxu0 %v1341
    %v1409 = vpop.f32.mrf.mxu0
    %v1410 = vadd.f32 0.0, %v1409
    %v1411 = vpop.f32.mrf.mxu0
    %1412 = vdwg.mxu0
    %1413 = vst.msk [vmem:[%s8] sm:$0xff] %vm53, %v1410
    %v1414 = vld [vmem:[%s6] sm:$0xff]
    %v1415 = vld [vmem:[%s6 + $0x8] sm:$0xff]
    %v1416 = vld [vmem:[%s6 + $0x10] sm:$0xff]
    %v1417 = vld [vmem:[%s6 + $0x18] sm:$0xff]
    %v1418 = vld [vmem:[%s7] sm:$0x1]
    %v1420 = vlaneseq
    %v1421 = vshrl.u32 %v1420, 7
    %v1422 = vsub.s32 0, %v1421
    %v1423 = vrot.slane %v1418, %v1422
    %v1426 = vsel %vm53, %v1410, 0
    %1428 = vmatprep.subr.mxu0 0.0
    %1429 = vmatpush1.msra.mxu0 0.0
    %1430 = vmatprep.subr.mxu0 0.0
    %1431 = vmatpush1.msra.mxu0 0.0
    %1432 = vmatprep.subr.mxu0 0.0
    %1433 = vmatpush1.msra.mxu0 0.0
    %1434 = vmatprep.subr.mxu0 0.0
    %1435 = vmatpush1.msra.mxu0 0.0
    %1436 = vmatprep.subr.mxu0 0.0
    %1437 = vmatpush1.msra.mxu0 0.0
    %1438 = vmatprep.subr.mxu0 0.0
    %1439 = vmatpush1.msra.mxu0 0.0
    %1440 = vmatprep.subr.mxu0 0.0
    %1441 = vmatpush1.msra.mxu0 0.0
    %1442 = vmatprep.subr.mxu0 0.0
    %1443 = vmatpush1.msra.mxu0 0.0
    %1444 = vmatprep.subr.mxu0 0.0
    %1445 = vmatpush1.msra.mxu0 0.0
    %1446 = vmatprep.subr.mxu0 0.0
    %1447 = vmatpush1.msra.mxu0 0.0
    %1448 = vmatprep.subr.mxu0 0.0
    %1449 = vmatpush1.msra.mxu0 0.0
    %1450 = vmatprep.subr.mxu0 0.0
    %1451 = vmatpush1.msra.mxu0 0.0
    %1452 = vmatprep.subr.mxu0 0.0
    %1453 = vmatpush1.msra.mxu0 %v1417
    %1454 = vmatprep.subr.mxu0 0.0
    %1455 = vmatpush1.msra.mxu0 %v1416
    %1456 = vmatprep.subr.mxu0 0.0
    %1457 = vmatpush1.msra.mxu0 %v1415
    %1458 = vmatprep.subr.mxu0 0.0
    %1459 = vmatpush1.msra.mxu0 %v1414
    %1460 = vmatprep.subr.mxu0 0.0
    %1461 = vmatpush2.msra.mxu0 0.0
    %1462 = vmatprep.subr.mxu0 0.0
    %1463 = vmatpush2.msra.mxu0 0.0
    %1464 = vmatprep.subr.mxu0 0.0
    %1465 = vmatpush2.msra.mxu0 0.0
    %1466 = vmatprep.subr.mxu0 0.0
    %1467 = vmatpush2.msra.mxu0 0.0
    %1468 = vmatprep.subr.mxu0 0.0
    %1469 = vmatpush2.msra.mxu0 0.0
    %1470 = vmatprep.subr.mxu0 0.0
    %1471 = vmatpush2.msra.mxu0 0.0
    %1472 = vmatprep.subr.mxu0 0.0
    %1473 = vmatpush2.msra.mxu0 0.0
    %1474 = vmatprep.subr.mxu0 0.0
    %1475 = vmatpush2.msra.mxu0 0.0
    %1476 = vmatprep.subr.mxu0 0.0
    %1477 = vmatpush2.msra.mxu0 0.0
    %1478 = vmatprep.subr.mxu0 0.0
    %1479 = vmatpush2.msra.mxu0 0.0
    %1480 = vmatprep.subr.mxu0 0.0
    %1481 = vmatpush2.msra.mxu0 0.0
    %1482 = vmatprep.subr.mxu0 0.0
    %1483 = vmatpush2.msra.mxu0 0.0
    %1484 = vmatprep.subr.mxu0 0.0
    %1485 = vmatpush2.msra.mxu0 0.0
    %1486 = vmatprep.subr.mxu0 0.0
    %1487 = vmatpush2.msra.mxu0 0.0
    %1488 = vmatprep.subr.mxu0 0.0
    %1489 = vmatpush2.msra.mxu0 0.0
    %1490 = vmatprep.subr.mxu0 0.0
    %1491 = vmatpush2.msra.mxu0 0.0
    %1492 = vmatprep.mubr.f32.mxu0 0.0
    %1493 = vmatmul.mubr.f32.gmra.mxu0 %v1426
    %v1494 = vpop.f32.mrf.mxu0
    %v1495 = vadd.f32 %v1423, %v1494
    %v1496 = vpop.f32.mrf.mxu0
    %1497 = vdwg.mxu0
    %1498 = vmax.xlane.f32.xlu0 %v1495
    %v1499 = vpop.xlane.xlu0 %1498
    %v1500 = vsub.f32 %v1495, %v1499
    %v1501 = vmul.f32 %v1500, 1.442695
    %v1502 = vpow.pop %v1501
    %1503 = vadd.xlane.f32.xlu0 %v1502
    %v1504 = vpop.xlane.xlu0 %1503
    %v1505 = vrcp.pop %v1504
    %v1506 = vmul.f32 %v1502, %v1505
    %1507 = vst [vmem:[#allocation2] sm:$0xff] %v1506
    // Predicated region
    $region34: #{graph_explorer_forward.53} parent=1 // pred_check
      _
    $region35: #{graph_explorer_forward.53} parent=1 // pred_check_branch
      %1509 = sbr.rel (0) target = $region37
    $region36: #{graph_explorer_forward.53} parent=1 // pred_region
      _
    $region37: #{graph_explorer_forward.53} parent=1 // pred_fallthru
      _
    // Predicated region
    $region38: #{graph_explorer_forward.53} parent=1 // pred_check
      _
    $region39: #{graph_explorer_forward.53} parent=1 // pred_check_branch
      %1511 = sbr.rel (0) target = $region41
    $region40: #{graph_explorer_forward.53} parent=1 // pred_region
      %s1513 = ssub.s32 128, 128
      %1514 = vsyncadd [#allocation3], %s1513
      %s1516 = sshll.u32 [#allocation2], 4
      %s1517 = int_to_ptr.vmem [resolvable:$true] %s1516
      %1519 = dma.vmem_to_hbm [thread:$0]  %s1517, 128, %s9, [#allocation3]
    $region41: #{graph_explorer_forward.53} parent=1 // pred_fallthru
      _
    // Predicated region
    $region42: #{graph_explorer_forward.53} parent=1 // pred_check
      _
    $region43: #{graph_explorer_forward.53} parent=1 // pred_check_branch
      %1521 = sbr.rel (0) target = $region45
    $region44: #{graph_explorer_forward.53} parent=1 // pred_region
      _
    $region45: #{graph_explorer_forward.53} parent=1 // pred_fallthru
      _
    // Predicated region
    $region46: #{graph_explorer_forward.53} parent=1 // pred_check
      _
    $region47: #{graph_explorer_forward.53} parent=1 // pred_check_branch
      %1523 = sbr.rel (0) target = $region49
    $region48: #{graph_explorer_forward.53} parent=1 // pred_region
      %1524 = dma.done [#allocation3], 128
    $region49: #{graph_explorer_forward.53} parent=1 // pred_fallthru
      _
    %1525 = vsyncpa [#allocation3], 1

</llo_original>
